<compile_context>
chip_gen: v7x
topology: tpu7x:2x2x1
jax: 0.10.0
libtpu: 0.0.40
codegen_flags: <defaults>
</compile_context>

<pallas_src>
import functools

import jax
import jax.numpy as jnp
from jax import lax
from jax.experimental import pallas as pl
from jax.experimental.pallas import tpu as pltpu

_LANE = 128
_VMEM_LIMIT = 32 * 1024 * 1024


def _vmem_specs(n):
    return [pl.BlockSpec(memory_space=pltpu.MemorySpace.VMEM) for _ in range(n)]


def _compiler_params():
    return pltpu.CompilerParams(vmem_limit_bytes=_VMEM_LIMIT)


# ----------------------------------------------------------------------------
# Fused bidirectional LSTM layer kernel
# ----------------------------------------------------------------------------
def bilstm_layer_kernel(x_ref, wih_ref, whh_ref, bias_ref, h0_ref, c0_ref,
                        yf_ref, yb_ref, xp_ref, *, T, B, Hp):
    H4 = 4 * Hp

    # (1) Hoisted, batched input projection for BOTH directions:
    #     (T*B, In) @ (In, 8*Hp) -> (T*B, 8*Hp) = [fwd gates | bwd gates]
    xproj = jnp.dot(x_ref[...], wih_ref[...],
                    preferred_element_type=jnp.float32) + bias_ref[...]
    # Scatter per-timestep rows into a (T, B, 8*Hp) scratch so the serial loop
    # reads them with a cheap dynamic leading index.
    for t in range(T):
        xp_ref[t] = xproj[t * B:(t + 1) * B]

    whh = whh_ref[...]                       # (2*Hp, 8*Hp) block-diagonal, bf16

    def cell(gates, c):
        # gate lane order [i | f | o | g], each Hp wide (128-aligned slabs)
        sig = jax.nn.sigmoid(gates[:, :3 * Hp])
        g = jnp.tanh(gates[:, 3 * Hp:])
        c_new = sig[:, Hp:2 * Hp] * c + sig[:, :Hp] * g
        h_new = sig[:, 2 * Hp:3 * Hp] * jnp.tanh(c_new)
        return h_new, c_new

    def step(s, carry):
        h, c = carry                                     # (B, 2*Hp) f32 each
        r = T - 1 - s
        # (2) single fused recurrent matmul per step for both directions
        rec = jnp.dot(h.astype(whh.dtype), whh,
                      preferred_element_type=jnp.float32)        # (B, 8*Hp)
        gf = xp_ref[s][:, :H4] + rec[:, :H4]
        gb = xp_ref[r][:, H4:] + rec[:, H4:]
        h_f, c_f = cell(gf, c[:, :Hp])
        h_b, c_b = cell(gb, c[:, Hp:])
        yf_ref[s] = h_f.astype(yf_ref.dtype)             # fwd state for time s
        yb_ref[r] = h_b.astype(yb_ref.dtype)             # bwd state for time r
        return (jnp.concatenate([h_f, h_b], axis=1),
                jnp.concatenate([c_f, c_b], axis=1))

    lax.fori_loop(0, T, step, (h0_ref[...], c0_ref[...]))


def bilstm_layer(x_flat, wih, whh, bias, h0_cat, c0_cat, T, B, Hp):
    return pl.pallas_call(
        functools.partial(bilstm_layer_kernel, T=T, B=B, Hp=Hp),
        out_shape=(jax.ShapeDtypeStruct((T, B, Hp), jnp.bfloat16),
                   jax.ShapeDtypeStruct((T, B, Hp), jnp.bfloat16)),
        in_specs=_vmem_specs(6),
        out_specs=(pl.BlockSpec(memory_space=pltpu.MemorySpace.VMEM),
                   pl.BlockSpec(memory_space=pltpu.MemorySpace.VMEM)),
        scratch_shapes=[pltpu.VMEM((T, B, 8 * Hp), jnp.float32)],
        compiler_params=_compiler_params(),
    )(x_flat, wih, whh, bias, h0_cat, c0_cat)


# ----------------------------------------------------------------------------
# Fused tail kernel: hidden2tag linear + BatchNorm1d (batch stats) + CRF loss
# ----------------------------------------------------------------------------
def crf_tail_kernel(x_ref, w2_ref, b2_ref, gamma_ref, beta_ref,
                    tags_ref, pair_ref, mrow_ref, mstep_ref, gold_ref,
                    start_ref, end_ref, transflat_ref, expand_ref, select_ref,
                    loss_ref, em_ref, *, T, B, K):
    TB = T * B

    # hidden2tag: ONE batched matmul over all T*B positions.
    feats = jnp.dot(x_ref[...], w2_ref[...],
                    preferred_element_type=jnp.float32) + b2_ref[...]    # (TB, K)

    # BatchNorm1d over the K tag channels, training-mode batch statistics over
    # every (t, b) position, biased variance, eps = 1e-5.
    inv_n = 1.0 / float(TB)
    mean = jnp.sum(feats, axis=0, keepdims=True) * inv_n
    diff = feats - mean
    var = jnp.sum(diff * diff, axis=0, keepdims=True) * inv_n
    em = gamma_ref[...] * diff * lax.rsqrt(var + 1e-5) + beta_ref[...]   # (TB, K)

    # ---- CRF gold-path numerator: fully vectorized over T*B (no serial dep) --
    transflat = transflat_ref[...]                                       # (1, K*K)
    tag_iota = lax.broadcasted_iota(jnp.int32, (TB, K), 1)
    pair_iota = lax.broadcasted_iota(jnp.int32, (TB, K * K), 1)
    emit = jnp.sum(jnp.where(tags_ref[...] == tag_iota, em, 0.0),
                   axis=1, keepdims=True)                                # (TB, 1)
    tr = jnp.sum(jnp.where(pair_ref[...] == pair_iota, transflat, 0.0),
                 axis=1, keepdims=True)                                  # (TB, 1)
    num = jnp.sum((emit + tr) * mrow_ref[...], axis=0, keepdims=True)    # (1, 1)

    # Scatter emissions into a (T, B, K) scratch for dynamic per-step reads.
    for t in range(T):
        em_ref[t] = em[t * B:(t + 1) * B]

    # ---- partition function: serial over time, vectorized over (B, K) -------
    expand = expand_ref[...]                     # (K, K*K) 0/1: den -> den_tiled
    select = select_ref[...]                     # (K*K, K) 0/1: segmented sums
    tmax = jnp.max(transflat, axis=1, keepdims=True)   # upper-bound shift (1,1)
    den0 = start_ref[...] + em[0:B]              # (B, K)

    def step(t, den):
        rowmax = jnp.max(den, axis=1, keepdims=True)                      # (B,1)
        tiled = jnp.dot(den - rowmax, expand,
                        preferred_element_type=jnp.float32)               # (B,K*K)
        e = jnp.exp(tiled + (transflat - tmax))                           # all <=1
        sums = jnp.dot(e, select, preferred_element_type=jnp.float32)     # (B,K)
        lse = jnp.log(sums) + rowmax + tmax
        den_new = lse + em_ref[t]
        return jnp.where(mstep_ref[t] > 0.0, den_new, den)

    den = lax.fori_loop(1, T, step, den0)

    den = den + end_ref[...]
    mx = jnp.max(den, axis=1, keepdims=True)
    logz = jnp.log(jnp.sum(jnp.exp(den - mx), axis=1, keepdims=True)) + mx  # (B,1)
    # Module forward returns CRF(...) directly = summed log-likelihood.
    loss_ref[...] = gold_ref[...] + num - jnp.sum(logz, axis=0, keepdims=True)


def crf_tail(x_flat, params, tags, masks, T, B, Hp, K):
    hd = params["h2t_w"].shape[1] // 2
    w2 = jnp.zeros((2 * Hp, K), jnp.float32)
    w2 = w2.at[:hd].set(params["h2t_w"][:, :hd].T)
    w2 = w2.at[Hp:Hp + hd].set(params["h2t_w"][:, hd:].T)
    w2 = w2.astype(jnp.bfloat16)

    tags_tm = tags.T.astype(jnp.int32)                    # (T, B)
    mask_tm = masks.T.astype(jnp.float32)                 # (T, B)

    tags_rows = tags_tm.reshape(T * B, 1)
    # pair index tags[t-1]*K + tags[t]; t=0 rows get an out-of-range sentinel so
    # their one-hot (and hence transition score) is exactly zero.
    pair_body = tags_tm[:-1] * K + tags_tm[1:]
    pair_rows = jnp.concatenate(
        [jnp.full((1, B), K * K, jnp.int32), pair_body], axis=0).reshape(T * B, 1)
    # row weights: t=0 always counted (torchcrf requires mask[:, 0] == 1)
    mrow = jnp.concatenate([jnp.ones((1, B), jnp.float32), mask_tm[1:]],
                           axis=0).reshape(T * B, 1)
    mstep = mask_tm.reshape(T, B, 1)

    # start/end gold-path scores depend only on tags/mask -> tiny, precomputed.
    seq_end = mask_tm.sum(axis=0).astype(jnp.int32) - 1
    last_tag = tags_tm[seq_end, jnp.arange(B)]
    gold_se = (jnp.sum(params["crf_start"][tags_tm[0]]) +
               jnp.sum(params["crf_end"][last_tag])).reshape(1, 1)

    kk = K * K
    transflat = params["crf_trans"].reshape(1, kk)
    m_idx = jnp.arange(kk)
    expand = (m_idx[None, :] // K == jnp.arange(K)[:, None]).astype(jnp.float32)
    select = (m_idx[:, None] % K == jnp.arange(K)[None, :]).astype(jnp.float32)

    loss = pl.pallas_call(
        functools.partial(crf_tail_kernel, T=T, B=B, K=K),
        out_shape=jax.ShapeDtypeStruct((1, 1), jnp.float32),
        in_specs=_vmem_specs(15),
        out_specs=pl.BlockSpec(memory_space=pltpu.MemorySpace.VMEM),
        scratch_shapes=[pltpu.VMEM((T, B, K), jnp.float32)],
        compiler_params=_compiler_params(),
    )(x_flat, w2,
      params["h2t_b"][None, :], params["bn_gamma"][None, :],
      params["bn_beta"][None, :],
      tags_rows, pair_rows, mrow, mstep, gold_se,
      params["crf_start"][None, :], params["crf_end"][None, :],
      transflat, expand, select)
    return loss[0, 0]


# ----------------------------------------------------------------------------
# Weight preparation (PyTorch [i, f, g, o] layout -> lane-dense [i, f, o, g])
# ----------------------------------------------------------------------------
def _pack_gates_cols(w_t, hd, hp):
    # w_t: (rows, 4*hd), torch gate order [i, f, g, o] along columns.
    i = w_t[:, 0 * hd:1 * hd]
    f = w_t[:, 1 * hd:2 * hd]
    g = w_t[:, 2 * hd:3 * hd]
    o = w_t[:, 3 * hd:4 * hd]
    out = jnp.zeros((w_t.shape[0], 4 * hp), w_t.dtype)
    for k, blk in enumerate((i, f, o, g)):
        out = out.at[:, k * hp:k * hp + hd].set(blk)
    return out


def _pad_state(s, hd, hp):
    return jnp.zeros((s.shape[0], hp), s.dtype).at[:, :hd].set(s)


def _dir_weights(w_ih, w_hh, b_ih, b_hh, hd, hp, first_layer):
    wih = _pack_gates_cols(w_ih.T, hd, hp)                     # (in, 4*hp)
    if not first_layer:
        # input = [fwd hidden | bwd hidden]: scatter rows into padded blocks
        wih_pad = jnp.zeros((2 * hp, 4 * hp), wih.dtype)
        wih = wih_pad.at[:hd].set(wih[:hd]).at[hp:hp + hd].set(wih[hd:])
    whh = jnp.zeros((hp, 4 * hp), w_hh.dtype).at[:hd].set(
        _pack_gates_cols(w_hh.T, hd, hp))
    bias = _pack_gates_cols((b_ih + b_hh)[None, :], hd, hp)    # (1, 4*hp)
    return wih, whh, bias


def _layer_weights(p, hd, hp, first_layer):
    wih_f, whh_f, bf = _dir_weights(p["w_ih_f"], p["w_hh_f"],
                                    p["b_ih_f"], p["b_hh_f"], hd, hp, first_layer)
    wih_b, whh_b, bb = _dir_weights(p["w_ih_b"], p["w_hh_b"],
                                    p["b_ih_b"], p["b_hh_b"], hd, hp, first_layer)
    wih = jnp.concatenate([wih_f, wih_b], axis=1).astype(jnp.bfloat16)  # (In, 8hp)
    whh = jnp.zeros((2 * hp, 8 * hp), jnp.float32)
    whh = whh.at[:hp, :4 * hp].set(whh_f).at[hp:, 4 * hp:].set(whh_b)
    whh = whh.astype(jnp.bfloat16)                                      # block-diag
    bias = jnp.concatenate([bf, bb], axis=1)                            # (1, 8hp)
    return wih, whh, bias


# ----------------------------------------------------------------------------
# Full model forward
# ----------------------------------------------------------------------------
def bilstm_crf_forward(params, sentence, tags, masks, h0, c0):
    B, T = sentence.shape
    hd = params["lstm"][0]["w_hh_f"].shape[1]
    K = params["crf_trans"].shape[0]
    Hp = ((hd + _LANE - 1) // _LANE) * _LANE        # lane-dense padded hidden
    num_layers = len(params["lstm"])

    # Embedding lookup, time-major, flattened to (T*B, E); dropout -> identity.
    x = jnp.take(params["embedding"], sentence.T.reshape(-1), axis=0)
    x = x.astype(jnp.bfloat16)

    for layer in range(num_layers):
        p = params["lstm"][layer]
        wih, whh, bias = _layer_weights(p, hd, Hp, layer == 0)
        h0c = jnp.concatenate([_pad_state(h0[2 * layer], hd, Hp),
                               _pad_state(h0[2 * layer + 1], hd, Hp)], axis=1)
        c0c = jnp.concatenate([_pad_state(c0[2 * layer], hd, Hp),
                               _pad_state(c0[2 * layer + 1], hd, Hp)], axis=1)
        yf, yb = bilstm_layer(x, wih, whh, bias, h0c, c0c, T, B, Hp)
        # next-layer / tail input: (T*B, 2*Hp), same time-major row order
        x = jnp.concatenate([yf.reshape(T * B, Hp), yb.reshape(T * B, Hp)], axis=1)

    return crf_tail(x, params, tags, masks, T, B, Hp, K)


# ----------------------------------------------------------------------------
# Deterministic parameter initialization (PyTorch [i, f, g, o] weight layout)
# ----------------------------------------------------------------------------
def init_params(key, vocab_size, embedding_dim, hidden_size, num_layers, tagset_size):
    hid_dir = hidden_size // 2
    keys = iter(jax.random.split(key, 64))

    def unif(shape, scale):
        return jax.random.uniform(next(keys), shape, jnp.float32, -scale, scale)

    params = {"embedding": jax.random.normal(next(keys), (vocab_size, embedding_dim),
                                             jnp.float32)}
    k = 1.0 / float(jnp.sqrt(hid_dir))
    lstm_layers = []
    for layer in range(num_layers):
        in_dim = embedding_dim if layer == 0 else hidden_size
        lstm_layers.append({
            "w_ih_f": unif((4 * hid_dir, in_dim), k),
            "w_hh_f": unif((4 * hid_dir, hid_dir), k),
            "b_ih_f": unif((4 * hid_dir,), k),
            "b_hh_f": unif((4 * hid_dir,), k),
            "w_ih_b": unif((4 * hid_dir, in_dim), k),
            "w_hh_b": unif((4 * hid_dir, hid_dir), k),
            "b_ih_b": unif((4 * hid_dir,), k),
            "b_hh_b": unif((4 * hid_dir,), k),
        })
    params["lstm"] = lstm_layers

    kl = 1.0 / float(jnp.sqrt(hidden_size))
    params["h2t_w"] = unif((tagset_size, hidden_size), kl)
    params["h2t_b"] = unif((tagset_size,), kl)
    params["bn_gamma"] = jnp.ones((tagset_size,), jnp.float32)
    params["bn_beta"] = jnp.zeros((tagset_size,), jnp.float32)
    params["crf_start"] = unif((tagset_size,), 0.1)
    params["crf_end"] = unif((tagset_size,), 0.1)
    params["crf_trans"] = unif((tagset_size, tagset_size), 0.1)
    return params


if __name__ == "__main__":
    vocab_size = 50
    embedding_dim = 16
    hidden_size = 32            # -> 16 per direction (padded to 128 lanes)
    num_layers = 2
    dropout_prob = 0.1          # unused (eval-mode identity)
    tagset_size = 5
    B, T = 2, 8

    key = jax.random.PRNGKey(0)
    k_params, k_sent, k_tags, k_h, k_c = jax.random.split(key, 5)

    params = init_params(k_params, vocab_size, embedding_dim, hidden_size,
                         num_layers, tagset_size)

    sentence = jax.random.randint(k_sent, (B, T), 0, vocab_size, dtype=jnp.int32)
    tags = jax.random.randint(k_tags, (B, T), 0, tagset_size, dtype=jnp.int32)
    lengths = jnp.array([T, T - 2], dtype=jnp.int32)
    masks = (jnp.arange(T)[None, :] < lengths[:, None]).astype(jnp.float32)

    # self.init_hidden: random initial hidden/cell state, drawn deterministically
    h0 = jax.random.normal(k_h, (2 * num_layers, B, hidden_size // 2), jnp.float32)
    c0 = jax.random.normal(k_c, (2 * num_layers, B, hidden_size // 2), jnp.float32)

    fwd = jax.jit(bilstm_crf_forward)
    loss = fwd(params, sentence, tags, masks, h0, c0)
    jax.block_until_ready(loss)
    print("KERNEL_OK")
</pallas_src>

<mosaic_0001>
module attributes {stable_mosaic.version = 11 : i64} {
  func.func @bilstm_layer_kernel(%arg0: memref<16x16xbf16, #tpu.memory_space<vmem>>, %arg1: memref<16x1024xbf16, #tpu.memory_space<vmem>>, %arg2: memref<256x1024xbf16, #tpu.memory_space<vmem>>, %arg3: memref<1x1024xf32, #tpu.memory_space<vmem>>, %arg4: memref<2x256xf32, #tpu.memory_space<vmem>>, %arg5: memref<2x256xf32, #tpu.memory_space<vmem>>, %arg6: memref<8x2x128xbf16, #tpu.memory_space<vmem>>, %arg7: memref<8x2x128xbf16, #tpu.memory_space<vmem>>, %arg8: memref<8x2x1024xf32, #tpu.memory_space<vmem>>) attributes {dimension_semantics = [], scalar_prefetch = 0 : i64, scratch_operands = 1 : i64, tpu.core_type = #tpu.core_type<tc>} {
    %c0 = arith.constant 0 : index
    %c0_0 = arith.constant 0 : index
    %0 = vector.load %arg0[%c0, %c0_0] : memref<16x16xbf16, #tpu.memory_space<vmem>>, vector<16x16xbf16>
    %c0_1 = arith.constant 0 : index
    %c0_2 = arith.constant 0 : index
    %1 = vector.load %arg1[%c0_1, %c0_2] : memref<16x1024xbf16, #tpu.memory_space<vmem>>, vector<16x1024xbf16>
    %cst = arith.constant dense<0.000000e+00> : vector<16x1024xf32>
    %2 = tpu.matmul %0, %1, %cst {dimension_numbers = #tpu.dot_dimension_numbers<[1], [0], [0], [1], [0, 0, 1, 1], [], []>} : vector<16x16xbf16>, vector<16x1024xbf16>, vector<16x1024xf32> -> vector<16x1024xf32>
    %c0_3 = arith.constant 0 : index
    %c0_4 = arith.constant 0 : index
    %3 = vector.load %arg3[%c0_3, %c0_4] : memref<1x1024xf32, #tpu.memory_space<vmem>>, vector<1x1024xf32>
    %4 = vector.broadcast %3 : vector<1x1024xf32> to vector<16x1024xf32>
    %5 = arith.addf %2, %4 : vector<16x1024xf32>
    %6 = vector.extract_strided_slice %5 {offsets = [0, 0], sizes = [2, 1024], strides = [1, 1]} : vector<16x1024xf32> to vector<2x1024xf32>
    %c0_5 = arith.constant 0 : index
    %c0_6 = arith.constant 0 : index
    %c0_7 = arith.constant 0 : index
    %7 = vector.load %arg8[%c0_5, %c0_6, %c0_7] : memref<8x2x1024xf32, #tpu.memory_space<vmem>>, vector<1x2x1024xf32>
    %8 = vector.shape_cast %7 : vector<1x2x1024xf32> to vector<2x1024xf32>
    %9 = vector.shape_cast %6 : vector<2x1024xf32> to vector<1x2x1024xf32>
    tpu.vector_store %arg8[%c0_5, %c0_6, %c0_7], %9 {strides = array<i32>} : memref<8x2x1024xf32, #tpu.memory_space<vmem>>, vector<1x2x1024xf32>,
    %10 = vector.extract_strided_slice %5 {offsets = [2, 0], sizes = [2, 1024], strides = [1, 1]} : vector<16x1024xf32> to vector<2x1024xf32>
    %c1 = arith.constant 1 : index
    %c0_8 = arith.constant 0 : index
    %c0_9 = arith.constant 0 : index
    %11 = vector.load %arg8[%c1, %c0_8, %c0_9] : memref<8x2x1024xf32, #tpu.memory_space<vmem>>, vector<1x2x1024xf32>
    %12 = vector.shape_cast %11 : vector<1x2x1024xf32> to vector<2x1024xf32>
    %13 = vector.shape_cast %10 : vector<2x1024xf32> to vector<1x2x1024xf32>
    tpu.vector_store %arg8[%c1, %c0_8, %c0_9], %13 {strides = array<i32>} : memref<8x2x1024xf32, #tpu.memory_space<vmem>>, vector<1x2x1024xf32>,
    %14 = vector.extract_strided_slice %5 {offsets = [4, 0], sizes = [2, 1024], strides = [1, 1]} : vector<16x1024xf32> to vector<2x1024xf32>
    %c2 = arith.constant 2 : index
    %c0_10 = arith.constant 0 : index
    %c0_11 = arith.constant 0 : index
    %15 = vector.load %arg8[%c2, %c0_10, %c0_11] : memref<8x2x1024xf32, #tpu.memory_space<vmem>>, vector<1x2x1024xf32>
    %16 = vector.shape_cast %15 : vector<1x2x1024xf32> to vector<2x1024xf32>
    %17 = vector.shape_cast %14 : vector<2x1024xf32> to vector<1x2x1024xf32>
    tpu.vector_store %arg8[%c2, %c0_10, %c0_11], %17 {strides = array<i32>} : memref<8x2x1024xf32, #tpu.memory_space<vmem>>, vector<1x2x1024xf32>,
    %18 = vector.extract_strided_slice %5 {offsets = [6, 0], sizes = [2, 1024], strides = [1, 1]} : vector<16x1024xf32> to vector<2x1024xf32>
    %c3 = arith.constant 3 : index
    %c0_12 = arith.constant 0 : index
    %c0_13 = arith.constant 0 : index
    %19 = vector.load %arg8[%c3, %c0_12, %c0_13] : memref<8x2x1024xf32, #tpu.memory_space<vmem>>, vector<1x2x1024xf32>
    %20 = vector.shape_cast %19 : vector<1x2x1024xf32> to vector<2x1024xf32>
    %21 = vector.shape_cast %18 : vector<2x1024xf32> to vector<1x2x1024xf32>
    tpu.vector_store %arg8[%c3, %c0_12, %c0_13], %21 {strides = array<i32>} : memref<8x2x1024xf32, #tpu.memory_space<vmem>>, vector<1x2x1024xf32>,
    %22 = vector.extract_strided_slice %5 {offsets = [8, 0], sizes = [2, 1024], strides = [1, 1]} : vector<16x1024xf32> to vector<2x1024xf32>
    %c4 = arith.constant 4 : index
    %c0_14 = arith.constant 0 : index
    %c0_15 = arith.constant 0 : index
    %23 = vector.load %arg8[%c4, %c0_14, %c0_15] : memref<8x2x1024xf32, #tpu.memory_space<vmem>>, vector<1x2x1024xf32>
    %24 = vector.shape_cast %23 : vector<1x2x1024xf32> to vector<2x1024xf32>
    %25 = vector.shape_cast %22 : vector<2x1024xf32> to vector<1x2x1024xf32>
    tpu.vector_store %arg8[%c4, %c0_14, %c0_15], %25 {strides = array<i32>} : memref<8x2x1024xf32, #tpu.memory_space<vmem>>, vector<1x2x1024xf32>,
    %26 = vector.extract_strided_slice %5 {offsets = [10, 0], sizes = [2, 1024], strides = [1, 1]} : vector<16x1024xf32> to vector<2x1024xf32>
    %c5 = arith.constant 5 : index
    %c0_16 = arith.constant 0 : index
    %c0_17 = arith.constant 0 : index
    %27 = vector.load %arg8[%c5, %c0_16, %c0_17] : memref<8x2x1024xf32, #tpu.memory_space<vmem>>, vector<1x2x1024xf32>
    %28 = vector.shape_cast %27 : vector<1x2x1024xf32> to vector<2x1024xf32>
    %29 = vector.shape_cast %26 : vector<2x1024xf32> to vector<1x2x1024xf32>
    tpu.vector_store %arg8[%c5, %c0_16, %c0_17], %29 {strides = array<i32>} : memref<8x2x1024xf32, #tpu.memory_space<vmem>>, vector<1x2x1024xf32>,
    %30 = vector.extract_strided_slice %5 {offsets = [12, 0], sizes = [2, 1024], strides = [1, 1]} : vector<16x1024xf32> to vector<2x1024xf32>
    %c6 = arith.constant 6 : index
    %c0_18 = arith.constant 0 : index
    %c0_19 = arith.constant 0 : index
    %31 = vector.load %arg8[%c6, %c0_18, %c0_19] : memref<8x2x1024xf32, #tpu.memory_space<vmem>>, vector<1x2x1024xf32>
    %32 = vector.shape_cast %31 : vector<1x2x1024xf32> to vector<2x1024xf32>
    %33 = vector.shape_cast %30 : vector<2x1024xf32> to vector<1x2x1024xf32>
    tpu.vector_store %arg8[%c6, %c0_18, %c0_19], %33 {strides = array<i32>} : memref<8x2x1024xf32, #tpu.memory_space<vmem>>, vector<1x2x1024xf32>,
    %34 = vector.extract_strided_slice %5 {offsets = [14, 0], sizes = [2, 1024], strides = [1, 1]} : vector<16x1024xf32> to vector<2x1024xf32>
    %c7 = arith.constant 7 : index
    %c0_20 = arith.constant 0 : index
    %c0_21 = arith.constant 0 : index
    %35 = vector.load %arg8[%c7, %c0_20, %c0_21] : memref<8x2x1024xf32, #tpu.memory_space<vmem>>, vector<1x2x1024xf32>
    %36 = vector.shape_cast %35 : vector<1x2x1024xf32> to vector<2x1024xf32>
    %37 = vector.shape_cast %34 : vector<2x1024xf32> to vector<1x2x1024xf32>
    tpu.vector_store %arg8[%c7, %c0_20, %c0_21], %37 {strides = array<i32>} : memref<8x2x1024xf32, #tpu.memory_space<vmem>>, vector<1x2x1024xf32>,
    %c0_22 = arith.constant 0 : index
    %c0_23 = arith.constant 0 : index
    %38 = vector.load %arg2[%c0_22, %c0_23] : memref<256x1024xbf16, #tpu.memory_space<vmem>>, vector<256x1024xbf16>
    %c0_24 = arith.constant 0 : index
    %c0_25 = arith.constant 0 : index
    %39 = vector.load %arg4[%c0_24, %c0_25] : memref<2x256xf32, #tpu.memory_space<vmem>>, vector<2x256xf32>
    %c0_26 = arith.constant 0 : index
    %c0_27 = arith.constant 0 : index
    %40 = vector.load %arg5[%c0_26, %c0_27] : memref<2x256xf32, #tpu.memory_space<vmem>>, vector<2x256xf32>
    %c0_i32 = arith.constant 0 : i32
    %c8_i32 = arith.constant 8 : i32
    %41 = arith.addi %c0_i32, %c8_i32 : i32
    %c1_i32 = arith.constant 1 : i32
    %42:2 = scf.for %arg9 = %c0_i32 to %41 step %c1_i32 iter_args(%arg10 = %39, %arg11 = %40) -> (vector<2x256xf32>, vector<2x256xf32>)  : i32 {
      %c7_i32 = arith.constant 7 : i32
      %43 = arith.subi %c7_i32, %arg9 : i32
      %44 = arith.truncf %arg10 : vector<2x256xf32> to vector<2x256xbf16>
      %cst_29 = arith.constant dense<0.000000e+00> : vector<2x1024xf32>
      %45 = tpu.matmul %44, %38, %cst_29 {dimension_numbers = #tpu.dot_dimension_numbers<[1], [0], [0], [1], [0, 0, 1, 1], [], []>} : vector<2x256xbf16>, vector<256x1024xbf16>, vector<2x1024xf32> -> vector<2x1024xf32>
      %46 = arith.index_cast %arg9 : i32 to index
      %c0_30 = arith.constant 0 : index
      %c0_31 = arith.constant 0 : index
      %47 = vector.load %arg8[%46, %c0_30, %c0_31] : memref<8x2x1024xf32, #tpu.memory_space<vmem>>, vector<1x2x1024xf32>
      %48 = vector.shape_cast %47 : vector<1x2x1024xf32> to vector<2x1024xf32>
      %49 = vector.extract_strided_slice %48 {offsets = [0, 0], sizes = [2, 512], strides = [1, 1]} : vector<2x1024xf32> to vector<2x512xf32>
      %50 = vector.extract_strided_slice %45 {offsets = [0, 0], sizes = [2, 512], strides = [1, 1]} : vector<2x1024xf32> to vector<2x512xf32>
      %51 = arith.addf %49, %50 : vector<2x512xf32>
      %52 = arith.index_cast %43 : i32 to index
      %c0_32 = arith.constant 0 : index
      %c0_33 = arith.constant 0 : index
      %53 = vector.load %arg8[%52, %c0_32, %c0_33] : memref<8x2x1024xf32, #tpu.memory_space<vmem>>, vector<1x2x1024xf32>
      %54 = vector.shape_cast %53 : vector<1x2x1024xf32> to vector<2x1024xf32>
      %55 = vector.extract_strided_slice %54 {offsets = [0, 512], sizes = [2, 512], strides = [1, 1]} : vector<2x1024xf32> to vector<2x512xf32>
      %56 = vector.extract_strided_slice %45 {offsets = [0, 512], sizes = [2, 512], strides = [1, 1]} : vector<2x1024xf32> to vector<2x512xf32>
      %57 = arith.addf %55, %56 : vector<2x512xf32>
      %58 = vector.extract_strided_slice %arg11 {offsets = [0, 0], sizes = [2, 128], strides = [1, 1]} : vector<2x256xf32> to vector<2x128xf32>
      %59 = vector.extract_strided_slice %51 {offsets = [0, 0], sizes = [2, 384], strides = [1, 1]} : vector<2x512xf32> to vector<2x384xf32>
      %60 = arith.negf %59 : vector<2x384xf32>
      %61 = math.exp %60 : vector<2x384xf32>
      %cst_34 = arith.constant 1.000000e+00 : f32
      %62 = vector.broadcast %cst_34 : f32 to vector<2x384xf32>
      %63 = arith.addf %62, %61 : vector<2x384xf32>
      %64 = arith.divf %62, %63 : vector<2x384xf32>
      %65 = vector.extract_strided_slice %51 {offsets = [0, 384], sizes = [2, 128], strides = [1, 1]} : vector<2x512xf32> to vector<2x128xf32>
      %66 = math.tanh %65 : vector<2x128xf32>
      %67 = vector.extract_strided_slice %64 {offsets = [0, 128], sizes = [2, 128], strides = [1, 1]} : vector<2x384xf32> to vector<2x128xf32>
      %68 = arith.mulf %67, %58 : vector<2x128xf32>
      %69 = vector.extract_strided_slice %64 {offsets = [0, 0], sizes = [2, 128], strides = [1, 1]} : vector<2x384xf32> to vector<2x128xf32>
      %70 = arith.mulf %69, %66 : vector<2x128xf32>
      %71 = arith.addf %68, %70 : vector<2x128xf32>
      %72 = vector.extract_strided_slice %64 {offsets = [0, 256], sizes = [2, 128], strides = [1, 1]} : vector<2x384xf32> to vector<2x128xf32>
      %73 = math.tanh %71 : vector<2x128xf32>
      %74 = arith.mulf %72, %73 : vector<2x128xf32>
      %75 = vector.extract_strided_slice %arg11 {offsets = [0, 128], sizes = [2, 128], strides = [1, 1]} : vector<2x256xf32> to vector<2x128xf32>
      %76 = vector.extract_strided_slice %57 {offsets = [0, 0], sizes = [2, 384], strides = [1, 1]} : vector<2x512xf32> to vector<2x384xf32>
      %77 = arith.negf %76 : vector<2x384xf32>
      %78 = math.exp %77 : vector<2x384xf32>
      %cst_35 = arith.constant 1.000000e+00 : f32
      %79 = vector.broadcast %cst_35 : f32 to vector<2x384xf32>
      %80 = arith.addf %79, %78 : vector<2x384xf32>
      %81 = arith.divf %79, %80 : vector<2x384xf32>
      %82 = vector.extract_strided_slice %57 {offsets = [0, 384], sizes = [2, 128], strides = [1, 1]} : vector<2x512xf32> to vector<2x128xf32>
      %83 = math.tanh %82 : vector<2x128xf32>
      %84 = vector.extract_strided_slice %81 {offsets = [0, 128], sizes = [2, 128], strides = [1, 1]} : vector<2x384xf32> to vector<2x128xf32>
      %85 = arith.mulf %84, %75 : vector<2x128xf32>
      %86 = vector.extract_strided_slice %81 {offsets = [0, 0], sizes = [2, 128], strides = [1, 1]} : vector<2x384xf32> to vector<2x128xf32>
      %87 = arith.mulf %86, %83 : vector<2x128xf32>
      %88 = arith.addf %85, %87 : vector<2x128xf32>
      %89 = vector.extract_strided_slice %81 {offsets = [0, 256], sizes = [2, 128], strides = [1, 1]} : vector<2x384xf32> to vector<2x128xf32>
      %90 = math.tanh %88 : vector<2x128xf32>
      %91 = arith.mulf %89, %90 : vector<2x128xf32>
      %92 = arith.truncf %74 : vector<2x128xf32> to vector<2x128xbf16>
      %93 = arith.index_cast %arg9 : i32 to index
      %c0_36 = arith.constant 0 : index
      %c0_37 = arith.constant 0 : index
      %94 = vector.load %arg6[%93, %c0_36, %c0_37] : memref<8x2x128xbf16, #tpu.memory_space<vmem>>, vector<1x2x128xbf16>
      %95 = vector.shape_cast %94 : vector<1x2x128xbf16> to vector<2x128xbf16>
      %96 = vector.shape_cast %92 : vector<2x128xbf16> to vector<1x2x128xbf16>
      tpu.vector_store %arg6[%93, %c0_36, %c0_37], %96 {strides = array<i32>} : memref<8x2x128xbf16, #tpu.memory_space<vmem>>, vector<1x2x128xbf16>,
      %97 = arith.truncf %91 : vector<2x128xf32> to vector<2x128xbf16>
      %98 = arith.index_cast %43 : i32 to index
      %c0_38 = arith.constant 0 : index
      %c0_39 = arith.constant 0 : index
      %99 = vector.load %arg7[%98, %c0_38, %c0_39] : memref<8x2x128xbf16, #tpu.memory_space<vmem>>, vector<1x2x128xbf16>
      %100 = vector.shape_cast %99 : vector<1x2x128xbf16> to vector<2x128xbf16>
      %101 = vector.shape_cast %97 : vector<2x128xbf16> to vector<1x2x128xbf16>
      tpu.vector_store %arg7[%98, %c0_38, %c0_39], %101 {strides = array<i32>} : memref<8x2x128xbf16, #tpu.memory_space<vmem>>, vector<1x2x128xbf16>,
      %102 = tpu.concatenate %74, %91 in 1 : vector<2x128xf32>, vector<2x128xf32> -> vector<2x256xf32>
      %103 = tpu.concatenate %71, %88 in 1 : vector<2x128xf32>, vector<2x128xf32> -> vector<2x256xf32>
      scf.yield %102, %103 : vector<2x256xf32>, vector<2x256xf32>
    }
    %c8_i32_28 = arith.constant 8 : i32
    return
  }
}

module attributes {stable_mosaic.version = 11 : i64} {
  func.func @bilstm_layer_kernel(%arg0: memref<16x256xbf16, #tpu.memory_space<vmem>>, %arg1: memref<256x1024xbf16, #tpu.memory_space<vmem>>, %arg2: memref<256x1024xbf16, #tpu.memory_space<vmem>>, %arg3: memref<1x1024xf32, #tpu.memory_space<vmem>>, %arg4: memref<2x256xf32, #tpu.memory_space<vmem>>, %arg5: memref<2x256xf32, #tpu.memory_space<vmem>>, %arg6: memref<8x2x128xbf16, #tpu.memory_space<vmem>>, %arg7: memref<8x2x128xbf16, #tpu.memory_space<vmem>>, %arg8: memref<8x2x1024xf32, #tpu.memory_space<vmem>>) attributes {dimension_semantics = [], scalar_prefetch = 0 : i64, scratch_operands = 1 : i64, tpu.core_type = #tpu.core_type<tc>} {
    %c0 = arith.constant 0 : index
    %c0_0 = arith.constant 0 : index
    %0 = vector.load %arg0[%c0, %c0_0] : memref<16x256xbf16, #tpu.memory_space<vmem>>, vector<16x256xbf16>
    %c0_1 = arith.constant 0 : index
    %c0_2 = arith.constant 0 : index
    %1 = vector.load %arg1[%c0_1, %c0_2] : memref<256x1024xbf16, #tpu.memory_space<vmem>>, vector<256x1024xbf16>
    %cst = arith.constant dense<0.000000e+00> : vector<16x1024xf32>
    %2 = tpu.matmul %0, %1, %cst {dimension_numbers = #tpu.dot_dimension_numbers<[1], [0], [0], [1], [0, 0, 1, 1], [], []>} : vector<16x256xbf16>, vector<256x1024xbf16>, vector<16x1024xf32> -> vector<16x1024xf32>
    %c0_3 = arith.constant 0 : index
    %c0_4 = arith.constant 0 : index
    %3 = vector.load %arg3[%c0_3, %c0_4] : memref<1x1024xf32, #tpu.memory_space<vmem>>, vector<1x1024xf32>
    %4 = vector.broadcast %3 : vector<1x1024xf32> to vector<16x1024xf32>
    %5 = arith.addf %2, %4 : vector<16x1024xf32>
    %6 = vector.extract_strided_slice %5 {offsets = [0, 0], sizes = [2, 1024], strides = [1, 1]} : vector<16x1024xf32> to vector<2x1024xf32>
    %c0_5 = arith.constant 0 : index
    %c0_6 = arith.constant 0 : index
    %c0_7 = arith.constant 0 : index
    %7 = vector.load %arg8[%c0_5, %c0_6, %c0_7] : memref<8x2x1024xf32, #tpu.memory_space<vmem>>, vector<1x2x1024xf32>
    %8 = vector.shape_cast %7 : vector<1x2x1024xf32> to vector<2x1024xf32>
    %9 = vector.shape_cast %6 : vector<2x1024xf32> to vector<1x2x1024xf32>
    tpu.vector_store %arg8[%c0_5, %c0_6, %c0_7], %9 {strides = array<i32>} : memref<8x2x1024xf32, #tpu.memory_space<vmem>>, vector<1x2x1024xf32>,
    %10 = vector.extract_strided_slice %5 {offsets = [2, 0], sizes = [2, 1024], strides = [1, 1]} : vector<16x1024xf32> to vector<2x1024xf32>
    %c1 = arith.constant 1 : index
    %c0_8 = arith.constant 0 : index
    %c0_9 = arith.constant 0 : index
    %11 = vector.load %arg8[%c1, %c0_8, %c0_9] : memref<8x2x1024xf32, #tpu.memory_space<vmem>>, vector<1x2x1024xf32>
    %12 = vector.shape_cast %11 : vector<1x2x1024xf32> to vector<2x1024xf32>
    %13 = vector.shape_cast %10 : vector<2x1024xf32> to vector<1x2x1024xf32>
    tpu.vector_store %arg8[%c1, %c0_8, %c0_9], %13 {strides = array<i32>} : memref<8x2x1024xf32, #tpu.memory_space<vmem>>, vector<1x2x1024xf32>,
    %14 = vector.extract_strided_slice %5 {offsets = [4, 0], sizes = [2, 1024], strides = [1, 1]} : vector<16x1024xf32> to vector<2x1024xf32>
    %c2 = arith.constant 2 : index
    %c0_10 = arith.constant 0 : index
    %c0_11 = arith.constant 0 : index
    %15 = vector.load %arg8[%c2, %c0_10, %c0_11] : memref<8x2x1024xf32, #tpu.memory_space<vmem>>, vector<1x2x1024xf32>
    %16 = vector.shape_cast %15 : vector<1x2x1024xf32> to vector<2x1024xf32>
    %17 = vector.shape_cast %14 : vector<2x1024xf32> to vector<1x2x1024xf32>
    tpu.vector_store %arg8[%c2, %c0_10, %c0_11], %17 {strides = array<i32>} : memref<8x2x1024xf32, #tpu.memory_space<vmem>>, vector<1x2x1024xf32>,
    %18 = vector.extract_strided_slice %5 {offsets = [6, 0], sizes = [2, 1024], strides = [1, 1]} : vector<16x1024xf32> to vector<2x1024xf32>
    %c3 = arith.constant 3 : index
    %c0_12 = arith.constant 0 : index
    %c0_13 = arith.constant 0 : index
    %19 = vector.load %arg8[%c3, %c0_12, %c0_13] : memref<8x2x1024xf32, #tpu.memory_space<vmem>>, vector<1x2x1024xf32>
    %20 = vector.shape_cast %19 : vector<1x2x1024xf32> to vector<2x1024xf32>
    %21 = vector.shape_cast %18 : vector<2x1024xf32> to vector<1x2x1024xf32>
    tpu.vector_store %arg8[%c3, %c0_12, %c0_13], %21 {strides = array<i32>} : memref<8x2x1024xf32, #tpu.memory_space<vmem>>, vector<1x2x1024xf32>,
    %22 = vector.extract_strided_slice %5 {offsets = [8, 0], sizes = [2, 1024], strides = [1, 1]} : vector<16x1024xf32> to vector<2x1024xf32>
    %c4 = arith.constant 4 : index
    %c0_14 = arith.constant 0 : index
    %c0_15 = arith.constant 0 : index
    %23 = vector.load %arg8[%c4, %c0_14, %c0_15] : memref<8x2x1024xf32, #tpu.memory_space<vmem>>, vector<1x2x1024xf32>
    %24 = vector.shape_cast %23 : vector<1x2x1024xf32> to vector<2x1024xf32>
    %25 = vector.shape_cast %22 : vector<2x1024xf32> to vector<1x2x1024xf32>
    tpu.vector_store %arg8[%c4, %c0_14, %c0_15], %25 {strides = array<i32>} : memref<8x2x1024xf32, #tpu.memory_space<vmem>>, vector<1x2x1024xf32>,
    %26 = vector.extract_strided_slice %5 {offsets = [10, 0], sizes = [2, 1024], strides = [1, 1]} : vector<16x1024xf32> to vector<2x1024xf32>
    %c5 = arith.constant 5 : index
    %c0_16 = arith.constant 0 : index
    %c0_17 = arith.constant 0 : index
    %27 = vector.load %arg8[%c5, %c0_16, %c0_17] : memref<8x2x1024xf32, #tpu.memory_space<vmem>>, vector<1x2x1024xf32>
    %28 = vector.shape_cast %27 : vector<1x2x1024xf32> to vector<2x1024xf32>
    %29 = vector.shape_cast %26 : vector<2x1024xf32> to vector<1x2x1024xf32>
    tpu.vector_store %arg8[%c5, %c0_16, %c0_17], %29 {strides = array<i32>} : memref<8x2x1024xf32, #tpu.memory_space<vmem>>, vector<1x2x1024xf32>,
    %30 = vector.extract_strided_slice %5 {offsets = [12, 0], sizes = [2, 1024], strides = [1, 1]} : vector<16x1024xf32> to vector<2x1024xf32>
    %c6 = arith.constant 6 : index
    %c0_18 = arith.constant 0 : index
    %c0_19 = arith.constant 0 : index
    %31 = vector.load %arg8[%c6, %c0_18, %c0_19] : memref<8x2x1024xf32, #tpu.memory_space<vmem>>, vector<1x2x1024xf32>
    %32 = vector.shape_cast %31 : vector<1x2x1024xf32> to vector<2x1024xf32>
    %33 = vector.shape_cast %30 : vector<2x1024xf32> to vector<1x2x1024xf32>
    tpu.vector_store %arg8[%c6, %c0_18, %c0_19], %33 {strides = array<i32>} : memref<8x2x1024xf32, #tpu.memory_space<vmem>>, vector<1x2x1024xf32>,
    %34 = vector.extract_strided_slice %5 {offsets = [14, 0], sizes = [2, 1024], strides = [1, 1]} : vector<16x1024xf32> to vector<2x1024xf32>
    %c7 = arith.constant 7 : index
    %c0_20 = arith.constant 0 : index
    %c0_21 = arith.constant 0 : index
    %35 = vector.load %arg8[%c7, %c0_20, %c0_21] : memref<8x2x1024xf32, #tpu.memory_space<vmem>>, vector<1x2x1024xf32>
    %36 = vector.shape_cast %35 : vector<1x2x1024xf32> to vector<2x1024xf32>
    %37 = vector.shape_cast %34 : vector<2x1024xf32> to vector<1x2x1024xf32>
    tpu.vector_store %arg8[%c7, %c0_20, %c0_21], %37 {strides = array<i32>} : memref<8x2x1024xf32, #tpu.memory_space<vmem>>, vector<1x2x1024xf32>,
    %c0_22 = arith.constant 0 : index
    %c0_23 = arith.constant 0 : index
    %38 = vector.load %arg2[%c0_22, %c0_23] : memref<256x1024xbf16, #tpu.memory_space<vmem>>, vector<256x1024xbf16>
    %c0_24 = arith.constant 0 : index
    %c0_25 = arith.constant 0 : index
    %39 = vector.load %arg4[%c0_24, %c0_25] : memref<2x256xf32, #tpu.memory_space<vmem>>, vector<2x256xf32>
    %c0_26 = arith.constant 0 : index
    %c0_27 = arith.constant 0 : index
    %40 = vector.load %arg5[%c0_26, %c0_27] : memref<2x256xf32, #tpu.memory_space<vmem>>, vector<2x256xf32>
    %c0_i32 = arith.constant 0 : i32
    %c8_i32 = arith.constant 8 : i32
    %41 = arith.addi %c0_i32, %c8_i32 : i32
    %c1_i32 = arith.constant 1 : i32
    %42:2 = scf.for %arg9 = %c0_i32 to %41 step %c1_i32 iter_args(%arg10 = %39, %arg11 = %40) -> (vector<2x256xf32>, vector<2x256xf32>)  : i32 {
      %c7_i32 = arith.constant 7 : i32
      %43 = arith.subi %c7_i32, %arg9 : i32
      %44 = arith.truncf %arg10 : vector<2x256xf32> to vector<2x256xbf16>
      %cst_29 = arith.constant dense<0.000000e+00> : vector<2x1024xf32>
      %45 = tpu.matmul %44, %38, %cst_29 {dimension_numbers = #tpu.dot_dimension_numbers<[1], [0], [0], [1], [0, 0, 1, 1], [], []>} : vector<2x256xbf16>, vector<256x1024xbf16>, vector<2x1024xf32> -> vector<2x1024xf32>
      %46 = arith.index_cast %arg9 : i32 to index
      %c0_30 = arith.constant 0 : index
      %c0_31 = arith.constant 0 : index
      %47 = vector.load %arg8[%46, %c0_30, %c0_31] : memref<8x2x1024xf32, #tpu.memory_space<vmem>>, vector<1x2x1024xf32>
      %48 = vector.shape_cast %47 : vector<1x2x1024xf32> to vector<2x1024xf32>
      %49 = vector.extract_strided_slice %48 {offsets = [0, 0], sizes = [2, 512], strides = [1, 1]} : vector<2x1024xf32> to vector<2x512xf32>
      %50 = vector.extract_strided_slice %45 {offsets = [0, 0], sizes = [2, 512], strides = [1, 1]} : vector<2x1024xf32> to vector<2x512xf32>
      %51 = arith.addf %49, %50 : vector<2x512xf32>
      %52 = arith.index_cast %43 : i32 to index
      %c0_32 = arith.constant 0 : index
      %c0_33 = arith.constant 0 : index
      %53 = vector.load %arg8[%52, %c0_32, %c0_33] : memref<8x2x1024xf32, #tpu.memory_space<vmem>>, vector<1x2x1024xf32>
      %54 = vector.shape_cast %53 : vector<1x2x1024xf32> to vector<2x1024xf32>
      %55 = vector.extract_strided_slice %54 {offsets = [0, 512], sizes = [2, 512], strides = [1, 1]} : vector<2x1024xf32> to vector<2x512xf32>
      %56 = vector.extract_strided_slice %45 {offsets = [0, 512], sizes = [2, 512], strides = [1, 1]} : vector<2x1024xf32> to vector<2x512xf32>
      %57 = arith.addf %55, %56 : vector<2x512xf32>
      %58 = vector.extract_strided_slice %arg11 {offsets = [0, 0], sizes = [2, 128], strides = [1, 1]} : vector<2x256xf32> to vector<2x128xf32>
      %59 = vector.extract_strided_slice %51 {offsets = [0, 0], sizes = [2, 384], strides = [1, 1]} : vector<2x512xf32> to vector<2x384xf32>
      %60 = arith.negf %59 : vector<2x384xf32>
      %61 = math.exp %60 : vector<2x384xf32>
      %cst_34 = arith.constant 1.000000e+00 : f32
      %62 = vector.broadcast %cst_34 : f32 to vector<2x384xf32>
      %63 = arith.addf %62, %61 : vector<2x384xf32>
      %64 = arith.divf %62, %63 : vector<2x384xf32>
      %65 = vector.extract_strided_slice %51 {offsets = [0, 384], sizes = [2, 128], strides = [1, 1]} : vector<2x512xf32> to vector<2x128xf32>
      %66 = math.tanh %65 : vector<2x128xf32>
      %67 = vector.extract_strided_slice %64 {offsets = [0, 128], sizes = [2, 128], strides = [1, 1]} : vector<2x384xf32> to vector<2x128xf32>
      %68 = arith.mulf %67, %58 : vector<2x128xf32>
      %69 = vector.extract_strided_slice %64 {offsets = [0, 0], sizes = [2, 128], strides = [1, 1]} : vector<2x384xf32> to vector<2x128xf32>
      %70 = arith.mulf %69, %66 : vector<2x128xf32>
      %71 = arith.addf %68, %70 : vector<2x128xf32>
      %72 = vector.extract_strided_slice %64 {offsets = [0, 256], sizes = [2, 128], strides = [1, 1]} : vector<2x384xf32> to vector<2x128xf32>
      %73 = math.tanh %71 : vector<2x128xf32>
      %74 = arith.mulf %72, %73 : vector<2x128xf32>
      %75 = vector.extract_strided_slice %arg11 {offsets = [0, 128], sizes = [2, 128], strides = [1, 1]} : vector<2x256xf32> to vector<2x128xf32>
      %76 = vector.extract_strided_slice %57 {offsets = [0, 0], sizes = [2, 384], strides = [1, 1]} : vector<2x512xf32> to vector<2x384xf32>
      %77 = arith.negf %76 : vector<2x384xf32>
      %78 = math.exp %77 : vector<2x384xf32>
      %cst_35 = arith.constant 1.000000e+00 : f32
      %79 = vector.broadcast %cst_35 : f32 to vector<2x384xf32>
      %80 = arith.addf %79, %78 : vector<2x384xf32>
      %81 = arith.divf %79, %80 : vector<2x384xf32>
      %82 = vector.extract_strided_slice %57 {offsets = [0, 384], sizes = [2, 128], strides = [1, 1]} : vector<2x512xf32> to vector<2x128xf32>
      %83 = math.tanh %82 : vector<2x128xf32>
      %84 = vector.extract_strided_slice %81 {offsets = [0, 128], sizes = [2, 128], strides = [1, 1]} : vector<2x384xf32> to vector<2x128xf32>
      %85 = arith.mulf %84, %75 : vector<2x128xf32>
      %86 = vector.extract_strided_slice %81 {offsets = [0, 0], sizes = [2, 128], strides = [1, 1]} : vector<2x384xf32> to vector<2x128xf32>
      %87 = arith.mulf %86, %83 : vector<2x128xf32>
      %88 = arith.addf %85, %87 : vector<2x128xf32>
      %89 = vector.extract_strided_slice %81 {offsets = [0, 256], sizes = [2, 128], strides = [1, 1]} : vector<2x384xf32> to vector<2x128xf32>
      %90 = math.tanh %88 : vector<2x128xf32>
      %91 = arith.mulf %89, %90 : vector<2x128xf32>
      %92 = arith.truncf %74 : vector<2x128xf32> to vector<2x128xbf16>
      %93 = arith.index_cast %arg9 : i32 to index
      %c0_36 = arith.constant 0 : index
      %c0_37 = arith.constant 0 : index
      %94 = vector.load %arg6[%93, %c0_36, %c0_37] : memref<8x2x128xbf16, #tpu.memory_space<vmem>>, vector<1x2x128xbf16>
      %95 = vector.shape_cast %94 : vector<1x2x128xbf16> to vector<2x128xbf16>
      %96 = vector.shape_cast %92 : vector<2x128xbf16> to vector<1x2x128xbf16>
      tpu.vector_store %arg6[%93, %c0_36, %c0_37], %96 {strides = array<i32>} : memref<8x2x128xbf16, #tpu.memory_space<vmem>>, vector<1x2x128xbf16>,
      %97 = arith.truncf %91 : vector<2x128xf32> to vector<2x128xbf16>
      %98 = arith.index_cast %43 : i32 to index
      %c0_38 = arith.constant 0 : index
      %c0_39 = arith.constant 0 : index
      %99 = vector.load %arg7[%98, %c0_38, %c0_39] : memref<8x2x128xbf16, #tpu.memory_space<vmem>>, vector<1x2x128xbf16>
      %100 = vector.shape_cast %99 : vector<1x2x128xbf16> to vector<2x128xbf16>
      %101 = vector.shape_cast %97 : vector<2x128xbf16> to vector<1x2x128xbf16>
      tpu.vector_store %arg7[%98, %c0_38, %c0_39], %101 {strides = array<i32>} : memref<8x2x128xbf16, #tpu.memory_space<vmem>>, vector<1x2x128xbf16>,
      %102 = tpu.concatenate %74, %91 in 1 : vector<2x128xf32>, vector<2x128xf32> -> vector<2x256xf32>
      %103 = tpu.concatenate %71, %88 in 1 : vector<2x128xf32>, vector<2x128xf32> -> vector<2x256xf32>
      scf.yield %102, %103 : vector<2x256xf32>, vector<2x256xf32>
    }
    %c8_i32_28 = arith.constant 8 : i32
    return
  }
}

module attributes {stable_mosaic.version = 11 : i64} {
  func.func @crf_tail_kernel(%arg0: memref<16x256xbf16, #tpu.memory_space<vmem>>, %arg1: memref<256x5xbf16, #tpu.memory_space<vmem>>, %arg2: memref<1x5xf32, #tpu.memory_space<vmem>>, %arg3: memref<1x5xf32, #tpu.memory_space<vmem>>, %arg4: memref<1x5xf32, #tpu.memory_space<vmem>>, %arg5: memref<16x1xi32, #tpu.memory_space<vmem>>, %arg6: memref<16x1xi32, #tpu.memory_space<vmem>>, %arg7: memref<16x1xf32, #tpu.memory_space<vmem>>, %arg8: memref<8x2x1xf32, #tpu.memory_space<vmem>>, %arg9: memref<1x1xf32, #tpu.memory_space<vmem>>, %arg10: memref<1x5xf32, #tpu.memory_space<vmem>>, %arg11: memref<1x5xf32, #tpu.memory_space<vmem>>, %arg12: memref<1x25xf32, #tpu.memory_space<vmem>>, %arg13: memref<5x25xf32, #tpu.memory_space<vmem>>, %arg14: memref<25x5xf32, #tpu.memory_space<vmem>>, %arg15: memref<1x1xf32, #tpu.memory_space<vmem>>, %arg16: memref<8x2x5xf32, #tpu.memory_space<vmem>>) attributes {dimension_semantics = [], scalar_prefetch = 0 : i64, scratch_operands = 1 : i64, tpu.core_type = #tpu.core_type<tc>} {
    %c0 = arith.constant 0 : index
    %c0_0 = arith.constant 0 : index
    %0 = vector.load %arg0[%c0, %c0_0] : memref<16x256xbf16, #tpu.memory_space<vmem>>, vector<16x256xbf16>
    %c0_1 = arith.constant 0 : index
    %c0_2 = arith.constant 0 : index
    %1 = vector.load %arg1[%c0_1, %c0_2] : memref<256x5xbf16, #tpu.memory_space<vmem>>, vector<256x5xbf16>
    %cst = arith.constant dense<0.000000e+00> : vector<16x5xf32>
    %2 = tpu.matmul %0, %1, %cst {dimension_numbers = #tpu.dot_dimension_numbers<[1], [0], [0], [1], [0, 0, 1, 1], [], []>} : vector<16x256xbf16>, vector<256x5xbf16>, vector<16x5xf32> -> vector<16x5xf32>
    %c0_3 = arith.constant 0 : index
    %c0_4 = arith.constant 0 : index
    %3 = vector.load %arg2[%c0_3, %c0_4] : memref<1x5xf32, #tpu.memory_space<vmem>>, vector<1x5xf32>
    %4 = vector.broadcast %3 : vector<1x5xf32> to vector<16x5xf32>
    %5 = arith.addf %2, %4 : vector<16x5xf32>
    %cst_5 = arith.constant dense<0.000000e+00> : vector<5xf32>
    %6 = vector.multi_reduction <add>, %5, %cst_5 [0] : vector<16x5xf32> to vector<5xf32>
    %7 = vector.shape_cast %6 : vector<5xf32> to vector<1x5xf32>
    %cst_6 = arith.constant 6.250000e-02 : f32
    %8 = vector.broadcast %cst_6 : f32 to vector<1x5xf32>
    %9 = arith.mulf %7, %8 : vector<1x5xf32>
    %10 = vector.broadcast %9 : vector<1x5xf32> to vector<16x5xf32>
    %11 = arith.subf %5, %10 : vector<16x5xf32>
    %12 = arith.mulf %11, %11 : vector<16x5xf32>
    %cst_7 = arith.constant dense<0.000000e+00> : vector<5xf32>
    %13 = vector.multi_reduction <add>, %12, %cst_7 [0] : vector<16x5xf32> to vector<5xf32>
    %14 = vector.shape_cast %13 : vector<5xf32> to vector<1x5xf32>
    %cst_8 = arith.constant 6.250000e-02 : f32
    %15 = vector.broadcast %cst_8 : f32 to vector<1x5xf32>
    %16 = arith.mulf %14, %15 : vector<1x5xf32>
    %c0_9 = arith.constant 0 : index
    %c0_10 = arith.constant 0 : index
    %17 = vector.load %arg3[%c0_9, %c0_10] : memref<1x5xf32, #tpu.memory_space<vmem>>, vector<1x5xf32>
    %18 = vector.broadcast %17 : vector<1x5xf32> to vector<16x5xf32>
    %19 = arith.mulf %18, %11 : vector<16x5xf32>
    %cst_11 = arith.constant 9.99999974E-6 : f32
    %20 = vector.broadcast %cst_11 : f32 to vector<1x5xf32>
    %21 = arith.addf %16, %20 : vector<1x5xf32>
    %22 = math.rsqrt %21 : vector<1x5xf32>
    %23 = vector.broadcast %22 : vector<1x5xf32> to vector<16x5xf32>
    %24 = arith.mulf %19, %23 : vector<16x5xf32>
    %c0_12 = arith.constant 0 : index
    %c0_13 = arith.constant 0 : index
    %25 = vector.load %arg4[%c0_12, %c0_13] : memref<1x5xf32, #tpu.memory_space<vmem>>, vector<1x5xf32>
    %26 = vector.broadcast %25 : vector<1x5xf32> to vector<16x5xf32>
    %27 = arith.addf %24, %26 : vector<16x5xf32>
    %c0_14 = arith.constant 0 : index
    %c0_15 = arith.constant 0 : index
    %28 = vector.load %arg12[%c0_14, %c0_15] : memref<1x25xf32, #tpu.memory_space<vmem>>, vector<1x25xf32>
    %29 = tpu.iota {dimensions = array<i32: 1>} : vector<16x5xi32>
    %30 = tpu.iota {dimensions = array<i32: 1>} : vector<16x25xi32>
    %c0_16 = arith.constant 0 : index
    %c0_17 = arith.constant 0 : index
    %31 = vector.load %arg5[%c0_16, %c0_17] : memref<16x1xi32, #tpu.memory_space<vmem>>, vector<16x1xi32>
    %32 = vector.broadcast %31 : vector<16x1xi32> to vector<16x5xi32>
    %33 = arith.cmpi eq, %32, %29 : vector<16x5xi32>
    %cst_18 = arith.constant 0.000000e+00 : f32
    %34 = vector.broadcast %cst_18 : f32 to vector<16x5xf32>
    %35 = arith.select %33, %27, %34 : vector<16x5xi1>, vector<16x5xf32>
    %cst_19 = arith.constant dense<0.000000e+00> : vector<16xf32>
    %36 = vector.multi_reduction <add>, %35, %cst_19 [1] : vector<16x5xf32> to vector<16xf32>
    %37 = vector.shape_cast %36 : vector<16xf32> to vector<16x1xf32>
    %c0_20 = arith.constant 0 : index
    %c0_21 = arith.constant 0 : index
    %38 = vector.load %arg6[%c0_20, %c0_21] : memref<16x1xi32, #tpu.memory_space<vmem>>, vector<16x1xi32>
    %39 = vector.broadcast %38 : vector<16x1xi32> to vector<16x25xi32>
    %40 = arith.cmpi eq, %39, %30 : vector<16x25xi32>
    %cst_22 = arith.constant 0.000000e+00 : f32
    %41 = vector.shape_cast %28 : vector<1x25xf32> to vector<1x25xf32>
    %42 = vector.broadcast %41 : vector<1x25xf32> to vector<16x25xf32>
    %43 = vector.broadcast %cst_22 : f32 to vector<16x25xf32>
    %44 = arith.select %40, %42, %43 : vector<16x25xi1>, vector<16x25xf32>
    %cst_23 = arith.constant dense<0.000000e+00> : vector<16xf32>
    %45 = vector.multi_reduction <add>, %44, %cst_23 [1] : vector<16x25xf32> to vector<16xf32>
    %46 = vector.shape_cast %45 : vector<16xf32> to vector<16x1xf32>
    %47 = arith.addf %37, %46 : vector<16x1xf32>
    %c0_24 = arith.constant 0 : index
    %c0_25 = arith.constant 0 : index
    %48 = vector.load %arg7[%c0_24, %c0_25] : memref<16x1xf32, #tpu.memory_space<vmem>>, vector<16x1xf32>
    %49 = arith.mulf %47, %48 : vector<16x1xf32>
    %cst_26 = arith.constant dense<0.000000e+00> : vector<1xf32>
    %50 = vector.multi_reduction <add>, %49, %cst_26 [0] : vector<16x1xf32> to vector<1xf32>
    %51 = vector.shape_cast %50 : vector<1xf32> to vector<1x1xf32>
    %52 = vector.extract_strided_slice %27 {offsets = [0, 0], sizes = [2, 5], strides = [1, 1]} : vector<16x5xf32> to vector<2x5xf32>
    %c0_27 = arith.constant 0 : index
    %c0_28 = arith.constant 0 : index
    %c0_29 = arith.constant 0 : index
    %53 = vector.load %arg16[%c0_27, %c0_28, %c0_29] : memref<8x2x5xf32, #tpu.memory_space<vmem>>, vector<1x2x5xf32>
    %54 = vector.shape_cast %53 : vector<1x2x5xf32> to vector<2x5xf32>
    %55 = vector.shape_cast %52 : vector<2x5xf32> to vector<1x2x5xf32>
    tpu.vector_store %arg16[%c0_27, %c0_28, %c0_29], %55 {strides = array<i32>} : memref<8x2x5xf32, #tpu.memory_space<vmem>>, vector<1x2x5xf32>,
    %56 = vector.extract_strided_slice %27 {offsets = [2, 0], sizes = [2, 5], strides = [1, 1]} : vector<16x5xf32> to vector<2x5xf32>
    %c1 = arith.constant 1 : index
    %c0_30 = arith.constant 0 : index
    %c0_31 = arith.constant 0 : index
    %57 = vector.load %arg16[%c1, %c0_30, %c0_31] : memref<8x2x5xf32, #tpu.memory_space<vmem>>, vector<1x2x5xf32>
    %58 = vector.shape_cast %57 : vector<1x2x5xf32> to vector<2x5xf32>
    %59 = vector.shape_cast %56 : vector<2x5xf32> to vector<1x2x5xf32>
    tpu.vector_store %arg16[%c1, %c0_30, %c0_31], %59 {strides = array<i32>} : memref<8x2x5xf32, #tpu.memory_space<vmem>>, vector<1x2x5xf32>,
    %60 = vector.extract_strided_slice %27 {offsets = [4, 0], sizes = [2, 5], strides = [1, 1]} : vector<16x5xf32> to vector<2x5xf32>
    %c2 = arith.constant 2 : index
    %c0_32 = arith.constant 0 : index
    %c0_33 = arith.constant 0 : index
    %61 = vector.load %arg16[%c2, %c0_32, %c0_33] : memref<8x2x5xf32, #tpu.memory_space<vmem>>, vector<1x2x5xf32>
    %62 = vector.shape_cast %61 : vector<1x2x5xf32> to vector<2x5xf32>
    %63 = vector.shape_cast %60 : vector<2x5xf32> to vector<1x2x5xf32>
    tpu.vector_store %arg16[%c2, %c0_32, %c0_33], %63 {strides = array<i32>} : memref<8x2x5xf32, #tpu.memory_space<vmem>>, vector<1x2x5xf32>,
    %64 = vector.extract_strided_slice %27 {offsets = [6, 0], sizes = [2, 5], strides = [1, 1]} : vector<16x5xf32> to vector<2x5xf32>
    %c3 = arith.constant 3 : index
    %c0_34 = arith.constant 0 : index
    %c0_35 = arith.constant 0 : index
    %65 = vector.load %arg16[%c3, %c0_34, %c0_35] : memref<8x2x5xf32, #tpu.memory_space<vmem>>, vector<1x2x5xf32>
    %66 = vector.shape_cast %65 : vector<1x2x5xf32> to vector<2x5xf32>
    %67 = vector.shape_cast %64 : vector<2x5xf32> to vector<1x2x5xf32>
    tpu.vector_store %arg16[%c3, %c0_34, %c0_35], %67 {strides = array<i32>} : memref<8x2x5xf32, #tpu.memory_space<vmem>>, vector<1x2x5xf32>,
    %68 = vector.extract_strided_slice %27 {offsets = [8, 0], sizes = [2, 5], strides = [1, 1]} : vector<16x5xf32> to vector<2x5xf32>
    %c4 = arith.constant 4 : index
    %c0_36 = arith.constant 0 : index
    %c0_37 = arith.constant 0 : index
    %69 = vector.load %arg16[%c4, %c0_36, %c0_37] : memref<8x2x5xf32, #tpu.memory_space<vmem>>, vector<1x2x5xf32>
    %70 = vector.shape_cast %69 : vector<1x2x5xf32> to vector<2x5xf32>
    %71 = vector.shape_cast %68 : vector<2x5xf32> to vector<1x2x5xf32>
    tpu.vector_store %arg16[%c4, %c0_36, %c0_37], %71 {strides = array<i32>} : memref<8x2x5xf32, #tpu.memory_space<vmem>>, vector<1x2x5xf32>,
    %72 = vector.extract_strided_slice %27 {offsets = [10, 0], sizes = [2, 5], strides = [1, 1]} : vector<16x5xf32> to vector<2x5xf32>
    %c5 = arith.constant 5 : index
    %c0_38 = arith.constant 0 : index
    %c0_39 = arith.constant 0 : index
    %73 = vector.load %arg16[%c5, %c0_38, %c0_39] : memref<8x2x5xf32, #tpu.memory_space<vmem>>, vector<1x2x5xf32>
    %74 = vector.shape_cast %73 : vector<1x2x5xf32> to vector<2x5xf32>
    %75 = vector.shape_cast %72 : vector<2x5xf32> to vector<1x2x5xf32>
    tpu.vector_store %arg16[%c5, %c0_38, %c0_39], %75 {strides = array<i32>} : memref<8x2x5xf32, #tpu.memory_space<vmem>>, vector<1x2x5xf32>,
    %76 = vector.extract_strided_slice %27 {offsets = [12, 0], sizes = [2, 5], strides = [1, 1]} : vector<16x5xf32> to vector<2x5xf32>
    %c6 = arith.constant 6 : index
    %c0_40 = arith.constant 0 : index
    %c0_41 = arith.constant 0 : index
    %77 = vector.load %arg16[%c6, %c0_40, %c0_41] : memref<8x2x5xf32, #tpu.memory_space<vmem>>, vector<1x2x5xf32>
    %78 = vector.shape_cast %77 : vector<1x2x5xf32> to vector<2x5xf32>
    %79 = vector.shape_cast %76 : vector<2x5xf32> to vector<1x2x5xf32>
    tpu.vector_store %arg16[%c6, %c0_40, %c0_41], %79 {strides = array<i32>} : memref<8x2x5xf32, #tpu.memory_space<vmem>>, vector<1x2x5xf32>,
    %80 = vector.extract_strided_slice %27 {offsets = [14, 0], sizes = [2, 5], strides = [1, 1]} : vector<16x5xf32> to vector<2x5xf32>
    %c7 = arith.constant 7 : index
    %c0_42 = arith.constant 0 : index
    %c0_43 = arith.constant 0 : index
    %81 = vector.load %arg16[%c7, %c0_42, %c0_43] : memref<8x2x5xf32, #tpu.memory_space<vmem>>, vector<1x2x5xf32>
    %82 = vector.shape_cast %81 : vector<1x2x5xf32> to vector<2x5xf32>
    %83 = vector.shape_cast %80 : vector<2x5xf32> to vector<1x2x5xf32>
    tpu.vector_store %arg16[%c7, %c0_42, %c0_43], %83 {strides = array<i32>} : memref<8x2x5xf32, #tpu.memory_space<vmem>>, vector<1x2x5xf32>,
    %c0_44 = arith.constant 0 : index
    %c0_45 = arith.constant 0 : index
    %84 = vector.load %arg13[%c0_44, %c0_45] : memref<5x25xf32, #tpu.memory_space<vmem>>, vector<5x25xf32>
    %c0_46 = arith.constant 0 : index
    %c0_47 = arith.constant 0 : index
    %85 = vector.load %arg14[%c0_46, %c0_47] : memref<25x5xf32, #tpu.memory_space<vmem>>, vector<25x5xf32>
    %cst_48 = arith.constant dense<0xFF800000> : vector<1xf32>
    %86 = vector.multi_reduction <maximumf>, %28, %cst_48 [1] : vector<1x25xf32> to vector<1xf32>
    %87 = vector.shape_cast %86 : vector<1xf32> to vector<1x1xf32>
    %c0_49 = arith.constant 0 : index
    %c0_50 = arith.constant 0 : index
    %88 = vector.load %arg10[%c0_49, %c0_50] : memref<1x5xf32, #tpu.memory_space<vmem>>, vector<1x5xf32>
    %89 = vector.extract_strided_slice %27 {offsets = [0, 0], sizes = [2, 5], strides = [1, 1]} : vector<16x5xf32> to vector<2x5xf32>
    %90 = vector.broadcast %88 : vector<1x5xf32> to vector<2x5xf32>
    %91 = arith.addf %90, %89 : vector<2x5xf32>
    %c1_i32 = arith.constant 1 : i32
    %c7_i32 = arith.constant 7 : i32
    %92 = arith.addi %c1_i32, %c7_i32 : i32
    %c1_i32_51 = arith.constant 1 : i32
    %93 = scf.for %arg17 = %c1_i32 to %92 step %c1_i32_51 iter_args(%arg18 = %91) -> (vector<2x5xf32>)  : i32 {
      %cst_62 = arith.constant dense<0xFF800000> : vector<2xf32>
      %112 = vector.multi_reduction <maximumf>, %arg18, %cst_62 [1] : vector<2x5xf32> to vector<2xf32>
      %113 = vector.shape_cast %112 : vector<2xf32> to vector<2x1xf32>
      %114 = vector.broadcast %113 : vector<2x1xf32> to vector<2x5xf32>
      %115 = arith.subf %arg18, %114 : vector<2x5xf32>
      %cst_63 = arith.constant dense<0.000000e+00> : vector<2x25xf32>
      %116 = tpu.matmul %115, %84, %cst_63 {dimension_numbers = #tpu.dot_dimension_numbers<[1], [0], [0], [1], [0, 0, 1, 1], [], []>} : vector<2x5xf32>, vector<5x25xf32>, vector<2x25xf32> -> vector<2x25xf32>
      %117 = vector.broadcast %87 : vector<1x1xf32> to vector<1x25xf32>
      %118 = arith.subf %28, %117 : vector<1x25xf32>
      %119 = vector.broadcast %118 : vector<1x25xf32> to vector<2x25xf32>
      %120 = arith.addf %116, %119 : vector<2x25xf32>
      %121 = math.exp %120 : vector<2x25xf32>
      %cst_64 = arith.constant dense<0.000000e+00> : vector<2x5xf32>
      %122 = tpu.matmul %121, %85, %cst_64 {dimension_numbers = #tpu.dot_dimension_numbers<[1], [0], [0], [1], [0, 0, 1, 1], [], []>} : vector<2x25xf32>, vector<25x5xf32>, vector<2x5xf32> -> vector<2x5xf32>
      %123 = math.log %122 : vector<2x5xf32>
      %124 = vector.broadcast %113 : vector<2x1xf32> to vector<2x5xf32>
      %125 = arith.addf %123, %124 : vector<2x5xf32>
      %126 = vector.broadcast %87 : vector<1x1xf32> to vector<2x5xf32>
      %127 = arith.addf %125, %126 : vector<2x5xf32>
      %128 = arith.index_cast %arg17 : i32 to index
      %c0_65 = arith.constant 0 : index
      %c0_66 = arith.constant 0 : index
      %129 = vector.load %arg16[%128, %c0_65, %c0_66] : memref<8x2x5xf32, #tpu.memory_space<vmem>>, vector<1x2x5xf32>
      %130 = vector.shape_cast %129 : vector<1x2x5xf32> to vector<2x5xf32>
      %131 = arith.addf %127, %130 : vector<2x5xf32>
      %132 = arith.index_cast %arg17 : i32 to index
      %c0_67 = arith.constant 0 : index
      %c0_68 = arith.constant 0 : index
      %133 = vector.load %arg8[%132, %c0_67, %c0_68] : memref<8x2x1xf32, #tpu.memory_space<vmem>>, vector<1x2x1xf32>
      %134 = vector.shape_cast %133 : vector<1x2x1xf32> to vector<2x1xf32>
      %cst_69 = arith.constant 0.000000e+00 : f32
      %135 = vector.broadcast %cst_69 : f32 to vector<2x1xf32>
      %136 = arith.cmpf ogt, %134, %135 : vector<2x1xf32>
      %137 = vector.shape_cast %136 : vector<2x1xi1> to vector<2x1xi1>
      %138 = vector.broadcast %137 : vector<2x1xi1> to vector<2x5xi1>
      %139 = arith.select %138, %131, %arg18 : vector<2x5xi1>, vector<2x5xf32>
      scf.yield %139 : vector<2x5xf32>
    }
    %c7_i32_52 = arith.constant 7 : i32
    %c0_53 = arith.constant 0 : index
    %c0_54 = arith.constant 0 : index
    %94 = vector.load %arg11[%c0_53, %c0_54] : memref<1x5xf32, #tpu.memory_space<vmem>>, vector<1x5xf32>
    %95 = vector.broadcast %94 : vector<1x5xf32> to vector<2x5xf32>
    %96 = arith.addf %93, %95 : vector<2x5xf32>
    %cst_55 = arith.constant dense<0xFF800000> : vector<2xf32>
    %97 = vector.multi_reduction <maximumf>, %96, %cst_55 [1] : vector<2x5xf32> to vector<2xf32>
    %98 = vector.shape_cast %97 : vector<2xf32> to vector<2x1xf32>
    %99 = vector.broadcast %98 : vector<2x1xf32> to vector<2x5xf32>
    %100 = arith.subf %96, %99 : vector<2x5xf32>
    %101 = math.exp %100 : vector<2x5xf32>
    %cst_56 = arith.constant dense<0.000000e+00> : vector<2xf32>
    %102 = vector.multi_reduction <add>, %101, %cst_56 [1] : vector<2x5xf32> to vector<2xf32>
    %103 = vector.shape_cast %102 : vector<2xf32> to vector<2x1xf32>
    %104 = math.log %103 : vector<2x1xf32>
    %105 = arith.addf %104, %98 : vector<2x1xf32>
    %c0_57 = arith.constant 0 : index
    %c0_58 = arith.constant 0 : index
    %106 = vector.load %arg9[%c0_57, %c0_58] : memref<1x1xf32, #tpu.memory_space<vmem>>, vector<1x1xf32>
    %107 = arith.addf %106, %51 : vector<1x1xf32>
    %cst_59 = arith.constant dense<0.000000e+00> : vector<1xf32>
    %108 = vector.multi_reduction <add>, %105, %cst_59 [0] : vector<2x1xf32> to vector<1xf32>
    %109 = vector.shape_cast %108 : vector<1xf32> to vector<1x1xf32>
    %110 = arith.subf %107, %109 : vector<1x1xf32>
    %c0_60 = arith.constant 0 : index
    %c0_61 = arith.constant 0 : index
    %111 = vector.load %arg15[%c0_60, %c0_61] : memref<1x1xf32, #tpu.memory_space<vmem>>, vector<1x1xf32>
    tpu.vector_store %arg15[%c0_60, %c0_61], %110 {strides = array<i32>} : memref<1x1xf32, #tpu.memory_space<vmem>>, vector<1x1xf32>,
    return
  }
}

</mosaic_0001>

<llo_original>
// kernel: bilstm_crf_forward.3
$region0: #{bilstm_crf_forward.3}
  #allocation0 [shape = 'u32[]', space=smem, size = 0x4, offset = 0x4, fixed_abs, tag = 'smem constant byte address 0x4 - core index']
  #allocation1 [shape = 'u32[144,128]{1,0:T(1,128)}', space=vmem, size = 0x12000, scoped, tag = 'internal scratch']
  #allocation2 [shape = 'f32[8,2,1024]{2,1,0:T(2,128)}', space=vmem, size = 0x10000, scoped, tag = 'scratch operand']
  %s0 = inlined_call_operand.vmem [shape: bf16[16,16], index: 0, kind: input, shape index: {}]
  %s1 = inlined_call_operand.vmem [shape: bf16[16,1024], index: 1, kind: input, shape index: {}]
  %s2 = inlined_call_operand.vmem [shape: bf16[256,1024], index: 2, kind: input, shape index: {}]
  %s3 = inlined_call_operand.vmem [shape: f32[1,1024], index: 3, kind: input, shape index: {}]
  %s4 = inlined_call_operand.vmem [shape: f32[2,256], index: 4, kind: input, shape index: {}]
  %s5 = inlined_call_operand.vmem [shape: f32[2,256], index: 5, kind: input, shape index: {}]
  %s6 = inlined_call_operand.vmem [shape: bf16[8,2,128], index: 6, kind: output, shape index: {0}]
  %s7 = inlined_call_operand.vmem [shape: bf16[8,2,128], index: 7, kind: output, shape index: {1}]
  %8 = xla_tuple %s6, %s7
  %s9 = sld [smem:[#allocation0]]
  $region49: #{bilstm_crf_forward.3} parent=0
    _
  %s11 = ssub.s32 1, %s9
  %s12 = scalar_select 0, %s11, %s9
  // Predicated region
  $region2: #{bilstm_crf_forward.3} parent=0 // pred_check
    _
  $region3: #{bilstm_crf_forward.3} parent=0 // pred_check_branch
    %14 = sbr.rel (0) target = $region5
  $region4: #{bilstm_crf_forward.3} parent=0 // pred_region
    _
  $region5: #{bilstm_crf_forward.3} parent=0 // pred_fallthru
    _
  // Predicated region
  $region6: #{bilstm_crf_forward.3} parent=0 // pred_check
    _
  $region7: #{bilstm_crf_forward.3} parent=0 // pred_check_branch
    %16 = sbr.rel (0) target = $region9
  $region8: #{bilstm_crf_forward.3} parent=0 // pred_region
    _
  $region9: #{bilstm_crf_forward.3} parent=0 // pred_fallthru
    _
  // Predicated region
  $region10: #{bilstm_crf_forward.3} parent=0 // pred_check
    _
  $region11: #{bilstm_crf_forward.3} parent=0 // pred_check_branch
    %18 = sbr.rel (0) target = $region13
  $region12: #{bilstm_crf_forward.3} parent=0 // pred_region
    _
  $region13: #{bilstm_crf_forward.3} parent=0 // pred_fallthru
    _
  // Predicated region
  $region14: #{bilstm_crf_forward.3} parent=0 // pred_check
    _
  $region15: #{bilstm_crf_forward.3} parent=0 // pred_check_branch
    %20 = sbr.rel (0) target = $region17
  $region16: #{bilstm_crf_forward.3} parent=0 // pred_region
    _
  $region17: #{bilstm_crf_forward.3} parent=0 // pred_fallthru
    _
  // Predicated region
  $region18: #{bilstm_crf_forward.3} parent=0 // pred_check
    _
  $region19: #{bilstm_crf_forward.3} parent=0 // pred_check_branch
    %22 = sbr.rel (0) target = $region21
  $region20: #{bilstm_crf_forward.3} parent=0 // pred_region
    _
  $region21: #{bilstm_crf_forward.3} parent=0 // pred_fallthru
    _
  // Predicated region
  $region22: #{bilstm_crf_forward.3} parent=0 // pred_check
    _
  $region23: #{bilstm_crf_forward.3} parent=0 // pred_check_branch
    %24 = sbr.rel (0) target = $region25
  $region24: #{bilstm_crf_forward.3} parent=0 // pred_region
    _
  $region25: #{bilstm_crf_forward.3} parent=0 // pred_fallthru
    _
  %v26 = vld [vmem:[%s0] sm:$0xf]
  %v27 = vld [vmem:[%s0 + $0x4] sm:$0xf]
  %v28 = vld [vmem:[%s1] sm:$0xff]
  %v29 = vld [vmem:[%s1 + $0x8] sm:$0xff]
  %v30 = vld [vmem:[%s1 + $0x10] sm:$0xff]
  %v31 = vld [vmem:[%s1 + $0x18] sm:$0xff]
  %v32 = vld [vmem:[%s1 + $0x20] sm:$0xff]
  %v33 = vld [vmem:[%s1 + $0x28] sm:$0xff]
  %v34 = vld [vmem:[%s1 + $0x30] sm:$0xff]
  %v35 = vld [vmem:[%s1 + $0x38] sm:$0xff]
  %v36 = vld [vmem:[%s3] sm:$0xff]
  %v38 = vlaneseq
  %v39 = vshrl.u32 %v38, 7
  %v40 = vsub.s32 0, %v39
  %v41 = vrot.slane %v36, %v40
  %v42 = vlaneseq
  %v43 = vshrl.u32 %v42, 7
  %v44 = vsub.s32 1, %v43
  %v45 = vrot.slane %v36, %v44
  %v46 = vlaneseq
  %v47 = vshrl.u32 %v46, 7
  %v48 = vsub.s32 2, %v47
  %v49 = vrot.slane %v36, %v48
  %v50 = vlaneseq
  %v51 = vshrl.u32 %v50, 7
  %v52 = vsub.s32 3, %v51
  %v53 = vrot.slane %v36, %v52
  %v54 = vlaneseq
  %v55 = vshrl.u32 %v54, 7
  %v56 = vsub.s32 4, %v55
  %v57 = vrot.slane %v36, %v56
  %v58 = vlaneseq
  %v59 = vshrl.u32 %v58, 7
  %v60 = vsub.s32 5, %v59
  %v61 = vrot.slane %v36, %v60
  %v62 = vlaneseq
  %v63 = vshrl.u32 %v62, 7
  %v64 = vsub.s32 6, %v63
  %v65 = vrot.slane %v36, %v64
  %v66 = vlaneseq
  %v67 = vshrl.u32 %v66, 7
  %v68 = vsub.s32 7, %v67
  %v69 = vrot.slane %v36, %v68
  %v80 = vunpack.c.l.b16 %v26
  %v81 = vunpack.c.l.b16 %v27
  %v82 = vpack.c.b16 %v81, %v80
  %v91 = vunpack.c.l.b16 %v28
  %v92 = vunpack.c.h.b16 %v28
  %v93 = vunpack.c.l.b16 %v29
  %v94 = vunpack.c.h.b16 %v29
  %v95 = vunpack.c.l.b16 %v30
  %v96 = vunpack.c.h.b16 %v30
  %v97 = vunpack.c.l.b16 %v31
  %v98 = vunpack.c.h.b16 %v31
  %v99 = vunpack.c.l.b16 %v32
  %v100 = vunpack.c.h.b16 %v32
  %v101 = vunpack.c.l.b16 %v33
  %v102 = vunpack.c.h.b16 %v33
  %v103 = vunpack.c.l.b16 %v34
  %v104 = vunpack.c.h.b16 %v34
  %v105 = vunpack.c.l.b16 %v35
  %v106 = vunpack.c.h.b16 %v35
  %v107 = vpack.c.b16 %v99, %v91
  %v108 = vpack.c.b16 %v100, %v92
  %v109 = vpack.c.b16 %v101, %v93
  %v110 = vpack.c.b16 %v102, %v94
  %v111 = vpack.c.b16 %v103, %v95
  %v112 = vpack.c.b16 %v104, %v96
  %v113 = vpack.c.b16 %v105, %v97
  %v114 = vpack.c.b16 %v106, %v98
  %vm123 = vcmask 130048
  %v125 = vsel %vm123, %v82, 0
  %127 = vmatprep.subr.bf16.mxu0 %v108
  %128 = vmatpush1.bf16.msra.mxu0 %v107
  %129 = vmatprep.subr.bf16.mxu0 0
  %130 = vmatpush1.bf16.msra.mxu0 0
  %131 = vmatprep.subr.bf16.mxu0 0
  %132 = vmatpush1.bf16.msra.mxu0 0
  %133 = vmatprep.subr.bf16.mxu0 0
  %134 = vmatpush1.bf16.msra.mxu0 0
  %135 = vmatprep.subr.bf16.mxu0 0
  %136 = vmatpush1.bf16.msra.mxu0 0
  %137 = vmatprep.subr.bf16.mxu0 0
  %138 = vmatpush1.bf16.msra.mxu0 0
  %139 = vmatprep.subr.bf16.mxu0 0
  %140 = vmatpush1.bf16.msra.mxu0 0
  %141 = vmatprep.subr.bf16.mxu0 0
  %142 = vmatpush1.bf16.msra.mxu0 0
  %143 = vmatprep.subr.bf16.mxu0 0
  %144 = vmatpush1.bf16.msra.mxu0 0
  %145 = vmatprep.subr.bf16.mxu0 0
  %146 = vmatpush1.bf16.msra.mxu0 0
  %147 = vmatprep.subr.bf16.mxu0 0
  %148 = vmatpush1.bf16.msra.mxu0 0
  %149 = vmatprep.subr.bf16.mxu0 0
  %150 = vmatpush1.bf16.msra.mxu0 0
  %151 = vmatprep.subr.bf16.mxu0 0
  %152 = vmatpush1.bf16.msra.mxu0 0
  %153 = vmatprep.subr.bf16.mxu0 0
  %154 = vmatpush1.bf16.msra.mxu0 0
  %155 = vmatprep.subr.bf16.mxu0 0
  %156 = vmatpush1.bf16.msra.mxu0 0
  %157 = vmatprep.subr.bf16.mxu0 0
  %158 = vmatpush1.bf16.msra.mxu0 0
  %159 = vmatprep.mubr.bf16.mxu0 0
  %160 = vmatmul.mubr.bf16.gmra.mrb[0].mxu0 %v125
  %v161 = vpop.f32.mrb[0].mxu0
  %v162 = vadd.f32 %v41, %v161
  %v163 = vpop.f32.mrb[0].mxu0
  %v164 = vadd.f32 %v45, %v163
  %v165 = vpop.f32.mrb[0].mxu0
  %v166 = vadd.f32 %v41, %v165
  %v167 = vpop.f32.mrb[0].mxu0
  %v168 = vadd.f32 %v45, %v167
  %169 = vdwg.mxu0
  %170 = vmatprep.subr.bf16.mxu0 %v110
  %171 = vmatpush1.bf16.msra.mxu0 %v109
  %172 = vmatprep.subr.bf16.mxu0 0
  %173 = vmatpush1.bf16.msra.mxu0 0
  %174 = vmatprep.subr.bf16.mxu0 0
  %175 = vmatpush1.bf16.msra.mxu0 0
  %176 = vmatprep.subr.bf16.mxu0 0
  %177 = vmatpush1.bf16.msra.mxu0 0
  %178 = vmatprep.subr.bf16.mxu0 0
  %179 = vmatpush1.bf16.msra.mxu0 0
  %180 = vmatprep.subr.bf16.mxu0 0
  %181 = vmatpush1.bf16.msra.mxu0 0
  %182 = vmatprep.subr.bf16.mxu0 0
  %183 = vmatpush1.bf16.msra.mxu0 0
  %184 = vmatprep.subr.bf16.mxu0 0
  %185 = vmatpush1.bf16.msra.mxu0 0
  %186 = vmatprep.subr.bf16.mxu0 0
  %187 = vmatpush1.bf16.msra.mxu0 0
  %188 = vmatprep.subr.bf16.mxu0 0
  %189 = vmatpush1.bf16.msra.mxu0 0
  %190 = vmatprep.subr.bf16.mxu0 0
  %191 = vmatpush1.bf16.msra.mxu0 0
  %192 = vmatprep.subr.bf16.mxu0 0
  %193 = vmatpush1.bf16.msra.mxu0 0
  %194 = vmatprep.subr.bf16.mxu0 0
  %195 = vmatpush1.bf16.msra.mxu0 0
  %196 = vmatprep.subr.bf16.mxu0 0
  %197 = vmatpush1.bf16.msra.mxu0 0
  %198 = vmatprep.subr.bf16.mxu0 0
  %199 = vmatpush1.bf16.msra.mxu0 0
  %200 = vmatprep.subr.bf16.mxu0 0
  %201 = vmatpush1.bf16.msra.mxu0 0
  %202 = vmatprep.mubr.bf16.mxu0 0
  %203 = vmatmul.mubr.bf16.gmra.mrb[0].mxu0 %v125
  %v204 = vpop.f32.mrb[0].mxu0
  %v205 = vadd.f32 %v49, %v204
  %v206 = vpop.f32.mrb[0].mxu0
  %v207 = vadd.f32 %v53, %v206
  %v208 = vpop.f32.mrb[0].mxu0
  %v209 = vadd.f32 %v49, %v208
  %v210 = vpop.f32.mrb[0].mxu0
  %v211 = vadd.f32 %v53, %v210
  %212 = vdwg.mxu0
  %213 = vmatprep.subr.bf16.mxu0 %v112
  %214 = vmatpush1.bf16.msra.mxu0 %v111
  %215 = vmatprep.subr.bf16.mxu0 0
  %216 = vmatpush1.bf16.msra.mxu0 0
  %217 = vmatprep.subr.bf16.mxu0 0
  %218 = vmatpush1.bf16.msra.mxu0 0
  %219 = vmatprep.subr.bf16.mxu0 0
  %220 = vmatpush1.bf16.msra.mxu0 0
  %221 = vmatprep.subr.bf16.mxu0 0
  %222 = vmatpush1.bf16.msra.mxu0 0
  %223 = vmatprep.subr.bf16.mxu0 0
  %224 = vmatpush1.bf16.msra.mxu0 0
  %225 = vmatprep.subr.bf16.mxu0 0
  %226 = vmatpush1.bf16.msra.mxu0 0
  %227 = vmatprep.subr.bf16.mxu0 0
  %228 = vmatpush1.bf16.msra.mxu0 0
  %229 = vmatprep.subr.bf16.mxu0 0
  %230 = vmatpush1.bf16.msra.mxu0 0
  %231 = vmatprep.subr.bf16.mxu0 0
  %232 = vmatpush1.bf16.msra.mxu0 0
  %233 = vmatprep.subr.bf16.mxu0 0
  %234 = vmatpush1.bf16.msra.mxu0 0
  %235 = vmatprep.subr.bf16.mxu0 0
  %236 = vmatpush1.bf16.msra.mxu0 0
  %237 = vmatprep.subr.bf16.mxu0 0
  %238 = vmatpush1.bf16.msra.mxu0 0
  %239 = vmatprep.subr.bf16.mxu0 0
  %240 = vmatpush1.bf16.msra.mxu0 0
  %241 = vmatprep.subr.bf16.mxu0 0
  %242 = vmatpush1.bf16.msra.mxu0 0
  %243 = vmatprep.subr.bf16.mxu0 0
  %244 = vmatpush1.bf16.msra.mxu0 0
  %245 = vmatprep.mubr.bf16.mxu0 0
  %246 = vmatmul.mubr.bf16.gmra.mrb[0].mxu0 %v125
  %v247 = vpop.f32.mrb[0].mxu0
  %v248 = vadd.f32 %v57, %v247
  %v249 = vpop.f32.mrb[0].mxu0
  %v250 = vadd.f32 %v61, %v249
  %v251 = vpop.f32.mrb[0].mxu0
  %v252 = vadd.f32 %v57, %v251
  %v253 = vpop.f32.mrb[0].mxu0
  %v254 = vadd.f32 %v61, %v253
  %255 = vdwg.mxu0
  %256 = vmatprep.subr.bf16.mxu0 %v114
  %257 = vmatpush1.bf16.msra.mxu0 %v113
  %258 = vmatprep.subr.bf16.mxu0 0
  %259 = vmatpush1.bf16.msra.mxu0 0
  %260 = vmatprep.subr.bf16.mxu0 0
  %261 = vmatpush1.bf16.msra.mxu0 0
  %262 = vmatprep.subr.bf16.mxu0 0
  %263 = vmatpush1.bf16.msra.mxu0 0
  %264 = vmatprep.subr.bf16.mxu0 0
  %265 = vmatpush1.bf16.msra.mxu0 0
  %266 = vmatprep.subr.bf16.mxu0 0
  %267 = vmatpush1.bf16.msra.mxu0 0
  %268 = vmatprep.subr.bf16.mxu0 0
  %269 = vmatpush1.bf16.msra.mxu0 0
  %270 = vmatprep.subr.bf16.mxu0 0
  %271 = vmatpush1.bf16.msra.mxu0 0
  %272 = vmatprep.subr.bf16.mxu0 0
  %273 = vmatpush1.bf16.msra.mxu0 0
  %274 = vmatprep.subr.bf16.mxu0 0
  %275 = vmatpush1.bf16.msra.mxu0 0
  %276 = vmatprep.subr.bf16.mxu0 0
  %277 = vmatpush1.bf16.msra.mxu0 0
  %278 = vmatprep.subr.bf16.mxu0 0
  %279 = vmatpush1.bf16.msra.mxu0 0
  %280 = vmatprep.subr.bf16.mxu0 0
  %281 = vmatpush1.bf16.msra.mxu0 0
  %282 = vmatprep.subr.bf16.mxu0 0
  %283 = vmatpush1.bf16.msra.mxu0 0
  %284 = vmatprep.subr.bf16.mxu0 0
  %285 = vmatpush1.bf16.msra.mxu0 0
  %286 = vmatprep.subr.bf16.mxu0 0
  %287 = vmatpush1.bf16.msra.mxu0 0
  %288 = vmatprep.mubr.bf16.mxu0 0
  %289 = vmatmul.mubr.bf16.gmra.mrb[0].mxu0 %v125
  %v290 = vpop.f32.mrb[0].mxu0
  %v291 = vadd.f32 %v65, %v290
  %v292 = vpop.f32.mrb[0].mxu0
  %v293 = vadd.f32 %v69, %v292
  %v294 = vpop.f32.mrb[0].mxu0
  %v295 = vadd.f32 %v65, %v294
  %v296 = vpop.f32.mrb[0].mxu0
  %v297 = vadd.f32 %v69, %v296
  %298 = vdwg.mxu0
  %v307 = vcombine.low %v162, %v164
  %v308 = vcombine.low %v205, %v207
  %v310 = vunpack.c.l.s4 1983009808
  %v311 = vunpack.c.0.s8 %v310
  %v312 = vlaneseq
  %v313 = vshrl.u32 %v312, 7
  %v314 = vsub.s32 %v311, %v313
  %v315 = vrot.slane %v307, %v314
  %v317 = vunpack.c.l.s4 1983009808
  %v318 = vunpack.c.0.s8 %v317
  %v319 = vlaneseq
  %v320 = vshrl.u32 %v319, 7
  %v321 = vsub.s32 %v318, %v320
  %v322 = vrot.slane %v308, %v321
  %v323 = vcombine.low %v315, %v322
  %v324 = vcombine.low %v248, %v250
  %v325 = vcombine.low %v291, %v293
  %v327 = vunpack.c.l.s4 1983009808
  %v328 = vunpack.c.0.s8 %v327
  %v329 = vlaneseq
  %v330 = vshrl.u32 %v329, 7
  %v331 = vsub.s32 %v328, %v330
  %v332 = vrot.slane %v324, %v331
  %v334 = vunpack.c.l.s4 1983009808
  %v335 = vunpack.c.0.s8 %v334
  %v336 = vlaneseq
  %v337 = vshrl.u32 %v336, 7
  %v338 = vsub.s32 %v335, %v337
  %v339 = vrot.slane %v325, %v338
  %v340 = vcombine.low %v332, %v339
  %343 = vst [vmem:[#allocation2] sm:$0xff] %v323
  %344 = vst [vmem:[#allocation2 + $0x8] sm:$0xff] %v340
  %v345 = vcombine.high %v315, %v322
  %v346 = vcombine.high %v332, %v339
  %s349 = scalar_lea.vmem [#allocation2], 16
  %350 = vst [vmem:[%s349] sm:$0xff] %v345
  %351 = vst [vmem:[%s349 + $0x8] sm:$0xff] %v346
  %v352 = vcombine.high %v162, %v164
  %v353 = vcombine.high %v205, %v207
  %v355 = vunpack.c.l.s4 1983009808
  %v356 = vunpack.c.0.s8 %v355
  %v357 = vlaneseq
  %v358 = vshrl.u32 %v357, 7
  %v359 = vsub.s32 %v356, %v358
  %v360 = vrot.slane %v352, %v359
  %v362 = vunpack.c.l.s4 1983009808
  %v363 = vunpack.c.0.s8 %v362
  %v364 = vlaneseq
  %v365 = vshrl.u32 %v364, 7
  %v366 = vsub.s32 %v363, %v365
  %v367 = vrot.slane %v353, %v366
  %v368 = vcombine.low %v360, %v367
  %v369 = vcombine.high %v248, %v250
  %v370 = vcombine.high %v291, %v293
  %v372 = vunpack.c.l.s4 1983009808
  %v373 = vunpack.c.0.s8 %v372
  %v374 = vlaneseq
  %v375 = vshrl.u32 %v374, 7
  %v376 = vsub.s32 %v373, %v375
  %v377 = vrot.slane %v369, %v376
  %v379 = vunpack.c.l.s4 1983009808
  %v380 = vunpack.c.0.s8 %v379
  %v381 = vlaneseq
  %v382 = vshrl.u32 %v381, 7
  %v383 = vsub.s32 %v380, %v382
  %v384 = vrot.slane %v370, %v383
  %v385 = vcombine.low %v377, %v384
  %s388 = scalar_lea.vmem [#allocation2], 32
  %389 = vst [vmem:[%s388] sm:$0xff] %v368
  %390 = vst [vmem:[%s388 + $0x8] sm:$0xff] %v385
  %v391 = vcombine.high %v360, %v367
  %v392 = vcombine.high %v377, %v384
  %s395 = scalar_lea.vmem [#allocation2], 48
  %396 = vst [vmem:[%s395] sm:$0xff] %v391
  %397 = vst [vmem:[%s395 + $0x8] sm:$0xff] %v392
  %v406 = vcombine.low %v166, %v168
  %v407 = vcombine.low %v209, %v211
  %v409 = vunpack.c.l.s4 1983009808
  %v410 = vunpack.c.0.s8 %v409
  %v411 = vlaneseq
  %v412 = vshrl.u32 %v411, 7
  %v413 = vsub.s32 %v410, %v412
  %v414 = vrot.slane %v406, %v413
  %v416 = vunpack.c.l.s4 1983009808
  %v417 = vunpack.c.0.s8 %v416
  %v418 = vlaneseq
  %v419 = vshrl.u32 %v418, 7
  %v420 = vsub.s32 %v417, %v419
  %v421 = vrot.slane %v407, %v420
  %v422 = vcombine.low %v414, %v421
  %v423 = vcombine.low %v252, %v254
  %v424 = vcombine.low %v295, %v297
  %v426 = vunpack.c.l.s4 1983009808
  %v427 = vunpack.c.0.s8 %v426
  %v428 = vlaneseq
  %v429 = vshrl.u32 %v428, 7
  %v430 = vsub.s32 %v427, %v429
  %v431 = vrot.slane %v423, %v430
  %v433 = vunpack.c.l.s4 1983009808
  %v434 = vunpack.c.0.s8 %v433
  %v435 = vlaneseq
  %v436 = vshrl.u32 %v435, 7
  %v437 = vsub.s32 %v434, %v436
  %v438 = vrot.slane %v424, %v437
  %v439 = vcombine.low %v431, %v438
  %s442 = scalar_lea.vmem [#allocation2], 64
  %443 = vst [vmem:[%s442] sm:$0xff] %v422
  %444 = vst [vmem:[%s442 + $0x8] sm:$0xff] %v439
  %v445 = vcombine.high %v414, %v421
  %v446 = vcombine.high %v431, %v438
  %s449 = scalar_lea.vmem [#allocation2], 80
  %450 = vst [vmem:[%s449] sm:$0xff] %v445
  %451 = vst [vmem:[%s449 + $0x8] sm:$0xff] %v446
  %v452 = vcombine.high %v166, %v168
  %v453 = vcombine.high %v209, %v211
  %v455 = vunpack.c.l.s4 1983009808
  %v456 = vunpack.c.0.s8 %v455
  %v457 = vlaneseq
  %v458 = vshrl.u32 %v457, 7
  %v459 = vsub.s32 %v456, %v458
  %v460 = vrot.slane %v452, %v459
  %v462 = vunpack.c.l.s4 1983009808
  %v463 = vunpack.c.0.s8 %v462
  %v464 = vlaneseq
  %v465 = vshrl.u32 %v464, 7
  %v466 = vsub.s32 %v463, %v465
  %v467 = vrot.slane %v453, %v466
  %v468 = vcombine.low %v460, %v467
  %v469 = vcombine.high %v252, %v254
  %v470 = vcombine.high %v295, %v297
  %v472 = vunpack.c.l.s4 1983009808
  %v473 = vunpack.c.0.s8 %v472
  %v474 = vlaneseq
  %v475 = vshrl.u32 %v474, 7
  %v476 = vsub.s32 %v473, %v475
  %v477 = vrot.slane %v469, %v476
  %v479 = vunpack.c.l.s4 1983009808
  %v480 = vunpack.c.0.s8 %v479
  %v481 = vlaneseq
  %v482 = vshrl.u32 %v481, 7
  %v483 = vsub.s32 %v480, %v482
  %v484 = vrot.slane %v470, %v483
  %v485 = vcombine.low %v477, %v484
  %s488 = scalar_lea.vmem [#allocation2], 96
  %489 = vst [vmem:[%s488] sm:$0xff] %v468
  %490 = vst [vmem:[%s488 + $0x8] sm:$0xff] %v485
  %v491 = vcombine.high %v460, %v467
  %v492 = vcombine.high %v477, %v484
  %s495 = scalar_lea.vmem [#allocation2], 112
  %496 = vst [vmem:[%s495] sm:$0xff] %v491
  %497 = vst [vmem:[%s495 + $0x8] sm:$0xff] %v492
  %v498 = vld [vmem:[%s2] sm:$0xff]
  %v499 = vld [vmem:[%s2 + $0x8] sm:$0xff]
  %v500 = vld [vmem:[%s2 + $0x10] sm:$0xff]
  %v501 = vld [vmem:[%s2 + $0x18] sm:$0xff]
  %v502 = vld [vmem:[%s2 + $0x20] sm:$0xff]
  %v503 = vld [vmem:[%s2 + $0x28] sm:$0xff]
  %v504 = vld [vmem:[%s2 + $0x30] sm:$0xff]
  %v505 = vld [vmem:[%s2 + $0x38] sm:$0xff]
  %v506 = vld [vmem:[%s2 + $0x40] sm:$0xff]
  %v507 = vld [vmem:[%s2 + $0x48] sm:$0xff]
  %v508 = vld [vmem:[%s2 + $0x50] sm:$0xff]
  %v509 = vld [vmem:[%s2 + $0x58] sm:$0xff]
  %v510 = vld [vmem:[%s2 + $0x60] sm:$0xff]
  %v511 = vld [vmem:[%s2 + $0x68] sm:$0xff]
  %v512 = vld [vmem:[%s2 + $0x70] sm:$0xff]
  %v513 = vld [vmem:[%s2 + $0x78] sm:$0xff]
  %v514 = vld [vmem:[%s2 + $0x80] sm:$0xff]
  %v515 = vld [vmem:[%s2 + $0x88] sm:$0xff]
  %v516 = vld [vmem:[%s2 + $0x90] sm:$0xff]
  %v517 = vld [vmem:[%s2 + $0x98] sm:$0xff]
  %v518 = vld [vmem:[%s2 + $0xa0] sm:$0xff]
  %v519 = vld [vmem:[%s2 + $0xa8] sm:$0xff]
  %v520 = vld [vmem:[%s2 + $0xb0] sm:$0xff]
  %v521 = vld [vmem:[%s2 + $0xb8] sm:$0xff]
  %v522 = vld [vmem:[%s2 + $0xc0] sm:$0xff]
  %v523 = vld [vmem:[%s2 + $0xc8] sm:$0xff]
  %v524 = vld [vmem:[%s2 + $0xd0] sm:$0xff]
  %v525 = vld [vmem:[%s2 + $0xd8] sm:$0xff]
  %v526 = vld [vmem:[%s2 + $0xe0] sm:$0xff]
  %v527 = vld [vmem:[%s2 + $0xe8] sm:$0xff]
  %v528 = vld [vmem:[%s2 + $0xf0] sm:$0xff]
  %v529 = vld [vmem:[%s2 + $0xf8] sm:$0xff]
  %v530 = vld [vmem:[%s2 + $0x100] sm:$0xff]
  %v531 = vld [vmem:[%s2 + $0x108] sm:$0xff]
  %v532 = vld [vmem:[%s2 + $0x110] sm:$0xff]
  %v533 = vld [vmem:[%s2 + $0x118] sm:$0xff]
  %v534 = vld [vmem:[%s2 + $0x120] sm:$0xff]
  %v535 = vld [vmem:[%s2 + $0x128] sm:$0xff]
  %v536 = vld [vmem:[%s2 + $0x130] sm:$0xff]
  %v537 = vld [vmem:[%s2 + $0x138] sm:$0xff]
  %v538 = vld [vmem:[%s2 + $0x140] sm:$0xff]
  %v539 = vld [vmem:[%s2 + $0x148] sm:$0xff]
  %v540 = vld [vmem:[%s2 + $0x150] sm:$0xff]
  %v541 = vld [vmem:[%s2 + $0x158] sm:$0xff]
  %v542 = vld [vmem:[%s2 + $0x160] sm:$0xff]
  %v543 = vld [vmem:[%s2 + $0x168] sm:$0xff]
  %v544 = vld [vmem:[%s2 + $0x170] sm:$0xff]
  %v545 = vld [vmem:[%s2 + $0x178] sm:$0xff]
  %v546 = vld [vmem:[%s2 + $0x180] sm:$0xff]
  %v547 = vld [vmem:[%s2 + $0x188] sm:$0xff]
  %v548 = vld [vmem:[%s2 + $0x190] sm:$0xff]
  %v549 = vld [vmem:[%s2 + $0x198] sm:$0xff]
  %v550 = vld [vmem:[%s2 + $0x1a0] sm:$0xff]
  %v551 = vld [vmem:[%s2 + $0x1a8] sm:$0xff]
  %v552 = vld [vmem:[%s2 + $0x1b0] sm:$0xff]
  %v553 = vld [vmem:[%s2 + $0x1b8] sm:$0xff]
  %v554 = vld [vmem:[%s2 + $0x1c0] sm:$0xff]
  %v555 = vld [vmem:[%s2 + $0x1c8] sm:$0xff]
  %v556 = vld [vmem:[%s2 + $0x1d0] sm:$0xff]
  %v557 = vld [vmem:[%s2 + $0x1d8] sm:$0xff]
  %v558 = vld [vmem:[%s2 + $0x1e0] sm:$0xff]
  %v559 = vld [vmem:[%s2 + $0x1e8] sm:$0xff]
  %v560 = vld [vmem:[%s2 + $0x1f0] sm:$0xff]
  %v561 = vld [vmem:[%s2 + $0x1f8] sm:$0xff]
  %v562 = vld [vmem:[%s2 + $0x200] sm:$0xff]
  %v563 = vld [vmem:[%s2 + $0x208] sm:$0xff]
  %v564 = vld [vmem:[%s2 + $0x210] sm:$0xff]
  %v565 = vld [vmem:[%s2 + $0x218] sm:$0xff]
  %v566 = vld [vmem:[%s2 + $0x220] sm:$0xff]
  %v567 = vld [vmem:[%s2 + $0x228] sm:$0xff]
  %v568 = vld [vmem:[%s2 + $0x230] sm:$0xff]
  %v569 = vld [vmem:[%s2 + $0x238] sm:$0xff]
  %v570 = vld [vmem:[%s2 + $0x240] sm:$0xff]
  %v571 = vld [vmem:[%s2 + $0x248] sm:$0xff]
  %v572 = vld [vmem:[%s2 + $0x250] sm:$0xff]
  %v573 = vld [vmem:[%s2 + $0x258] sm:$0xff]
  %v574 = vld [vmem:[%s2 + $0x260] sm:$0xff]
  %v575 = vld [vmem:[%s2 + $0x268] sm:$0xff]
  %v576 = vld [vmem:[%s2 + $0x270] sm:$0xff]
  %v577 = vld [vmem:[%s2 + $0x278] sm:$0xff]
  %v578 = vld [vmem:[%s2 + $0x280] sm:$0xff]
  %v579 = vld [vmem:[%s2 + $0x288] sm:$0xff]
  %v580 = vld [vmem:[%s2 + $0x290] sm:$0xff]
  %v581 = vld [vmem:[%s2 + $0x298] sm:$0xff]
  %v582 = vld [vmem:[%s2 + $0x2a0] sm:$0xff]
  %v583 = vld [vmem:[%s2 + $0x2a8] sm:$0xff]
  %v584 = vld [vmem:[%s2 + $0x2b0] sm:$0xff]
  %v585 = vld [vmem:[%s2 + $0x2b8] sm:$0xff]
  %v586 = vld [vmem:[%s2 + $0x2c0] sm:$0xff]
  %v587 = vld [vmem:[%s2 + $0x2c8] sm:$0xff]
  %v588 = vld [vmem:[%s2 + $0x2d0] sm:$0xff]
  %v589 = vld [vmem:[%s2 + $0x2d8] sm:$0xff]
  %v590 = vld [vmem:[%s2 + $0x2e0] sm:$0xff]
  %v591 = vld [vmem:[%s2 + $0x2e8] sm:$0xff]
  %v592 = vld [vmem:[%s2 + $0x2f0] sm:$0xff]
  %v593 = vld [vmem:[%s2 + $0x2f8] sm:$0xff]
  %v594 = vld [vmem:[%s2 + $0x300] sm:$0xff]
  %v595 = vld [vmem:[%s2 + $0x308] sm:$0xff]
  %v596 = vld [vmem:[%s2 + $0x310] sm:$0xff]
  %v597 = vld [vmem:[%s2 + $0x318] sm:$0xff]
  %v598 = vld [vmem:[%s2 + $0x320] sm:$0xff]
  %v599 = vld [vmem:[%s2 + $0x328] sm:$0xff]
  %v600 = vld [vmem:[%s2 + $0x330] sm:$0xff]
  %v601 = vld [vmem:[%s2 + $0x338] sm:$0xff]
  %v602 = vld [vmem:[%s2 + $0x340] sm:$0xff]
  %v603 = vld [vmem:[%s2 + $0x348] sm:$0xff]
  %v604 = vld [vmem:[%s2 + $0x350] sm:$0xff]
  %v605 = vld [vmem:[%s2 + $0x358] sm:$0xff]
  %v606 = vld [vmem:[%s2 + $0x360] sm:$0xff]
  %v607 = vld [vmem:[%s2 + $0x368] sm:$0xff]
  %v608 = vld [vmem:[%s2 + $0x370] sm:$0xff]
  %v609 = vld [vmem:[%s2 + $0x378] sm:$0xff]
  %v610 = vld [vmem:[%s2 + $0x380] sm:$0xff]
  %v611 = vld [vmem:[%s2 + $0x388] sm:$0xff]
  %v612 = vld [vmem:[%s2 + $0x390] sm:$0xff]
  %v613 = vld [vmem:[%s2 + $0x398] sm:$0xff]
  %v614 = vld [vmem:[%s2 + $0x3a0] sm:$0xff]
  %v615 = vld [vmem:[%s2 + $0x3a8] sm:$0xff]
  %v616 = vld [vmem:[%s2 + $0x3b0] sm:$0xff]
  %v617 = vld [vmem:[%s2 + $0x3b8] sm:$0xff]
  %v618 = vld [vmem:[%s2 + $0x3c0] sm:$0xff]
  %v619 = vld [vmem:[%s2 + $0x3c8] sm:$0xff]
  %v620 = vld [vmem:[%s2 + $0x3d0] sm:$0xff]
  %v621 = vld [vmem:[%s2 + $0x3d8] sm:$0xff]
  %v622 = vld [vmem:[%s2 + $0x3e0] sm:$0xff]
  %v623 = vld [vmem:[%s2 + $0x3e8] sm:$0xff]
  %v624 = vld [vmem:[%s2 + $0x3f0] sm:$0xff]
  %v625 = vld [vmem:[%s2 + $0x3f8] sm:$0xff]
  %v626 = vld [vmem:[%s4] sm:$0xf]
  %v627 = vld [vmem:[%s5] sm:$0xf]
  %v630 = vunpack.c.l.s4 1983009808
  %v631 = vunpack.c.0.s8 %v630
  %v632 = vlaneseq
  %v633 = vshrl.u32 %v632, 7
  %v634 = vsub.s32 %v631, %v633
  %v635 = vrot.slane %v626, %v634
  %v636 = vcombine.high %v635, %v635
  %v641 = vunpack.c.l.s4 1983009808
  %v642 = vunpack.c.0.s8 %v641
  %v643 = vlaneseq
  %v644 = vshrl.u32 %v643, 7
  %v645 = vsub.s32 %v642, %v644
  %v646 = vrot.slane %v627, %v645
  %v647 = vcombine.high %v646, %v646
  loop: start=0, step=1, limit=8
  $region26: #{bilstm_crf_forward.3} parent=0 // loop_pre_header
    _
  $region27: #{bilstm_crf_forward.3} parent=0 // loop_header
    %s651 = sphi 0, %s655
    %p652 = scmp.ge.s32.totalorder %s651, 8
    %v656 = vphi %v635, %v1540
    %v657 = vphi %v636, %v1560
    %v658 = vphi %v646, %v1536
    %v659 = vphi %v647, %v1556
  $region28: #{bilstm_crf_forward.3} parent=0 // loop_header_branch
    %654 = sbr.rel (%p652) target = $region32
  $region29: #{bilstm_crf_forward.3} parent=0 // loop_body
    %s660 = ssub.s32 7, %s651
    %v661 = vpack.c.bf16 %v656, %v656
    %v662 = vpack.c.bf16 %v657, %v657
    %v791 = vunpack.c.l.b16 %v498
    %v792 = vunpack.c.h.b16 %v498
    %v793 = vunpack.c.l.b16 %v499
    %v794 = vunpack.c.h.b16 %v499
    %v795 = vunpack.c.l.b16 %v500
    %v796 = vunpack.c.h.b16 %v500
    %v797 = vunpack.c.l.b16 %v501
    %v798 = vunpack.c.h.b16 %v501
    %v799 = vunpack.c.l.b16 %v502
    %v800 = vunpack.c.h.b16 %v502
    %v801 = vunpack.c.l.b16 %v503
    %v802 = vunpack.c.h.b16 %v503
    %v803 = vunpack.c.l.b16 %v504
    %v804 = vunpack.c.h.b16 %v504
    %v805 = vunpack.c.l.b16 %v505
    %v806 = vunpack.c.h.b16 %v505
    %v807 = vunpack.c.l.b16 %v506
    %v808 = vunpack.c.h.b16 %v506
    %v809 = vunpack.c.l.b16 %v507
    %v810 = vunpack.c.h.b16 %v507
    %v811 = vunpack.c.l.b16 %v508
    %v812 = vunpack.c.h.b16 %v508
    %v813 = vunpack.c.l.b16 %v509
    %v814 = vunpack.c.h.b16 %v509
    %v815 = vunpack.c.l.b16 %v510
    %v816 = vunpack.c.h.b16 %v510
    %v817 = vunpack.c.l.b16 %v511
    %v818 = vunpack.c.h.b16 %v511
    %v819 = vunpack.c.l.b16 %v512
    %v820 = vunpack.c.h.b16 %v512
    %v821 = vunpack.c.l.b16 %v513
    %v822 = vunpack.c.h.b16 %v513
    %v823 = vunpack.c.l.b16 %v514
    %v824 = vunpack.c.h.b16 %v514
    %v825 = vunpack.c.l.b16 %v515
    %v826 = vunpack.c.h.b16 %v515
    %v827 = vunpack.c.l.b16 %v516
    %v828 = vunpack.c.h.b16 %v516
    %v829 = vunpack.c.l.b16 %v517
    %v830 = vunpack.c.h.b16 %v517
    %v831 = vunpack.c.l.b16 %v518
    %v832 = vunpack.c.h.b16 %v518
    %v833 = vunpack.c.l.b16 %v519
    %v834 = vunpack.c.h.b16 %v519
    %v835 = vunpack.c.l.b16 %v520
    %v836 = vunpack.c.h.b16 %v520
    %v837 = vunpack.c.l.b16 %v521
    %v838 = vunpack.c.h.b16 %v521
    %v839 = vunpack.c.l.b16 %v522
    %v840 = vunpack.c.h.b16 %v522
    %v841 = vunpack.c.l.b16 %v523
    %v842 = vunpack.c.h.b16 %v523
    %v843 = vunpack.c.l.b16 %v524
    %v844 = vunpack.c.h.b16 %v524
    %v845 = vunpack.c.l.b16 %v525
    %v846 = vunpack.c.h.b16 %v525
    %v847 = vunpack.c.l.b16 %v526
    %v848 = vunpack.c.h.b16 %v526
    %v849 = vunpack.c.l.b16 %v527
    %v850 = vunpack.c.h.b16 %v527
    %v851 = vunpack.c.l.b16 %v528
    %v852 = vunpack.c.h.b16 %v528
    %v853 = vunpack.c.l.b16 %v529
    %v854 = vunpack.c.h.b16 %v529
    %v855 = vunpack.c.l.b16 %v530
    %v856 = vunpack.c.h.b16 %v530
    %v857 = vunpack.c.l.b16 %v531
    %v858 = vunpack.c.h.b16 %v531
    %v859 = vunpack.c.l.b16 %v532
    %v860 = vunpack.c.h.b16 %v532
    %v861 = vunpack.c.l.b16 %v533
    %v862 = vunpack.c.h.b16 %v533
    %v863 = vunpack.c.l.b16 %v534
    %v864 = vunpack.c.h.b16 %v534
    %v865 = vunpack.c.l.b16 %v535
    %v866 = vunpack.c.h.b16 %v535
    %v867 = vunpack.c.l.b16 %v536
    %v868 = vunpack.c.h.b16 %v536
    %v869 = vunpack.c.l.b16 %v537
    %v870 = vunpack.c.h.b16 %v537
    %v871 = vunpack.c.l.b16 %v538
    %v872 = vunpack.c.h.b16 %v538
    %v873 = vunpack.c.l.b16 %v539
    %v874 = vunpack.c.h.b16 %v539
    %v875 = vunpack.c.l.b16 %v540
    %v876 = vunpack.c.h.b16 %v540
    %v877 = vunpack.c.l.b16 %v541
    %v878 = vunpack.c.h.b16 %v541
    %v879 = vunpack.c.l.b16 %v542
    %v880 = vunpack.c.h.b16 %v542
    %v881 = vunpack.c.l.b16 %v543
    %v882 = vunpack.c.h.b16 %v543
    %v883 = vunpack.c.l.b16 %v544
    %v884 = vunpack.c.h.b16 %v544
    %v885 = vunpack.c.l.b16 %v545
    %v886 = vunpack.c.h.b16 %v545
    %v887 = vunpack.c.l.b16 %v546
    %v888 = vunpack.c.h.b16 %v546
    %v889 = vunpack.c.l.b16 %v547
    %v890 = vunpack.c.h.b16 %v547
    %v891 = vunpack.c.l.b16 %v548
    %v892 = vunpack.c.h.b16 %v548
    %v893 = vunpack.c.l.b16 %v549
    %v894 = vunpack.c.h.b16 %v549
    %v895 = vunpack.c.l.b16 %v550
    %v896 = vunpack.c.h.b16 %v550
    %v897 = vunpack.c.l.b16 %v551
    %v898 = vunpack.c.h.b16 %v551
    %v899 = vunpack.c.l.b16 %v552
    %v900 = vunpack.c.h.b16 %v552
    %v901 = vunpack.c.l.b16 %v553
    %v902 = vunpack.c.h.b16 %v553
    %v903 = vunpack.c.l.b16 %v554
    %v904 = vunpack.c.h.b16 %v554
    %v905 = vunpack.c.l.b16 %v555
    %v906 = vunpack.c.h.b16 %v555
    %v907 = vunpack.c.l.b16 %v556
    %v908 = vunpack.c.h.b16 %v556
    %v909 = vunpack.c.l.b16 %v557
    %v910 = vunpack.c.h.b16 %v557
    %v911 = vunpack.c.l.b16 %v558
    %v912 = vunpack.c.h.b16 %v558
    %v913 = vunpack.c.l.b16 %v559
    %v914 = vunpack.c.h.b16 %v559
    %v915 = vunpack.c.l.b16 %v560
    %v916 = vunpack.c.h.b16 %v560
    %v917 = vunpack.c.l.b16 %v561
    %v918 = vunpack.c.h.b16 %v561
    %v919 = vunpack.c.l.b16 %v562
    %v920 = vunpack.c.h.b16 %v562
    %v921 = vunpack.c.l.b16 %v563
    %v922 = vunpack.c.h.b16 %v563
    %v923 = vunpack.c.l.b16 %v564
    %v924 = vunpack.c.h.b16 %v564
    %v925 = vunpack.c.l.b16 %v565
    %v926 = vunpack.c.h.b16 %v565
    %v927 = vunpack.c.l.b16 %v566
    %v928 = vunpack.c.h.b16 %v566
    %v929 = vunpack.c.l.b16 %v567
    %v930 = vunpack.c.h.b16 %v567
    %v931 = vunpack.c.l.b16 %v568
    %v932 = vunpack.c.h.b16 %v568
    %v933 = vunpack.c.l.b16 %v569
    %v934 = vunpack.c.h.b16 %v569
    %v935 = vunpack.c.l.b16 %v570
    %v936 = vunpack.c.h.b16 %v570
    %v937 = vunpack.c.l.b16 %v571
    %v938 = vunpack.c.h.b16 %v571
    %v939 = vunpack.c.l.b16 %v572
    %v940 = vunpack.c.h.b16 %v572
    %v941 = vunpack.c.l.b16 %v573
    %v942 = vunpack.c.h.b16 %v573
    %v943 = vunpack.c.l.b16 %v574
    %v944 = vunpack.c.h.b16 %v574
    %v945 = vunpack.c.l.b16 %v575
    %v946 = vunpack.c.h.b16 %v575
    %v947 = vunpack.c.l.b16 %v576
    %v948 = vunpack.c.h.b16 %v576
    %v949 = vunpack.c.l.b16 %v577
    %v950 = vunpack.c.h.b16 %v577
    %v951 = vunpack.c.l.b16 %v578
    %v952 = vunpack.c.h.b16 %v578
    %v953 = vunpack.c.l.b16 %v579
    %v954 = vunpack.c.h.b16 %v579
    %v955 = vunpack.c.l.b16 %v580
    %v956 = vunpack.c.h.b16 %v580
    %v957 = vunpack.c.l.b16 %v581
    %v958 = vunpack.c.h.b16 %v581
    %v959 = vunpack.c.l.b16 %v582
    %v960 = vunpack.c.h.b16 %v582
    %v961 = vunpack.c.l.b16 %v583
    %v962 = vunpack.c.h.b16 %v583
    %v963 = vunpack.c.l.b16 %v584
    %v964 = vunpack.c.h.b16 %v584
    %v965 = vunpack.c.l.b16 %v585
    %v966 = vunpack.c.h.b16 %v585
    %v967 = vunpack.c.l.b16 %v586
    %v968 = vunpack.c.h.b16 %v586
    %v969 = vunpack.c.l.b16 %v587
    %v970 = vunpack.c.h.b16 %v587
    %v971 = vunpack.c.l.b16 %v588
    %v972 = vunpack.c.h.b16 %v588
    %v973 = vunpack.c.l.b16 %v589
    %v974 = vunpack.c.h.b16 %v589
    %v975 = vunpack.c.l.b16 %v590
    %v976 = vunpack.c.h.b16 %v590
    %v977 = vunpack.c.l.b16 %v591
    %v978 = vunpack.c.h.b16 %v591
    %v979 = vunpack.c.l.b16 %v592
    %v980 = vunpack.c.h.b16 %v592
    %v981 = vunpack.c.l.b16 %v593
    %v982 = vunpack.c.h.b16 %v593
    %v983 = vunpack.c.l.b16 %v594
    %v984 = vunpack.c.h.b16 %v594
    %v985 = vunpack.c.l.b16 %v595
    %v986 = vunpack.c.h.b16 %v595
    %v987 = vunpack.c.l.b16 %v596
    %v988 = vunpack.c.h.b16 %v596
    %v989 = vunpack.c.l.b16 %v597
    %v990 = vunpack.c.h.b16 %v597
    %v991 = vunpack.c.l.b16 %v598
    %v992 = vunpack.c.h.b16 %v598
    %v993 = vunpack.c.l.b16 %v599
    %v994 = vunpack.c.h.b16 %v599
    %v995 = vunpack.c.l.b16 %v600
    %v996 = vunpack.c.h.b16 %v600
    %v997 = vunpack.c.l.b16 %v601
    %v998 = vunpack.c.h.b16 %v601
    %v999 = vunpack.c.l.b16 %v602
    %v1000 = vunpack.c.h.b16 %v602
    %v1001 = vunpack.c.l.b16 %v603
    %v1002 = vunpack.c.h.b16 %v603
    %v1003 = vunpack.c.l.b16 %v604
    %v1004 = vunpack.c.h.b16 %v604
    %v1005 = vunpack.c.l.b16 %v605
    %v1006 = vunpack.c.h.b16 %v605
    %v1007 = vunpack.c.l.b16 %v606
    %v1008 = vunpack.c.h.b16 %v606
    %v1009 = vunpack.c.l.b16 %v607
    %v1010 = vunpack.c.h.b16 %v607
    %v1011 = vunpack.c.l.b16 %v608
    %v1012 = vunpack.c.h.b16 %v608
    %v1013 = vunpack.c.l.b16 %v609
    %v1014 = vunpack.c.h.b16 %v609
    %v1015 = vunpack.c.l.b16 %v610
    %v1016 = vunpack.c.h.b16 %v610
    %v1017 = vunpack.c.l.b16 %v611
    %v1018 = vunpack.c.h.b16 %v611
    %v1019 = vunpack.c.l.b16 %v612
    %v1020 = vunpack.c.h.b16 %v612
    %v1021 = vunpack.c.l.b16 %v613
    %v1022 = vunpack.c.h.b16 %v613
    %v1023 = vunpack.c.l.b16 %v614
    %v1024 = vunpack.c.h.b16 %v614
    %v1025 = vunpack.c.l.b16 %v615
    %v1026 = vunpack.c.h.b16 %v615
    %v1027 = vunpack.c.l.b16 %v616
    %v1028 = vunpack.c.h.b16 %v616
    %v1029 = vunpack.c.l.b16 %v617
    %v1030 = vunpack.c.h.b16 %v617
    %v1031 = vunpack.c.l.b16 %v618
    %v1032 = vunpack.c.h.b16 %v618
    %v1033 = vunpack.c.l.b16 %v619
    %v1034 = vunpack.c.h.b16 %v619
    %v1035 = vunpack.c.l.b16 %v620
    %v1036 = vunpack.c.h.b16 %v620
    %v1037 = vunpack.c.l.b16 %v621
    %v1038 = vunpack.c.h.b16 %v621
    %v1039 = vunpack.c.l.b16 %v622
    %v1040 = vunpack.c.h.b16 %v622
    %v1041 = vunpack.c.l.b16 %v623
    %v1042 = vunpack.c.h.b16 %v623
    %v1043 = vunpack.c.l.b16 %v624
    %v1044 = vunpack.c.h.b16 %v624
    %v1045 = vunpack.c.l.b16 %v625
    %v1046 = vunpack.c.h.b16 %v625
    %v1047 = vpack.c.b16 %v799, %v791
    %v1048 = vpack.c.b16 %v800, %v792
    %v1049 = vpack.c.b16 %v801, %v793
    %v1050 = vpack.c.b16 %v802, %v794
    %v1051 = vpack.c.b16 %v803, %v795
    %v1052 = vpack.c.b16 %v804, %v796
    %v1053 = vpack.c.b16 %v805, %v797
    %v1054 = vpack.c.b16 %v806, %v798
    %v1055 = vpack.c.b16 %v815, %v807
    %v1056 = vpack.c.b16 %v816, %v808
    %v1057 = vpack.c.b16 %v817, %v809
    %v1058 = vpack.c.b16 %v818, %v810
    %v1059 = vpack.c.b16 %v819, %v811
    %v1060 = vpack.c.b16 %v820, %v812
    %v1061 = vpack.c.b16 %v821, %v813
    %v1062 = vpack.c.b16 %v822, %v814
    %v1063 = vpack.c.b16 %v831, %v823
    %v1064 = vpack.c.b16 %v832, %v824
    %v1065 = vpack.c.b16 %v833, %v825
    %v1066 = vpack.c.b16 %v834, %v826
    %v1067 = vpack.c.b16 %v835, %v827
    %v1068 = vpack.c.b16 %v836, %v828
    %v1069 = vpack.c.b16 %v837, %v829
    %v1070 = vpack.c.b16 %v838, %v830
    %v1071 = vpack.c.b16 %v847, %v839
    %v1072 = vpack.c.b16 %v848, %v840
    %v1073 = vpack.c.b16 %v849, %v841
    %v1074 = vpack.c.b16 %v850, %v842
    %v1075 = vpack.c.b16 %v851, %v843
    %v1076 = vpack.c.b16 %v852, %v844
    %v1077 = vpack.c.b16 %v853, %v845
    %v1078 = vpack.c.b16 %v854, %v846
    %v1079 = vpack.c.b16 %v863, %v855
    %v1080 = vpack.c.b16 %v864, %v856
    %v1081 = vpack.c.b16 %v865, %v857
    %v1082 = vpack.c.b16 %v866, %v858
    %v1083 = vpack.c.b16 %v867, %v859
    %v1084 = vpack.c.b16 %v868, %v860
    %v1085 = vpack.c.b16 %v869, %v861
    %v1086 = vpack.c.b16 %v870, %v862
    %v1087 = vpack.c.b16 %v879, %v871
    %v1088 = vpack.c.b16 %v880, %v872
    %v1089 = vpack.c.b16 %v881, %v873
    %v1090 = vpack.c.b16 %v882, %v874
    %v1091 = vpack.c.b16 %v883, %v875
    %v1092 = vpack.c.b16 %v884, %v876
    %v1093 = vpack.c.b16 %v885, %v877
    %v1094 = vpack.c.b16 %v886, %v878
    %v1095 = vpack.c.b16 %v895, %v887
    %v1096 = vpack.c.b16 %v896, %v888
    %v1097 = vpack.c.b16 %v897, %v889
    %v1098 = vpack.c.b16 %v898, %v890
    %v1099 = vpack.c.b16 %v899, %v891
    %v1100 = vpack.c.b16 %v900, %v892
    %v1101 = vpack.c.b16 %v901, %v893
    %v1102 = vpack.c.b16 %v902, %v894
    %v1103 = vpack.c.b16 %v911, %v903
    %v1104 = vpack.c.b16 %v912, %v904
    %v1105 = vpack.c.b16 %v913, %v905
    %v1106 = vpack.c.b16 %v914, %v906
    %v1107 = vpack.c.b16 %v915, %v907
    %v1108 = vpack.c.b16 %v916, %v908
    %v1109 = vpack.c.b16 %v917, %v909
    %v1110 = vpack.c.b16 %v918, %v910
    %v1111 = vpack.c.b16 %v927, %v919
    %v1112 = vpack.c.b16 %v928, %v920
    %v1113 = vpack.c.b16 %v929, %v921
    %v1114 = vpack.c.b16 %v930, %v922
    %v1115 = vpack.c.b16 %v931, %v923
    %v1116 = vpack.c.b16 %v932, %v924
    %v1117 = vpack.c.b16 %v933, %v925
    %v1118 = vpack.c.b16 %v934, %v926
    %v1119 = vpack.c.b16 %v943, %v935
    %v1120 = vpack.c.b16 %v944, %v936
    %v1121 = vpack.c.b16 %v945, %v937
    %v1122 = vpack.c.b16 %v946, %v938
    %v1123 = vpack.c.b16 %v947, %v939
    %v1124 = vpack.c.b16 %v948, %v940
    %v1125 = vpack.c.b16 %v949, %v941
    %v1126 = vpack.c.b16 %v950, %v942
    %v1127 = vpack.c.b16 %v959, %v951
    %v1128 = vpack.c.b16 %v960, %v952
    %v1129 = vpack.c.b16 %v961, %v953
    %v1130 = vpack.c.b16 %v962, %v954
    %v1131 = vpack.c.b16 %v963, %v955
    %v1132 = vpack.c.b16 %v964, %v956
    %v1133 = vpack.c.b16 %v965, %v957
    %v1134 = vpack.c.b16 %v966, %v958
    %v1135 = vpack.c.b16 %v975, %v967
    %v1136 = vpack.c.b16 %v976, %v968
    %v1137 = vpack.c.b16 %v977, %v969
    %v1138 = vpack.c.b16 %v978, %v970
    %v1139 = vpack.c.b16 %v979, %v971
    %v1140 = vpack.c.b16 %v980, %v972
    %v1141 = vpack.c.b16 %v981, %v973
    %v1142 = vpack.c.b16 %v982, %v974
    %v1143 = vpack.c.b16 %v991, %v983
    %v1144 = vpack.c.b16 %v992, %v984
    %v1145 = vpack.c.b16 %v993, %v985
    %v1146 = vpack.c.b16 %v994, %v986
    %v1147 = vpack.c.b16 %v995, %v987
    %v1148 = vpack.c.b16 %v996, %v988
    %v1149 = vpack.c.b16 %v997, %v989
    %v1150 = vpack.c.b16 %v998, %v990
    %v1151 = vpack.c.b16 %v1007, %v999
    %v1152 = vpack.c.b16 %v1008, %v1000
    %v1153 = vpack.c.b16 %v1009, %v1001
    %v1154 = vpack.c.b16 %v1010, %v1002
    %v1155 = vpack.c.b16 %v1011, %v1003
    %v1156 = vpack.c.b16 %v1012, %v1004
    %v1157 = vpack.c.b16 %v1013, %v1005
    %v1158 = vpack.c.b16 %v1014, %v1006
    %v1159 = vpack.c.b16 %v1023, %v1015
    %v1160 = vpack.c.b16 %v1024, %v1016
    %v1161 = vpack.c.b16 %v1025, %v1017
    %v1162 = vpack.c.b16 %v1026, %v1018
    %v1163 = vpack.c.b16 %v1027, %v1019
    %v1164 = vpack.c.b16 %v1028, %v1020
    %v1165 = vpack.c.b16 %v1029, %v1021
    %v1166 = vpack.c.b16 %v1030, %v1022
    %v1167 = vpack.c.b16 %v1039, %v1031
    %v1168 = vpack.c.b16 %v1040, %v1032
    %v1169 = vpack.c.b16 %v1041, %v1033
    %v1170 = vpack.c.b16 %v1042, %v1034
    %v1171 = vpack.c.b16 %v1043, %v1035
    %v1172 = vpack.c.b16 %v1044, %v1036
    %v1173 = vpack.c.b16 %v1045, %v1037
    %v1174 = vpack.c.b16 %v1046, %v1038
    %1303 = vmatprep.subr.bf16.mxu0 %v1048
    %1304 = vmatpush1.bf16.msra.mxu0 %v1047
    %1305 = vmatprep.subr.bf16.mxu0 %v1056
    %1306 = vmatpush1.bf16.msra.mxu0 %v1055
    %1307 = vmatprep.subr.bf16.mxu0 %v1064
    %1308 = vmatpush1.bf16.msra.mxu0 %v1063
    %1309 = vmatprep.subr.bf16.mxu0 %v1072
    %1310 = vmatpush1.bf16.msra.mxu0 %v1071
    %1311 = vmatprep.subr.bf16.mxu0 %v1080
    %1312 = vmatpush1.bf16.msra.mxu0 %v1079
    %1313 = vmatprep.subr.bf16.mxu0 %v1088
    %1314 = vmatpush1.bf16.msra.mxu0 %v1087
    %1315 = vmatprep.subr.bf16.mxu0 %v1096
    %1316 = vmatpush1.bf16.msra.mxu0 %v1095
    %1317 = vmatprep.subr.bf16.mxu0 %v1104
    %1318 = vmatpush1.bf16.msra.mxu0 %v1103
    %1319 = vmatprep.subr.bf16.mxu0 %v1112
    %1320 = vmatpush1.bf16.msra.mxu0 %v1111
    %1321 = vmatprep.subr.bf16.mxu0 %v1120
    %1322 = vmatpush1.bf16.msra.mxu0 %v1119
    %1323 = vmatprep.subr.bf16.mxu0 %v1128
    %1324 = vmatpush1.bf16.msra.mxu0 %v1127
    %1325 = vmatprep.subr.bf16.mxu0 %v1136
    %1326 = vmatpush1.bf16.msra.mxu0 %v1135
    %1327 = vmatprep.subr.bf16.mxu0 %v1144
    %1328 = vmatpush1.bf16.msra.mxu0 %v1143
    %1329 = vmatprep.subr.bf16.mxu0 %v1152
    %1330 = vmatpush1.bf16.msra.mxu0 %v1151
    %1331 = vmatprep.subr.bf16.mxu0 %v1160
    %1332 = vmatpush1.bf16.msra.mxu0 %v1159
    %1333 = vmatprep.subr.bf16.mxu0 %v1168
    %1334 = vmatpush1.bf16.msra.mxu0 %v1167
    %1335 = vmatprep.mubr.bf16.mxu0 %v662
    %1336 = vmatmul.mubr.bf16.gmra.mrb[0].mxu0 %v661
    %v1337 = vpop.f32.mrb[0].mxu0
    %v1338 = vadd.f32 0.0, %v1337
    %v1339 = vpop.f32.mrb[0].mxu0
    %v1340 = vadd.f32 0.0, %v1339
    %v1341 = vpop.f32.mrb[0].mxu0
    %v1342 = vpop.f32.mrb[0].mxu0
    %1343 = vdwg.mxu0
    %1344 = vmatprep.subr.bf16.mxu0 %v1050
    %1345 = vmatpush1.bf16.msra.mxu0 %v1049
    %1346 = vmatprep.subr.bf16.mxu0 %v1058
    %1347 = vmatpush1.bf16.msra.mxu0 %v1057
    %1348 = vmatprep.subr.bf16.mxu0 %v1066
    %1349 = vmatpush1.bf16.msra.mxu0 %v1065
    %1350 = vmatprep.subr.bf16.mxu0 %v1074
    %1351 = vmatpush1.bf16.msra.mxu0 %v1073
    %1352 = vmatprep.subr.bf16.mxu0 %v1082
    %1353 = vmatpush1.bf16.msra.mxu0 %v1081
    %1354 = vmatprep.subr.bf16.mxu0 %v1090
    %1355 = vmatpush1.bf16.msra.mxu0 %v1089
    %1356 = vmatprep.subr.bf16.mxu0 %v1098
    %1357 = vmatpush1.bf16.msra.mxu0 %v1097
    %1358 = vmatprep.subr.bf16.mxu0 %v1106
    %1359 = vmatpush1.bf16.msra.mxu0 %v1105
    %1360 = vmatprep.subr.bf16.mxu0 %v1114
    %1361 = vmatpush1.bf16.msra.mxu0 %v1113
    %1362 = vmatprep.subr.bf16.mxu0 %v1122
    %1363 = vmatpush1.bf16.msra.mxu0 %v1121
    %1364 = vmatprep.subr.bf16.mxu0 %v1130
    %1365 = vmatpush1.bf16.msra.mxu0 %v1129
    %1366 = vmatprep.subr.bf16.mxu0 %v1138
    %1367 = vmatpush1.bf16.msra.mxu0 %v1137
    %1368 = vmatprep.subr.bf16.mxu0 %v1146
    %1369 = vmatpush1.bf16.msra.mxu0 %v1145
    %1370 = vmatprep.subr.bf16.mxu0 %v1154
    %1371 = vmatpush1.bf16.msra.mxu0 %v1153
    %1372 = vmatprep.subr.bf16.mxu0 %v1162
    %1373 = vmatpush1.bf16.msra.mxu0 %v1161
    %1374 = vmatprep.subr.bf16.mxu0 %v1170
    %1375 = vmatpush1.bf16.msra.mxu0 %v1169
    %1376 = vmatprep.mubr.bf16.mxu0 %v662
    %1377 = vmatmul.mubr.bf16.gmra.mrb[0].mxu0 %v661
    %v1378 = vpop.f32.mrb[0].mxu0
    %v1379 = vadd.f32 0.0, %v1378
    %v1380 = vpop.f32.mrb[0].mxu0
    %v1381 = vadd.f32 0.0, %v1380
    %v1382 = vpop.f32.mrb[0].mxu0
    %v1383 = vpop.f32.mrb[0].mxu0
    %1384 = vdwg.mxu0
    %1385 = vmatprep.subr.bf16.mxu0 %v1052
    %1386 = vmatpush1.bf16.msra.mxu0 %v1051
    %1387 = vmatprep.subr.bf16.mxu0 %v1060
    %1388 = vmatpush1.bf16.msra.mxu0 %v1059
    %1389 = vmatprep.subr.bf16.mxu0 %v1068
    %1390 = vmatpush1.bf16.msra.mxu0 %v1067
    %1391 = vmatprep.subr.bf16.mxu0 %v1076
    %1392 = vmatpush1.bf16.msra.mxu0 %v1075
    %1393 = vmatprep.subr.bf16.mxu0 %v1084
    %1394 = vmatpush1.bf16.msra.mxu0 %v1083
    %1395 = vmatprep.subr.bf16.mxu0 %v1092
    %1396 = vmatpush1.bf16.msra.mxu0 %v1091
    %1397 = vmatprep.subr.bf16.mxu0 %v1100
    %1398 = vmatpush1.bf16.msra.mxu0 %v1099
    %1399 = vmatprep.subr.bf16.mxu0 %v1108
    %1400 = vmatpush1.bf16.msra.mxu0 %v1107
    %1401 = vmatprep.subr.bf16.mxu0 %v1116
    %1402 = vmatpush1.bf16.msra.mxu0 %v1115
    %1403 = vmatprep.subr.bf16.mxu0 %v1124
    %1404 = vmatpush1.bf16.msra.mxu0 %v1123
    %1405 = vmatprep.subr.bf16.mxu0 %v1132
    %1406 = vmatpush1.bf16.msra.mxu0 %v1131
    %1407 = vmatprep.subr.bf16.mxu0 %v1140
    %1408 = vmatpush1.bf16.msra.mxu0 %v1139
    %1409 = vmatprep.subr.bf16.mxu0 %v1148
    %1410 = vmatpush1.bf16.msra.mxu0 %v1147
    %1411 = vmatprep.subr.bf16.mxu0 %v1156
    %1412 = vmatpush1.bf16.msra.mxu0 %v1155
    %1413 = vmatprep.subr.bf16.mxu0 %v1164
    %1414 = vmatpush1.bf16.msra.mxu0 %v1163
    %1415 = vmatprep.subr.bf16.mxu0 %v1172
    %1416 = vmatpush1.bf16.msra.mxu0 %v1171
    %1417 = vmatprep.mubr.bf16.mxu0 %v662
    %1418 = vmatmul.mubr.bf16.gmra.mrb[0].mxu0 %v661
    %v1419 = vpop.f32.mrb[0].mxu0
    %v1420 = vadd.f32 0.0, %v1419
    %v1421 = vpop.f32.mrb[0].mxu0
    %v1422 = vadd.f32 0.0, %v1421
    %v1423 = vpop.f32.mrb[0].mxu0
    %v1424 = vpop.f32.mrb[0].mxu0
    %1425 = vdwg.mxu0
    %1426 = vmatprep.subr.bf16.mxu0 %v1054
    %1427 = vmatpush1.bf16.msra.mxu0 %v1053
    %1428 = vmatprep.subr.bf16.mxu0 %v1062
    %1429 = vmatpush1.bf16.msra.mxu0 %v1061
    %1430 = vmatprep.subr.bf16.mxu0 %v1070
    %1431 = vmatpush1.bf16.msra.mxu0 %v1069
    %1432 = vmatprep.subr.bf16.mxu0 %v1078
    %1433 = vmatpush1.bf16.msra.mxu0 %v1077
    %1434 = vmatprep.subr.bf16.mxu0 %v1086
    %1435 = vmatpush1.bf16.msra.mxu0 %v1085
    %1436 = vmatprep.subr.bf16.mxu0 %v1094
    %1437 = vmatpush1.bf16.msra.mxu0 %v1093
    %1438 = vmatprep.subr.bf16.mxu0 %v1102
    %1439 = vmatpush1.bf16.msra.mxu0 %v1101
    %1440 = vmatprep.subr.bf16.mxu0 %v1110
    %1441 = vmatpush1.bf16.msra.mxu0 %v1109
    %1442 = vmatprep.subr.bf16.mxu0 %v1118
    %1443 = vmatpush1.bf16.msra.mxu0 %v1117
    %1444 = vmatprep.subr.bf16.mxu0 %v1126
    %1445 = vmatpush1.bf16.msra.mxu0 %v1125
    %1446 = vmatprep.subr.bf16.mxu0 %v1134
    %1447 = vmatpush1.bf16.msra.mxu0 %v1133
    %1448 = vmatprep.subr.bf16.mxu0 %v1142
    %1449 = vmatpush1.bf16.msra.mxu0 %v1141
    %1450 = vmatprep.subr.bf16.mxu0 %v1150
    %1451 = vmatpush1.bf16.msra.mxu0 %v1149
    %1452 = vmatprep.subr.bf16.mxu0 %v1158
    %1453 = vmatpush1.bf16.msra.mxu0 %v1157
    %1454 = vmatprep.subr.bf16.mxu0 %v1166
    %1455 = vmatpush1.bf16.msra.mxu0 %v1165
    %1456 = vmatprep.subr.bf16.mxu0 %v1174
    %1457 = vmatpush1.bf16.msra.mxu0 %v1173
    %1458 = vmatprep.mubr.bf16.mxu0 %v662
    %1459 = vmatmul.mubr.bf16.gmra.mrb[0].mxu0 %v661
    %v1460 = vpop.f32.mrb[0].mxu0
    %v1461 = vadd.f32 0.0, %v1460
    %v1462 = vpop.f32.mrb[0].mxu0
    %v1463 = vadd.f32 0.0, %v1462
    %v1464 = vpop.f32.mrb[0].mxu0
    %v1465 = vpop.f32.mrb[0].mxu0
    %1466 = vdwg.mxu0
    %s1467 = smul.u32 %s651, 8
    %s1468 = smul.addr %s1467, 2
    %s1469 = scalar_lea.vmem [#allocation2], %s1468
    %v1470 = vld [vmem:[%s1469] sm:$0xff]
    %v1475 = vcombine.low %v1338, %v1340
    %v1476 = vcombine.low %v1379, %v1381
    %v1478 = vunpack.c.l.s4 1983009808
    %v1479 = vunpack.c.0.s8 %v1478
    %v1480 = vlaneseq
    %v1481 = vshrl.u32 %v1480, 7
    %v1482 = vsub.s32 %v1479, %v1481
    %v1483 = vrot.slane %v1475, %v1482
    %v1485 = vunpack.c.l.s4 1983009808
    %v1486 = vunpack.c.0.s8 %v1485
    %v1487 = vlaneseq
    %v1488 = vshrl.u32 %v1487, 7
    %v1489 = vsub.s32 %v1486, %v1488
    %v1490 = vrot.slane %v1476, %v1489
    %v1491 = vcombine.low %v1483, %v1490
    %v1493 = vadd.f32 %v1470, %v1491
    %s1494 = smul.u32 %s660, 8
    %s1495 = smul.addr %s1494, 2
    %s1496 = scalar_lea.vmem [#allocation2], %s1495
    %v1497 = vld [vmem:[%s1496 + $0x8] sm:$0xff]
    %v1502 = vcombine.low %v1420, %v1422
    %v1503 = vcombine.low %v1461, %v1463
    %v1505 = vunpack.c.l.s4 1983009808
    %v1506 = vunpack.c.0.s8 %v1505
    %v1507 = vlaneseq
    %v1508 = vshrl.u32 %v1507, 7
    %v1509 = vsub.s32 %v1506, %v1508
    %v1510 = vrot.slane %v1502, %v1509
    %v1512 = vunpack.c.l.s4 1983009808
    %v1513 = vunpack.c.0.s8 %v1512
    %v1514 = vlaneseq
    %v1515 = vshrl.u32 %v1514, 7
    %v1516 = vsub.s32 %v1513, %v1515
    %v1517 = vrot.slane %v1503, %v1516
    %v1518 = vcombine.low %v1510, %v1517
    %v1520 = vadd.f32 %v1497, %v1518
    %v1521 = vxor.u32 %v1493, 2147483648
    %v1522 = vmul.f32 %v1521, 1.442695
    %v1523 = vpow.pop %v1522
    %v1524 = vadd.f32 %v1523, 1.0
    %v1525 = vrcp.pop %v1524
    %v1526 = vmul.f32 1.0, %v1525
    %v1528 = vrot.slane %v1493, 6
    %v1530 = vtanh.pop %v1528
    %v1532 = vrot.slane %v1526, 2
    %v1534 = vmul.f32 %v1532, %v658
    %v1535 = vmul.f32 %v1526, %v1530
    %v1536 = vadd.f32 %v1534, %v1535
    %v1537 = vtanh.pop %v1536
    %v1538 = vrot.slane %v1526, 4
    %v1540 = vmul.f32 %v1538, %v1537
    %v1541 = vxor.u32 %v1520, 2147483648
    %v1542 = vmul.f32 %v1541, 1.442695
    %v1543 = vpow.pop %v1542
    %v1544 = vadd.f32 %v1543, 1.0
    %v1545 = vrcp.pop %v1544
    %v1546 = vmul.f32 1.0, %v1545
    %v1548 = vrot.slane %v1520, 6
    %v1550 = vtanh.pop %v1548
    %v1552 = vrot.slane %v1546, 2
    %v1554 = vmul.f32 %v1552, %v659
    %v1555 = vmul.f32 %v1546, %v1550
    %v1556 = vadd.f32 %v1554, %v1555
    %v1557 = vtanh.pop %v1556
    %v1558 = vrot.slane %v1546, 4
    %v1560 = vmul.f32 %v1558, %v1557
    %v1561 = vpack.c.bf16 %v1540, %v1540
    %s1562 = scalar_lea.vmem %s6, %s651
    %1563 = vst [vmem:[%s1562] sm:$0x1] %v1561
    %v1564 = vpack.c.bf16 %v1560, %v1560
    %s1565 = scalar_lea.vmem %s7, %s660
    %1566 = vst [vmem:[%s1565] sm:$0x1] %v1564
  $region30: #{bilstm_crf_forward.3} parent=0 // loop_footer
    %s655 = sadd.s32 1, %s651
  $region31: #{bilstm_crf_forward.3} parent=0 // loop_footer_branch
    %650 = sbr.rel target = $region27
  $region32: #{bilstm_crf_forward.3} parent=0 // loop_exit
    _
  // Predicated region
  $region33: #{bilstm_crf_forward.3} parent=0 // pred_check
    _
  $region34: #{bilstm_crf_forward.3} parent=0 // pred_check_branch
    %1568 = sbr.rel (0) target = $region36
  $region35: #{bilstm_crf_forward.3} parent=0 // pred_region
    _
  $region36: #{bilstm_crf_forward.3} parent=0 // pred_fallthru
    _
  // Predicated region
  $region37: #{bilstm_crf_forward.3} parent=0 // pred_check
    _
  $region38: #{bilstm_crf_forward.3} parent=0 // pred_check_branch
    %1570 = sbr.rel (0) target = $region40
  $region39: #{bilstm_crf_forward.3} parent=0 // pred_region
    _
  $region40: #{bilstm_crf_forward.3} parent=0 // pred_fallthru
    _
  // Predicated region
  $region41: #{bilstm_crf_forward.3} parent=0 // pred_check
    _
  $region42: #{bilstm_crf_forward.3} parent=0 // pred_check_branch
    %1572 = sbr.rel (0) target = $region44
  $region43: #{bilstm_crf_forward.3} parent=0 // pred_region
    _
  $region44: #{bilstm_crf_forward.3} parent=0 // pred_fallthru
    _
  // Predicated region
  $region45: #{bilstm_crf_forward.3} parent=0 // pred_check
    _
  $region46: #{bilstm_crf_forward.3} parent=0 // pred_check_branch
    %1574 = sbr.rel (0) target = $region48
  $region47: #{bilstm_crf_forward.3} parent=0 // pred_region
    _
  $region48: #{bilstm_crf_forward.3} parent=0 // pred_fallthru
    _

// kernel: bilstm_crf_forward.5
$region0: #{bilstm_crf_forward.5}
  #allocation0 [shape = 'u32[]', space=smem, size = 0x4, offset = 0x4, fixed_abs, tag = 'smem constant byte address 0x4 - core index']
  #allocation1 [shape = 'u32[144,128]{1,0:T(1,128)}', space=vmem, size = 0x12000, scoped, tag = 'internal scratch']
  #allocation2 [shape = 'f32[8,2,5]{2,1,0:T(2,128)}', space=vmem, size = 0x2000, scoped, tag = 'scratch operand']
  #allocation3 [shape = 'f32[1,1]{1,0:T(1,128)S(1)}', space=vmem, size = 0x200, scoped, tag = 'scoped memory for bilstm_crf_forward.5']
  %s0 = inlined_call_operand.vmem [shape: bf16[16,256], index: 0, kind: input, shape index: {}]
  %s1 = inlined_call_operand.vmem [shape: bf16[256,5], index: 1, kind: input, shape index: {}]
  %s2 = inlined_call_operand.vmem [shape: f32[1,5], index: 2, kind: input, shape index: {}]
  %s3 = inlined_call_operand.vmem [shape: f32[1,5], index: 3, kind: input, shape index: {}]
  %s4 = inlined_call_operand.vmem [shape: f32[1,5], index: 4, kind: input, shape index: {}]
  %s5 = inlined_call_operand.vmem [shape: s32[16,1], index: 5, kind: input, shape index: {}]
  %s6 = inlined_call_operand.vmem [shape: s32[16,1], index: 6, kind: input, shape index: {}]
  %s7 = inlined_call_operand.vmem [shape: f32[16,1], index: 7, kind: input, shape index: {}]
  %s8 = inlined_call_operand.vmem [shape: f32[8,2,1], index: 8, kind: input, shape index: {}]
  %s9 = inlined_call_operand.<no memory space> [shape: f32[1,1], index: 9, kind: input, shape index: {}]
  %s10 = inlined_call_operand.vmem [shape: f32[1,5], index: 10, kind: input, shape index: {}]
  %s11 = inlined_call_operand.vmem [shape: f32[1,5], index: 11, kind: input, shape index: {}]
  %s12 = inlined_call_operand.vmem [shape: f32[1,25], index: 12, kind: input, shape index: {}]
  %s13 = inlined_call_operand.vmem [shape: f32[5,25], index: 13, kind: input, shape index: {}]
  %s14 = inlined_call_operand.vmem [shape: f32[25,5], index: 14, kind: input, shape index: {}]
  %s15 = inlined_call_operand.hbm [shape: f32[1,1], index: 15, kind: output, shape index: {}]
  %s16 = sld [smem:[#allocation0]]
  $region77: #{bilstm_crf_forward.5} parent=0
    _
  %s18 = ssub.s32 1, %s16
  %s19 = scalar_select 0, %s18, %s16
  %v20 = vstv %s9
  %21 = vst [vmem:[#allocation3] sm:$0x1] %v20
  $region1: #{bilstm_crf_forward.5} parent=0
    #allocation4 [shape = 'u8[512]{0}', space=vmem, size = 0x400, scoped, tag = 'output window, operand 0, single buffered']
    #allocation5 [shape = 's32[1]{0}', space=sflag, size = 0x4, scoped, tag = 'scoped memory for bilstm_crf_forward.5']
    %22 = vsyncpa [#allocation5], 0
    // Predicated region
    $region2: #{bilstm_crf_forward.5} parent=1 // pred_check
      _
    $region3: #{bilstm_crf_forward.5} parent=1 // pred_check_branch
      %24 = sbr.rel (0) target = $region5
    $region4: #{bilstm_crf_forward.5} parent=1 // pred_region
      _
    $region5: #{bilstm_crf_forward.5} parent=1 // pred_fallthru
      _
    // Predicated region
    $region6: #{bilstm_crf_forward.5} parent=1 // pred_check
      _
    $region7: #{bilstm_crf_forward.5} parent=1 // pred_check_branch
      %26 = sbr.rel (0) target = $region9
    $region8: #{bilstm_crf_forward.5} parent=1 // pred_region
      _
    $region9: #{bilstm_crf_forward.5} parent=1 // pred_fallthru
      _
    // Predicated region
    $region10: #{bilstm_crf_forward.5} parent=1 // pred_check
      _
    $region11: #{bilstm_crf_forward.5} parent=1 // pred_check_branch
      %28 = sbr.rel (0) target = $region13
    $region12: #{bilstm_crf_forward.5} parent=1 // pred_region
      _
    $region13: #{bilstm_crf_forward.5} parent=1 // pred_fallthru
      _
    // Predicated region
    $region14: #{bilstm_crf_forward.5} parent=1 // pred_check
      _
    $region15: #{bilstm_crf_forward.5} parent=1 // pred_check_branch
      %30 = sbr.rel (0) target = $region17
    $region16: #{bilstm_crf_forward.5} parent=1 // pred_region
      _
    $region17: #{bilstm_crf_forward.5} parent=1 // pred_fallthru
      _
    // Predicated region
    $region18: #{bilstm_crf_forward.5} parent=1 // pred_check
      _
    $region19: #{bilstm_crf_forward.5} parent=1 // pred_check_branch
      %32 = sbr.rel (0) target = $region21
    $region20: #{bilstm_crf_forward.5} parent=1 // pred_region
      _
    $region21: #{bilstm_crf_forward.5} parent=1 // pred_fallthru
      _
    // Predicated region
    $region22: #{bilstm_crf_forward.5} parent=1 // pred_check
      _
    $region23: #{bilstm_crf_forward.5} parent=1 // pred_check_branch
      %34 = sbr.rel (0) target = $region25
    $region24: #{bilstm_crf_forward.5} parent=1 // pred_region
      _
    $region25: #{bilstm_crf_forward.5} parent=1 // pred_fallthru
      _
    // Predicated region
    $region26: #{bilstm_crf_forward.5} parent=1 // pred_check
      _
    $region27: #{bilstm_crf_forward.5} parent=1 // pred_check_branch
      %36 = sbr.rel (0) target = $region29
    $region28: #{bilstm_crf_forward.5} parent=1 // pred_region
      _
    $region29: #{bilstm_crf_forward.5} parent=1 // pred_fallthru
      _
    // Predicated region
    $region30: #{bilstm_crf_forward.5} parent=1 // pred_check
      _
    $region31: #{bilstm_crf_forward.5} parent=1 // pred_check_branch
      %38 = sbr.rel (0) target = $region33
    $region32: #{bilstm_crf_forward.5} parent=1 // pred_region
      _
    $region33: #{bilstm_crf_forward.5} parent=1 // pred_fallthru
      _
    // Predicated region
    $region34: #{bilstm_crf_forward.5} parent=1 // pred_check
      _
    $region35: #{bilstm_crf_forward.5} parent=1 // pred_check_branch
      %40 = sbr.rel (0) target = $region37
    $region36: #{bilstm_crf_forward.5} parent=1 // pred_region
      _
    $region37: #{bilstm_crf_forward.5} parent=1 // pred_fallthru
      _
    // Predicated region
    $region38: #{bilstm_crf_forward.5} parent=1 // pred_check
      _
    $region39: #{bilstm_crf_forward.5} parent=1 // pred_check_branch
      %42 = sbr.rel (0) target = $region41
    $region40: #{bilstm_crf_forward.5} parent=1 // pred_region
      _
    $region41: #{bilstm_crf_forward.5} parent=1 // pred_fallthru
      _
    // Predicated region
    $region42: #{bilstm_crf_forward.5} parent=1 // pred_check
      _
    $region43: #{bilstm_crf_forward.5} parent=1 // pred_check_branch
      %44 = sbr.rel (0) target = $region45
    $region44: #{bilstm_crf_forward.5} parent=1 // pred_region
      _
    $region45: #{bilstm_crf_forward.5} parent=1 // pred_fallthru
      _
    // Predicated region
    $region46: #{bilstm_crf_forward.5} parent=1 // pred_check
      _
    $region47: #{bilstm_crf_forward.5} parent=1 // pred_check_branch
      %46 = sbr.rel (0) target = $region49
    $region48: #{bilstm_crf_forward.5} parent=1 // pred_region
      _
    $region49: #{bilstm_crf_forward.5} parent=1 // pred_fallthru
      _
    // Predicated region
    $region50: #{bilstm_crf_forward.5} parent=1 // pred_check
      _
    $region51: #{bilstm_crf_forward.5} parent=1 // pred_check_branch
      %48 = sbr.rel (0) target = $region53
    $region52: #{bilstm_crf_forward.5} parent=1 // pred_region
      _
    $region53: #{bilstm_crf_forward.5} parent=1 // pred_fallthru
      _
    // Predicated region
    $region54: #{bilstm_crf_forward.5} parent=1 // pred_check
      _
    $region55: #{bilstm_crf_forward.5} parent=1 // pred_check_branch
      %50 = sbr.rel (0) target = $region57
    $region56: #{bilstm_crf_forward.5} parent=1 // pred_region
      _
    $region57: #{bilstm_crf_forward.5} parent=1 // pred_fallthru
      _
    // Predicated region
    $region58: #{bilstm_crf_forward.5} parent=1 // pred_check
      _
    $region59: #{bilstm_crf_forward.5} parent=1 // pred_check_branch
      %52 = sbr.rel (0) target = $region61
    $region60: #{bilstm_crf_forward.5} parent=1 // pred_region
      _
    $region61: #{bilstm_crf_forward.5} parent=1 // pred_fallthru
      _
    %v54 = vld [vmem:[%s0] sm:$0xff]
    %v55 = vld [vmem:[%s0 + $0x8] sm:$0xff]
    %v56 = vld [vmem:[%s1] sm:$0xf]
    %v57 = vld [vmem:[%s1 + $0x4] sm:$0xf]
    %v58 = vld [vmem:[%s1 + $0x8] sm:$0xf]
    %v59 = vld [vmem:[%s1 + $0xc] sm:$0xf]
    %v60 = vld [vmem:[%s1 + $0x10] sm:$0xf]
    %v61 = vld [vmem:[%s1 + $0x14] sm:$0xf]
    %v62 = vld [vmem:[%s1 + $0x18] sm:$0xf]
    %v63 = vld [vmem:[%s1 + $0x1c] sm:$0xf]
    %v64 = vld [vmem:[%s1 + $0x20] sm:$0xf]
    %v65 = vld [vmem:[%s1 + $0x24] sm:$0xf]
    %v66 = vld [vmem:[%s1 + $0x28] sm:$0xf]
    %v67 = vld [vmem:[%s1 + $0x2c] sm:$0xf]
    %v68 = vld [vmem:[%s1 + $0x30] sm:$0xf]
    %v69 = vld [vmem:[%s1 + $0x34] sm:$0xf]
    %v70 = vld [vmem:[%s1 + $0x38] sm:$0xf]
    %v71 = vld [vmem:[%s1 + $0x3c] sm:$0xf]
    %v72 = vld [vmem:[%s1 + $0x40] sm:$0xf]
    %v73 = vld [vmem:[%s1 + $0x44] sm:$0xf]
    %v74 = vld [vmem:[%s1 + $0x48] sm:$0xf]
    %v75 = vld [vmem:[%s1 + $0x4c] sm:$0xf]
    %v76 = vld [vmem:[%s1 + $0x50] sm:$0xf]
    %v77 = vld [vmem:[%s1 + $0x54] sm:$0xf]
    %v78 = vld [vmem:[%s1 + $0x58] sm:$0xf]
    %v79 = vld [vmem:[%s1 + $0x5c] sm:$0xf]
    %v80 = vld [vmem:[%s1 + $0x60] sm:$0xf]
    %v81 = vld [vmem:[%s1 + $0x64] sm:$0xf]
    %v82 = vld [vmem:[%s1 + $0x68] sm:$0xf]
    %v83 = vld [vmem:[%s1 + $0x6c] sm:$0xf]
    %v84 = vld [vmem:[%s1 + $0x70] sm:$0xf]
    %v85 = vld [vmem:[%s1 + $0x74] sm:$0xf]
    %v86 = vld [vmem:[%s1 + $0x78] sm:$0xf]
    %v87 = vld [vmem:[%s1 + $0x7c] sm:$0xf]
    %v88 = vld [vmem:[%s2] sm:$0x1]
    %v90 = vlaneseq
    %v91 = vshrl.u32 %v90, 7
    %v92 = vsub.s32 0, %v91
    %v93 = vrot.slane %v88, %v92
    %v97 = vunpack.c.l.b16 %v54
    %v98 = vunpack.c.h.b16 %v54
    %v99 = vunpack.c.l.b16 %v55
    %v100 = vunpack.c.h.b16 %v55
    %v101 = vpack.c.b16 %v99, %v97
    %v102 = vpack.c.b16 %v100, %v98
    %v137 = vunpack.c.l.b16 %v56
    %v138 = vunpack.c.l.b16 %v57
    %v139 = vunpack.c.l.b16 %v58
    %v140 = vunpack.c.l.b16 %v59
    %v141 = vunpack.c.l.b16 %v60
    %v142 = vunpack.c.l.b16 %v61
    %v143 = vunpack.c.l.b16 %v62
    %v144 = vunpack.c.l.b16 %v63
    %v145 = vunpack.c.l.b16 %v64
    %v146 = vunpack.c.l.b16 %v65
    %v147 = vunpack.c.l.b16 %v66
    %v148 = vunpack.c.l.b16 %v67
    %v149 = vunpack.c.l.b16 %v68
    %v150 = vunpack.c.l.b16 %v69
    %v151 = vunpack.c.l.b16 %v70
    %v152 = vunpack.c.l.b16 %v71
    %v153 = vunpack.c.l.b16 %v72
    %v154 = vunpack.c.l.b16 %v73
    %v155 = vunpack.c.l.b16 %v74
    %v156 = vunpack.c.l.b16 %v75
    %v157 = vunpack.c.l.b16 %v76
    %v158 = vunpack.c.l.b16 %v77
    %v159 = vunpack.c.l.b16 %v78
    %v160 = vunpack.c.l.b16 %v79
    %v161 = vunpack.c.l.b16 %v80
    %v162 = vunpack.c.l.b16 %v81
    %v163 = vunpack.c.l.b16 %v82
    %v164 = vunpack.c.l.b16 %v83
    %v165 = vunpack.c.l.b16 %v84
    %v166 = vunpack.c.l.b16 %v85
    %v167 = vunpack.c.l.b16 %v86
    %v168 = vunpack.c.l.b16 %v87
    %v169 = vpack.c.b16 %v138, %v137
    %v170 = vpack.c.b16 %v140, %v139
    %v171 = vpack.c.b16 %v142, %v141
    %v172 = vpack.c.b16 %v144, %v143
    %v173 = vpack.c.b16 %v146, %v145
    %v174 = vpack.c.b16 %v148, %v147
    %v175 = vpack.c.b16 %v150, %v149
    %v176 = vpack.c.b16 %v152, %v151
    %v177 = vpack.c.b16 %v154, %v153
    %v178 = vpack.c.b16 %v156, %v155
    %v179 = vpack.c.b16 %v158, %v157
    %v180 = vpack.c.b16 %v160, %v159
    %v181 = vpack.c.b16 %v162, %v161
    %v182 = vpack.c.b16 %v164, %v163
    %v183 = vpack.c.b16 %v166, %v165
    %v184 = vpack.c.b16 %v168, %v167
    %201 = vmatprep.subr.bf16.mxu0 0
    %202 = vmatpush1.bf16.msra.mxu0 %v169
    %203 = vmatprep.subr.bf16.mxu0 0
    %204 = vmatpush1.bf16.msra.mxu0 %v170
    %205 = vmatprep.subr.bf16.mxu0 0
    %206 = vmatpush1.bf16.msra.mxu0 %v171
    %207 = vmatprep.subr.bf16.mxu0 0
    %208 = vmatpush1.bf16.msra.mxu0 %v172
    %209 = vmatprep.subr.bf16.mxu0 0
    %210 = vmatpush1.bf16.msra.mxu0 %v173
    %211 = vmatprep.subr.bf16.mxu0 0
    %212 = vmatpush1.bf16.msra.mxu0 %v174
    %213 = vmatprep.subr.bf16.mxu0 0
    %214 = vmatpush1.bf16.msra.mxu0 %v175
    %215 = vmatprep.subr.bf16.mxu0 0
    %216 = vmatpush1.bf16.msra.mxu0 %v176
    %217 = vmatprep.subr.bf16.mxu0 0
    %218 = vmatpush1.bf16.msra.mxu0 %v177
    %219 = vmatprep.subr.bf16.mxu0 0
    %220 = vmatpush1.bf16.msra.mxu0 %v178
    %221 = vmatprep.subr.bf16.mxu0 0
    %222 = vmatpush1.bf16.msra.mxu0 %v179
    %223 = vmatprep.subr.bf16.mxu0 0
    %224 = vmatpush1.bf16.msra.mxu0 %v180
    %225 = vmatprep.subr.bf16.mxu0 0
    %226 = vmatpush1.bf16.msra.mxu0 %v181
    %227 = vmatprep.subr.bf16.mxu0 0
    %228 = vmatpush1.bf16.msra.mxu0 %v182
    %229 = vmatprep.subr.bf16.mxu0 0
    %230 = vmatpush1.bf16.msra.mxu0 %v183
    %231 = vmatprep.subr.bf16.mxu0 0
    %232 = vmatpush1.bf16.msra.mxu0 %v184
    %233 = vmatprep.mubr.bf16.mxu0 %v102
    %234 = vmatmul.mubr.bf16.gmra.mrb[0].mxu0 %v101
    %v235 = vpop.f32.mrb[0].mxu0
    %v236 = vadd.f32 %v93, %v235
    %v237 = vpop.f32.mrb[0].mxu0
    %v238 = vpop.f32.mrb[0].mxu0
    %v239 = vadd.f32 %v93, %v238
    %v240 = vpop.f32.mrb[0].mxu0
    %241 = vdwg.mxu0
    %vm242 = vcmask 39936
    %v243 = vsel %vm242, %v236, 0.0
    %v244 = vsel %vm242, %v239, 0.0
    %v245 = vadd.f32 %v243, %v244
    %v246 = vrot.slane %v245, 4
    %v247 = vadd.f32 %v245, %v246
    %v248 = vrot.slane %v247, 2
    %v249 = vadd.f32 %v247, %v248
    %v250 = vrot.slane %v249, 1
    %v251 = vadd.f32 %v249, %v250
    %v252 = vmul.f32 %v251, 0.0625
    %v253 = vsub.f32 %v236, %v252
    %v254 = vsub.f32 %v239, %v252
    %v255 = vmul.f32 %v253, %v253
    %v256 = vmul.f32 %v254, %v254
    %v257 = vsel %vm242, %v255, 0.0
    %v258 = vsel %vm242, %v256, 0.0
    %v259 = vadd.f32 %v257, %v258
    %v260 = vrot.slane %v259, 4
    %v261 = vadd.f32 %v259, %v260
    %v262 = vrot.slane %v261, 2
    %v263 = vadd.f32 %v261, %v262
    %v264 = vrot.slane %v263, 1
    %v265 = vadd.f32 %v263, %v264
    %v266 = vmul.f32 %v265, 0.0625
    %v267 = vld [vmem:[%s3] sm:$0x1]
    %v269 = vlaneseq
    %v270 = vshrl.u32 %v269, 7
    %v271 = vsub.s32 0, %v270
    %v272 = vrot.slane %v267, %v271
    %v274 = vmul.f32 %v272, %v253
    %v275 = vmul.f32 %v272, %v254
    %v276 = vadd.f32 %v266, 1e-05
    %v277 = vrsqrt.pop %v276
    %v278 = vmul.f32 %v274, %v277
    %v279 = vmul.f32 %v275, %v277
    %v280 = vld [vmem:[%s4] sm:$0x1]
    %v282 = vlaneseq
    %v283 = vshrl.u32 %v282, 7
    %v284 = vsub.s32 0, %v283
    %v285 = vrot.slane %v280, %v284
    %v287 = vadd.f32 %v278, %v285
    %v288 = vadd.f32 %v279, %v285
    %v289 = vld [vmem:[%s12] sm:$0x1]
    %v290 = vlaneseq
    %v291 = vand.u32 %v290, 127
    %v292 = vld [vmem:[%s5] sm:$0xff]
    %v293 = vld [vmem:[%s5 + $0x8] sm:$0xff]
    %294 = vset.pattern.permute.xlu0 0
    %295 = vperm.xlu0 %294, %v292
    %v296 = vpop.permute.xlu0 %295
    %297 = vset.pattern.permute.xlu0 0
    %298 = vperm.xlu0 %297, %v293
    %v299 = vpop.permute.xlu0 %298
    %vm300 = vcmp.eq.s32.totalorder %v296, %v291
    %vm301 = vcmp.eq.s32.totalorder %v299, %v291
    %v302 = vsel %vm300, %v287, 0.0
    %v303 = vsel %vm301, %v288, 0.0
    %v304 = vsel %vm242, %v302, 0.0
    %305 = vadd.xlane.f32.xlu0 %v304
    %v306 = vpop.xlane.xlu0 %305
    %v307 = vsel %vm242, %v303, 0.0
    %308 = vadd.xlane.f32.xlu0 %v307
    %v309 = vpop.xlane.xlu0 %308
    %v310 = vld [vmem:[%s6] sm:$0xff]
    %v311 = vld [vmem:[%s6 + $0x8] sm:$0xff]
    %312 = vset.pattern.permute.xlu0 0
    %313 = vperm.xlu0 %312, %v310
    %v314 = vpop.permute.xlu0 %313
    %315 = vset.pattern.permute.xlu0 0
    %316 = vperm.xlu0 %315, %v311
    %v317 = vpop.permute.xlu0 %316
    %vm318 = vcmp.eq.s32.totalorder %v314, %v291
    %vm319 = vcmp.eq.s32.totalorder %v317, %v291
    %v321 = vlaneseq
    %v322 = vshrl.u32 %v321, 7
    %v323 = vsub.s32 0, %v322
    %v324 = vrot.slane %v289, %v323
    %v326 = vsel %vm318, %v324, 0.0
    %v327 = vsel %vm319, %v324, 0.0
    %vm328 = vcmask 203776
    %v329 = vsel %vm328, %v326, 0.0
    %330 = vadd.xlane.f32.xlu0 %v329
    %v331 = vpop.xlane.xlu0 %330
    %v332 = vsel %vm328, %v327, 0.0
    %333 = vadd.xlane.f32.xlu0 %v332
    %v334 = vpop.xlane.xlu0 %333
    %v335 = vadd.f32 %v306, %v331
    %v336 = vadd.f32 %v309, %v334
    %v337 = vld [vmem:[%s7] sm:$0xff]
    %v338 = vld [vmem:[%s7 + $0x8] sm:$0xff]
    %v339 = vmul.f32 %v335, %v337
    %v340 = vmul.f32 %v336, %v338
    %vm341 = vcmask 7168
    %v342 = vsel %vm341, %v339, 0.0
    %v343 = vsel %vm341, %v340, 0.0
    %v344 = vadd.f32 %v342, %v343
    %v345 = vrot.slane %v344, 4
    %v346 = vadd.f32 %v344, %v345
    %v347 = vrot.slane %v346, 2
    %v348 = vadd.f32 %v346, %v347
    %v349 = vrot.slane %v348, 1
    %v350 = vadd.f32 %v348, %v349
    %vm351 = vcmask 33792
    %352 = vst.msk [vmem:[#allocation2] sm:$0x3] %vm351, %v287
    %s353 = scalar_lea.vmem [#allocation2], 2
    %vm354 = vcmask 35842
    %355 = vst.msk [vmem:[%s353 - $0x2] sm:$0xc] %vm354, %v287
    %s356 = scalar_lea.vmem [#allocation2], 4
    %vm357 = vcmask 37892
    %358 = vst.msk [vmem:[%s356 - $0x4] sm:$0x30] %vm357, %v287
    %s359 = scalar_lea.vmem [#allocation2], 6
    %vm360 = vcmask 39942
    %361 = vst.msk [vmem:[%s359 - $0x6] sm:$0xc0] %vm360, %v287
    %s362 = scalar_lea.vmem [#allocation2], 8
    %363 = vst.msk [vmem:[%s362] sm:$0x3] %vm351, %v288
    %s364 = scalar_lea.vmem [#allocation2], 10
    %365 = vst.msk [vmem:[%s364 - $0x2] sm:$0xc] %vm354, %v288
    %s366 = scalar_lea.vmem [#allocation2], 12
    %367 = vst.msk [vmem:[%s366 - $0x4] sm:$0x30] %vm357, %v288
    %s368 = scalar_lea.vmem [#allocation2], 14
    %369 = vst.msk [vmem:[%s368 - $0x6] sm:$0xc0] %vm360, %v288
    %v370 = vld [vmem:[%s13] sm:$0x1f]
    %v371 = vld [vmem:[%s14] sm:$0xff]
    %v372 = vld [vmem:[%s14 + $0x8] sm:$0xff]
    %v373 = vld [vmem:[%s14 + $0x10] sm:$0xff]
    %v374 = vld [vmem:[%s14 + $0x18] sm:$0x1]
    %vm375 = vcmask 196608
    %v376 = vsel %vm375, %v289, -inf
    %377 = vmax.xlane.f32.xlu0 %v376
    %v378 = vpop.xlane.xlu0 %377
    %v379 = vld [vmem:[%s10] sm:$0x1]
    %v381 = vlaneseq
    %v382 = vshrl.u32 %v381, 7
    %v383 = vsub.s32 0, %v382
    %v384 = vrot.slane %v379, %v383
    %v386 = vadd.f32 %v384, %v287
    loop: start=1, step=1, limit=8
    $region62: #{bilstm_crf_forward.5} parent=1 // loop_pre_header
      _
    $region63: #{bilstm_crf_forward.5} parent=1 // loop_header
      %s388 = sphi 1, %s392
      %p389 = scmp.ge.s32.totalorder %s388, 8
      %v393 = vphi %v386, %v581
    $region64: #{bilstm_crf_forward.5} parent=1 // loop_header_branch
      %391 = sbr.rel (%p389) target = $region68
    $region65: #{bilstm_crf_forward.5} parent=1 // loop_body
      %v394 = vsel %vm351, %v393, -inf
      %395 = vmax.xlane.f32.xlu0 %v394
      %v396 = vpop.xlane.xlu0 %395
      %v397 = vsub.f32 %v393, %v396
      %v398 = vsub.f32 %v289, %v378
      %v400 = vlaneseq
      %v401 = vshrl.u32 %v400, 7
      %v402 = vsub.s32 0, %v401
      %v403 = vrot.slane %v398, %v402
      %v406 = vsel %vm242, %v397, 0
      %vm408 = vcmask 1044480
      %v410 = vsel %vm408, %v370, 0
      %412 = vmatprep.subr.mxu0 0.0
      %413 = vmatpush1.msra.mxu0 %v410
      %414 = vmatprep.subr.mxu0 0.0
      %415 = vmatpush1.msra.mxu0 0.0
      %416 = vmatprep.subr.mxu0 0.0
      %417 = vmatpush1.msra.mxu0 0.0
      %418 = vmatprep.subr.mxu0 0.0
      %419 = vmatpush1.msra.mxu0 0.0
      %420 = vmatprep.subr.mxu0 0.0
      %421 = vmatpush1.msra.mxu0 0.0
      %422 = vmatprep.subr.mxu0 0.0
      %423 = vmatpush1.msra.mxu0 0.0
      %424 = vmatprep.subr.mxu0 0.0
      %425 = vmatpush1.msra.mxu0 0.0
      %426 = vmatprep.subr.mxu0 0.0
      %427 = vmatpush1.msra.mxu0 0.0
      %428 = vmatprep.subr.mxu0 0.0
      %429 = vmatpush1.msra.mxu0 0.0
      %430 = vmatprep.subr.mxu0 0.0
      %431 = vmatpush1.msra.mxu0 0.0
      %432 = vmatprep.subr.mxu0 0.0
      %433 = vmatpush1.msra.mxu0 0.0
      %434 = vmatprep.subr.mxu0 0.0
      %435 = vmatpush1.msra.mxu0 0.0
      %436 = vmatprep.subr.mxu0 0.0
      %437 = vmatpush1.msra.mxu0 0.0
      %438 = vmatprep.subr.mxu0 0.0
      %439 = vmatpush1.msra.mxu0 0.0
      %440 = vmatprep.subr.mxu0 0.0
      %441 = vmatpush1.msra.mxu0 0.0
      %442 = vmatprep.subr.mxu0 0.0
      %443 = vmatpush1.msra.mxu0 0.0
      %444 = vmatprep.subr.mxu0 0.0
      %445 = vmatpush1.msra.mxu0 0.0
      %446 = vmatprep.subr.mxu0 0.0
      %447 = vmatpush1.msra.mxu0 0.0
      %448 = vmatprep.subr.mxu0 0.0
      %449 = vmatpush1.msra.mxu0 0.0
      %450 = vmatprep.subr.mxu0 0.0
      %451 = vmatpush1.msra.mxu0 0.0
      %452 = vmatprep.subr.mxu0 0.0
      %453 = vmatpush1.msra.mxu0 0.0
      %454 = vmatprep.subr.mxu0 0.0
      %455 = vmatpush1.msra.mxu0 0.0
      %456 = vmatprep.subr.mxu0 0.0
      %457 = vmatpush1.msra.mxu0 0.0
      %458 = vmatprep.subr.mxu0 0.0
      %459 = vmatpush1.msra.mxu0 0.0
      %460 = vmatprep.subr.mxu0 0.0
      %461 = vmatpush1.msra.mxu0 0.0
      %462 = vmatprep.subr.mxu0 0.0
      %463 = vmatpush1.msra.mxu0 0.0
      %464 = vmatprep.subr.mxu0 0.0
      %465 = vmatpush1.msra.mxu0 0.0
      %466 = vmatprep.subr.mxu0 0.0
      %467 = vmatpush1.msra.mxu0 0.0
      %468 = vmatprep.subr.mxu0 0.0
      %469 = vmatpush1.msra.mxu0 0.0
      %470 = vmatprep.subr.mxu0 0.0
      %471 = vmatpush1.msra.mxu0 0.0
      %472 = vmatprep.subr.mxu0 0.0
      %473 = vmatpush1.msra.mxu0 0.0
      %474 = vmatprep.subr.mxu0 0.0
      %475 = vmatpush1.msra.mxu0 0.0
      %476 = vmatprep.mubr.f32.mxu0 0.0
      %477 = vmatmul.mubr.f32.gmra.mrb[0].mxu0 %v406
      %v478 = vpop.f32.mrb[0].mxu0
      %v479 = vadd.f32 %v403, %v478
      %v480 = vpop.f32.mrb[0].mxu0
      %481 = vdwg.mxu0
      %v482 = vmul.f32 %v479, 1.442695
      %v483 = vpow.pop %v482
      %v485 = vsel %vm328, %v483, 0
      %vm487 = vcmask 1040384
      %v489 = vsel %vm487, %v374, 0
      %491 = vmatprep.subr.mxu0 0.0
      %492 = vmatpush1.msra.mxu0 %v371
      %493 = vmatprep.subr.mxu0 0.0
      %494 = vmatpush1.msra.mxu0 %v372
      %495 = vmatprep.subr.mxu0 0.0
      %496 = vmatpush1.msra.mxu0 %v373
      %497 = vmatprep.subr.mxu0 0.0
      %498 = vmatpush1.msra.mxu0 %v489
      %499 = vmatprep.subr.mxu0 0.0
      %500 = vmatpush1.msra.mxu0 0.0
      %501 = vmatprep.subr.mxu0 0.0
      %502 = vmatpush1.msra.mxu0 0.0
      %503 = vmatprep.subr.mxu0 0.0
      %504 = vmatpush1.msra.mxu0 0.0
      %505 = vmatprep.subr.mxu0 0.0
      %506 = vmatpush1.msra.mxu0 0.0
      %507 = vmatprep.subr.mxu0 0.0
      %508 = vmatpush1.msra.mxu0 0.0
      %509 = vmatprep.subr.mxu0 0.0
      %510 = vmatpush1.msra.mxu0 0.0
      %511 = vmatprep.subr.mxu0 0.0
      %512 = vmatpush1.msra.mxu0 0.0
      %513 = vmatprep.subr.mxu0 0.0
      %514 = vmatpush1.msra.mxu0 0.0
      %515 = vmatprep.subr.mxu0 0.0
      %516 = vmatpush1.msra.mxu0 0.0
      %517 = vmatprep.subr.mxu0 0.0
      %518 = vmatpush1.msra.mxu0 0.0
      %519 = vmatprep.subr.mxu0 0.0
      %520 = vmatpush1.msra.mxu0 0.0
      %521 = vmatprep.subr.mxu0 0.0
      %522 = vmatpush1.msra.mxu0 0.0
      %523 = vmatprep.subr.mxu0 0.0
      %524 = vmatpush1.msra.mxu0 0.0
      %525 = vmatprep.subr.mxu0 0.0
      %526 = vmatpush1.msra.mxu0 0.0
      %527 = vmatprep.subr.mxu0 0.0
      %528 = vmatpush1.msra.mxu0 0.0
      %529 = vmatprep.subr.mxu0 0.0
      %530 = vmatpush1.msra.mxu0 0.0
      %531 = vmatprep.subr.mxu0 0.0
      %532 = vmatpush1.msra.mxu0 0.0
      %533 = vmatprep.subr.mxu0 0.0
      %534 = vmatpush1.msra.mxu0 0.0
      %535 = vmatprep.subr.mxu0 0.0
      %536 = vmatpush1.msra.mxu0 0.0
      %537 = vmatprep.subr.mxu0 0.0
      %538 = vmatpush1.msra.mxu0 0.0
      %539 = vmatprep.subr.mxu0 0.0
      %540 = vmatpush1.msra.mxu0 0.0
      %541 = vmatprep.subr.mxu0 0.0
      %542 = vmatpush1.msra.mxu0 0.0
      %543 = vmatprep.subr.mxu0 0.0
      %544 = vmatpush1.msra.mxu0 0.0
      %545 = vmatprep.subr.mxu0 0.0
      %546 = vmatpush1.msra.mxu0 0.0
      %547 = vmatprep.subr.mxu0 0.0
      %548 = vmatpush1.msra.mxu0 0.0
      %549 = vmatprep.subr.mxu0 0.0
      %550 = vmatpush1.msra.mxu0 0.0
      %551 = vmatprep.subr.mxu0 0.0
      %552 = vmatpush1.msra.mxu0 0.0
      %553 = vmatprep.subr.mxu0 0.0
      %554 = vmatpush1.msra.mxu0 0.0
      %555 = vmatprep.mubr.f32.mxu0 0.0
      %556 = vmatmul.mubr.f32.gmra.mrb[0].mxu0 %v485
      %v557 = vpop.f32.mrb[0].mxu0
      %v558 = vadd.f32 0.0, %v557
      %v559 = vpop.f32.mrb[0].mxu0
      %560 = vdwg.mxu0
      %v561 = vlog2.pop %v558
      %v562 = vmul.f32 %v561, 0.6931472
      %v563 = vadd.f32 %v562, %v396
      %v564 = vlaneseq
      %v565 = vshrl.u32 %v564, 7
      %v566 = vsub.s32 0, %v565
      %v567 = vrot.slane %v378, %v566
      %v568 = vadd.f32 %v563, %v567
      %s569 = smul.u32 %s388, 2
      %s570 = scalar_lea.vmem [#allocation2], %s569
      %v571 = vld [vmem:[%s570] sm:$0x3]
      %v572 = vadd.f32 %v568, %v571
      %s573 = scalar_lea.vmem %s8, %s569
      %v574 = vld [vmem:[%s573] sm:$0x3]
      %vm575 = vcmp.gt.f32.partialorder %v574, 0.0
      %v576 = vsel %vm575, 1, 0
      %577 = vset.pattern.permute.xlu0 0
      %578 = vperm.xlu0 %577, %v576
      %v579 = vpop.permute.xlu0 %578
      %vm580 = vcmp.eq.s32.totalorder %v579, 1
      %v581 = vsel %vm580, %v572, %v393
    $region66: #{bilstm_crf_forward.5} parent=1 // loop_footer
      %s392 = sadd.s32 1, %s388
    $region67: #{bilstm_crf_forward.5} parent=1 // loop_footer_branch
      %387 = sbr.rel target = $region63
    $region68: #{bilstm_crf_forward.5} parent=1 // loop_exit
      _
    %v582 = vld [vmem:[%s11] sm:$0x1]
    %v584 = vlaneseq
    %v585 = vshrl.u32 %v584, 7
    %v586 = vsub.s32 0, %v585
    %v587 = vrot.slane %v582, %v586
    %v589 = vadd.f32 %v393, %v587
    %v590 = vsel %vm351, %v589, -inf
    %591 = vmax.xlane.f32.xlu0 %v590
    %v592 = vpop.xlane.xlu0 %591
    %v593 = vsub.f32 %v589, %v592
    %v594 = vmul.f32 %v593, 1.442695
    %v595 = vpow.pop %v594
    %v596 = vsel %vm351, %v595, 0.0
    %597 = vadd.xlane.f32.xlu0 %v596
    %v598 = vpop.xlane.xlu0 %597
    %v599 = vlog2.pop %v598
    %v600 = vmul.f32 %v599, 0.6931472
    %v601 = vadd.f32 %v600, %v592
    %v602 = vld [vmem:[#allocation3] sm:$0x1]
    %v603 = vadd.f32 %v602, %v350
    %vm604 = vcmask 1041408
    %v605 = vsel %vm604, %v601, 0.0
    %v606 = vrot.slane %v605, 4
    %v607 = vadd.f32 %v605, %v606
    %v608 = vrot.slane %v607, 2
    %v609 = vadd.f32 %v607, %v608
    %v610 = vrot.slane %v609, 1
    %v611 = vadd.f32 %v609, %v610
    %v612 = vsub.f32 %v603, %v611
    %vm613 = vcmask 0
    %614 = vst.msk [vmem:[#allocation4] sm:$0x1] %vm613, %v612
    // Predicated region
    $region69: #{bilstm_crf_forward.5} parent=1 // pred_check
      _
    $region70: #{bilstm_crf_forward.5} parent=1 // pred_check_branch
      %616 = sbr.rel (0) target = $region72
    $region71: #{bilstm_crf_forward.5} parent=1 // pred_region
      %s618 = ssub.s32 16, 16
      %619 = vsyncadd [#allocation5], %s618
      %s621 = sshll.u32 [#allocation4], 4
      %s622 = int_to_ptr.vmem [resolvable:$true] %s621
      %624 = dma.vmem_to_hbm [thread:$0]  %s622, 16, %s15, [#allocation5]
    $region72: #{bilstm_crf_forward.5} parent=1 // pred_fallthru
      _
    // Predicated region
    $region73: #{bilstm_crf_forward.5} parent=1 // pred_check
      _
    $region74: #{bilstm_crf_forward.5} parent=1 // pred_check_branch
      %626 = sbr.rel (0) target = $region76
    $region75: #{bilstm_crf_forward.5} parent=1 // pred_region
      %627 = dma.done [#allocation5], 16
    $region76: #{bilstm_crf_forward.5} parent=1 // pred_fallthru
      _
    %628 = vsyncpa [#allocation5], 1

// kernel: bilstm_crf_forward.4
$region0: #{bilstm_crf_forward.4}
  #allocation0 [shape = 'u32[]', space=smem, size = 0x4, offset = 0x4, fixed_abs, tag = 'smem constant byte address 0x4 - core index']
  #allocation1 [shape = 'u32[144,128]{1,0:T(1,128)}', space=vmem, size = 0x12000, scoped, tag = 'internal scratch']
  #allocation2 [shape = 'f32[8,2,1024]{2,1,0:T(2,128)}', space=vmem, size = 0x10000, scoped, tag = 'scratch operand']
  %s0 = inlined_call_operand.vmem [shape: bf16[16,256], index: 0, kind: input, shape index: {}]
  %s1 = inlined_call_operand.vmem [shape: bf16[256,1024], index: 1, kind: input, shape index: {}]
  %s2 = inlined_call_operand.vmem [shape: bf16[256,1024], index: 2, kind: input, shape index: {}]
  %s3 = inlined_call_operand.vmem [shape: f32[1,1024], index: 3, kind: input, shape index: {}]
  %s4 = inlined_call_operand.vmem [shape: f32[2,256], index: 4, kind: input, shape index: {}]
  %s5 = inlined_call_operand.vmem [shape: f32[2,256], index: 5, kind: input, shape index: {}]
  %s6 = inlined_call_operand.vmem [shape: bf16[8,2,128], index: 6, kind: output, shape index: {0}]
  %s7 = inlined_call_operand.vmem [shape: bf16[8,2,128], index: 7, kind: output, shape index: {1}]
  %8 = xla_tuple %s6, %s7
  %s9 = sld [smem:[#allocation0]]
  $region49: #{bilstm_crf_forward.4} parent=0
    _
  %s11 = ssub.s32 1, %s9
  %s12 = scalar_select 0, %s11, %s9
  // Predicated region
  $region2: #{bilstm_crf_forward.4} parent=0 // pred_check
    _
  $region3: #{bilstm_crf_forward.4} parent=0 // pred_check_branch
    %14 = sbr.rel (0) target = $region5
  $region4: #{bilstm_crf_forward.4} parent=0 // pred_region
    _
  $region5: #{bilstm_crf_forward.4} parent=0 // pred_fallthru
    _
  // Predicated region
  $region6: #{bilstm_crf_forward.4} parent=0 // pred_check
    _
  $region7: #{bilstm_crf_forward.4} parent=0 // pred_check_branch
    %16 = sbr.rel (0) target = $region9
  $region8: #{bilstm_crf_forward.4} parent=0 // pred_region
    _
  $region9: #{bilstm_crf_forward.4} parent=0 // pred_fallthru
    _
  // Predicated region
  $region10: #{bilstm_crf_forward.4} parent=0 // pred_check
    _
  $region11: #{bilstm_crf_forward.4} parent=0 // pred_check_branch
    %18 = sbr.rel (0) target = $region13
  $region12: #{bilstm_crf_forward.4} parent=0 // pred_region
    _
  $region13: #{bilstm_crf_forward.4} parent=0 // pred_fallthru
    _
  // Predicated region
  $region14: #{bilstm_crf_forward.4} parent=0 // pred_check
    _
  $region15: #{bilstm_crf_forward.4} parent=0 // pred_check_branch
    %20 = sbr.rel (0) target = $region17
  $region16: #{bilstm_crf_forward.4} parent=0 // pred_region
    _
  $region17: #{bilstm_crf_forward.4} parent=0 // pred_fallthru
    _
  // Predicated region
  $region18: #{bilstm_crf_forward.4} parent=0 // pred_check
    _
  $region19: #{bilstm_crf_forward.4} parent=0 // pred_check_branch
    %22 = sbr.rel (0) target = $region21
  $region20: #{bilstm_crf_forward.4} parent=0 // pred_region
    _
  $region21: #{bilstm_crf_forward.4} parent=0 // pred_fallthru
    _
  // Predicated region
  $region22: #{bilstm_crf_forward.4} parent=0 // pred_check
    _
  $region23: #{bilstm_crf_forward.4} parent=0 // pred_check_branch
    %24 = sbr.rel (0) target = $region25
  $region24: #{bilstm_crf_forward.4} parent=0 // pred_region
    _
  $region25: #{bilstm_crf_forward.4} parent=0 // pred_fallthru
    _
  %v25 = vld [vmem:[%s0] sm:$0xff]
  %v26 = vld [vmem:[%s0 + $0x8] sm:$0xff]
  %v27 = vld [vmem:[%s1] sm:$0xff]
  %v28 = vld [vmem:[%s1 + $0x8] sm:$0xff]
  %v29 = vld [vmem:[%s1 + $0x10] sm:$0xff]
  %v30 = vld [vmem:[%s1 + $0x18] sm:$0xff]
  %v31 = vld [vmem:[%s1 + $0x20] sm:$0xff]
  %v32 = vld [vmem:[%s1 + $0x28] sm:$0xff]
  %v33 = vld [vmem:[%s1 + $0x30] sm:$0xff]
  %v34 = vld [vmem:[%s1 + $0x38] sm:$0xff]
  %v35 = vld [vmem:[%s1 + $0x40] sm:$0xff]
  %v36 = vld [vmem:[%s1 + $0x48] sm:$0xff]
  %v37 = vld [vmem:[%s1 + $0x50] sm:$0xff]
  %v38 = vld [vmem:[%s1 + $0x58] sm:$0xff]
  %v39 = vld [vmem:[%s1 + $0x60] sm:$0xff]
  %v40 = vld [vmem:[%s1 + $0x68] sm:$0xff]
  %v41 = vld [vmem:[%s1 + $0x70] sm:$0xff]
  %v42 = vld [vmem:[%s1 + $0x78] sm:$0xff]
  %v43 = vld [vmem:[%s1 + $0x80] sm:$0xff]
  %v44 = vld [vmem:[%s1 + $0x88] sm:$0xff]
  %v45 = vld [vmem:[%s1 + $0x90] sm:$0xff]
  %v46 = vld [vmem:[%s1 + $0x98] sm:$0xff]
  %v47 = vld [vmem:[%s1 + $0xa0] sm:$0xff]
  %v48 = vld [vmem:[%s1 + $0xa8] sm:$0xff]
  %v49 = vld [vmem:[%s1 + $0xb0] sm:$0xff]
  %v50 = vld [vmem:[%s1 + $0xb8] sm:$0xff]
  %v51 = vld [vmem:[%s1 + $0xc0] sm:$0xff]
  %v52 = vld [vmem:[%s1 + $0xc8] sm:$0xff]
  %v53 = vld [vmem:[%s1 + $0xd0] sm:$0xff]
  %v54 = vld [vmem:[%s1 + $0xd8] sm:$0xff]
  %v55 = vld [vmem:[%s1 + $0xe0] sm:$0xff]
  %v56 = vld [vmem:[%s1 + $0xe8] sm:$0xff]
  %v57 = vld [vmem:[%s1 + $0xf0] sm:$0xff]
  %v58 = vld [vmem:[%s1 + $0xf8] sm:$0xff]
  %v59 = vld [vmem:[%s1 + $0x100] sm:$0xff]
  %v60 = vld [vmem:[%s1 + $0x108] sm:$0xff]
  %v61 = vld [vmem:[%s1 + $0x110] sm:$0xff]
  %v62 = vld [vmem:[%s1 + $0x118] sm:$0xff]
  %v63 = vld [vmem:[%s1 + $0x120] sm:$0xff]
  %v64 = vld [vmem:[%s1 + $0x128] sm:$0xff]
  %v65 = vld [vmem:[%s1 + $0x130] sm:$0xff]
  %v66 = vld [vmem:[%s1 + $0x138] sm:$0xff]
  %v67 = vld [vmem:[%s1 + $0x140] sm:$0xff]
  %v68 = vld [vmem:[%s1 + $0x148] sm:$0xff]
  %v69 = vld [vmem:[%s1 + $0x150] sm:$0xff]
  %v70 = vld [vmem:[%s1 + $0x158] sm:$0xff]
  %v71 = vld [vmem:[%s1 + $0x160] sm:$0xff]
  %v72 = vld [vmem:[%s1 + $0x168] sm:$0xff]
  %v73 = vld [vmem:[%s1 + $0x170] sm:$0xff]
  %v74 = vld [vmem:[%s1 + $0x178] sm:$0xff]
  %v75 = vld [vmem:[%s1 + $0x180] sm:$0xff]
  %v76 = vld [vmem:[%s1 + $0x188] sm:$0xff]
  %v77 = vld [vmem:[%s1 + $0x190] sm:$0xff]
  %v78 = vld [vmem:[%s1 + $0x198] sm:$0xff]
  %v79 = vld [vmem:[%s1 + $0x1a0] sm:$0xff]
  %v80 = vld [vmem:[%s1 + $0x1a8] sm:$0xff]
  %v81 = vld [vmem:[%s1 + $0x1b0] sm:$0xff]
  %v82 = vld [vmem:[%s1 + $0x1b8] sm:$0xff]
  %v83 = vld [vmem:[%s1 + $0x1c0] sm:$0xff]
  %v84 = vld [vmem:[%s1 + $0x1c8] sm:$0xff]
  %v85 = vld [vmem:[%s1 + $0x1d0] sm:$0xff]
  %v86 = vld [vmem:[%s1 + $0x1d8] sm:$0xff]
  %v87 = vld [vmem:[%s1 + $0x1e0] sm:$0xff]
  %v88 = vld [vmem:[%s1 + $0x1e8] sm:$0xff]
  %v89 = vld [vmem:[%s1 + $0x1f0] sm:$0xff]
  %v90 = vld [vmem:[%s1 + $0x1f8] sm:$0xff]
  %v91 = vld [vmem:[%s1 + $0x200] sm:$0xff]
  %v92 = vld [vmem:[%s1 + $0x208] sm:$0xff]
  %v93 = vld [vmem:[%s1 + $0x210] sm:$0xff]
  %v94 = vld [vmem:[%s1 + $0x218] sm:$0xff]
  %v95 = vld [vmem:[%s1 + $0x220] sm:$0xff]
  %v96 = vld [vmem:[%s1 + $0x228] sm:$0xff]
  %v97 = vld [vmem:[%s1 + $0x230] sm:$0xff]
  %v98 = vld [vmem:[%s1 + $0x238] sm:$0xff]
  %v99 = vld [vmem:[%s1 + $0x240] sm:$0xff]
  %v100 = vld [vmem:[%s1 + $0x248] sm:$0xff]
  %v101 = vld [vmem:[%s1 + $0x250] sm:$0xff]
  %v102 = vld [vmem:[%s1 + $0x258] sm:$0xff]
  %v103 = vld [vmem:[%s1 + $0x260] sm:$0xff]
  %v104 = vld [vmem:[%s1 + $0x268] sm:$0xff]
  %v105 = vld [vmem:[%s1 + $0x270] sm:$0xff]
  %v106 = vld [vmem:[%s1 + $0x278] sm:$0xff]
  %v107 = vld [vmem:[%s1 + $0x280] sm:$0xff]
  %v108 = vld [vmem:[%s1 + $0x288] sm:$0xff]
  %v109 = vld [vmem:[%s1 + $0x290] sm:$0xff]
  %v110 = vld [vmem:[%s1 + $0x298] sm:$0xff]
  %v111 = vld [vmem:[%s1 + $0x2a0] sm:$0xff]
  %v112 = vld [vmem:[%s1 + $0x2a8] sm:$0xff]
  %v113 = vld [vmem:[%s1 + $0x2b0] sm:$0xff]
  %v114 = vld [vmem:[%s1 + $0x2b8] sm:$0xff]
  %v115 = vld [vmem:[%s1 + $0x2c0] sm:$0xff]
  %v116 = vld [vmem:[%s1 + $0x2c8] sm:$0xff]
  %v117 = vld [vmem:[%s1 + $0x2d0] sm:$0xff]
  %v118 = vld [vmem:[%s1 + $0x2d8] sm:$0xff]
  %v119 = vld [vmem:[%s1 + $0x2e0] sm:$0xff]
  %v120 = vld [vmem:[%s1 + $0x2e8] sm:$0xff]
  %v121 = vld [vmem:[%s1 + $0x2f0] sm:$0xff]
  %v122 = vld [vmem:[%s1 + $0x2f8] sm:$0xff]
  %v123 = vld [vmem:[%s1 + $0x300] sm:$0xff]
  %v124 = vld [vmem:[%s1 + $0x308] sm:$0xff]
  %v125 = vld [vmem:[%s1 + $0x310] sm:$0xff]
  %v126 = vld [vmem:[%s1 + $0x318] sm:$0xff]
  %v127 = vld [vmem:[%s1 + $0x320] sm:$0xff]
  %v128 = vld [vmem:[%s1 + $0x328] sm:$0xff]
  %v129 = vld [vmem:[%s1 + $0x330] sm:$0xff]
  %v130 = vld [vmem:[%s1 + $0x338] sm:$0xff]
  %v131 = vld [vmem:[%s1 + $0x340] sm:$0xff]
  %v132 = vld [vmem:[%s1 + $0x348] sm:$0xff]
  %v133 = vld [vmem:[%s1 + $0x350] sm:$0xff]
  %v134 = vld [vmem:[%s1 + $0x358] sm:$0xff]
  %v135 = vld [vmem:[%s1 + $0x360] sm:$0xff]
  %v136 = vld [vmem:[%s1 + $0x368] sm:$0xff]
  %v137 = vld [vmem:[%s1 + $0x370] sm:$0xff]
  %v138 = vld [vmem:[%s1 + $0x378] sm:$0xff]
  %v139 = vld [vmem:[%s1 + $0x380] sm:$0xff]
  %v140 = vld [vmem:[%s1 + $0x388] sm:$0xff]
  %v141 = vld [vmem:[%s1 + $0x390] sm:$0xff]
  %v142 = vld [vmem:[%s1 + $0x398] sm:$0xff]
  %v143 = vld [vmem:[%s1 + $0x3a0] sm:$0xff]
  %v144 = vld [vmem:[%s1 + $0x3a8] sm:$0xff]
  %v145 = vld [vmem:[%s1 + $0x3b0] sm:$0xff]
  %v146 = vld [vmem:[%s1 + $0x3b8] sm:$0xff]
  %v147 = vld [vmem:[%s1 + $0x3c0] sm:$0xff]
  %v148 = vld [vmem:[%s1 + $0x3c8] sm:$0xff]
  %v149 = vld [vmem:[%s1 + $0x3d0] sm:$0xff]
  %v150 = vld [vmem:[%s1 + $0x3d8] sm:$0xff]
  %v151 = vld [vmem:[%s1 + $0x3e0] sm:$0xff]
  %v152 = vld [vmem:[%s1 + $0x3e8] sm:$0xff]
  %v153 = vld [vmem:[%s1 + $0x3f0] sm:$0xff]
  %v154 = vld [vmem:[%s1 + $0x3f8] sm:$0xff]
  %v155 = vld [vmem:[%s3] sm:$0xff]
  %v157 = vlaneseq
  %v158 = vshrl.u32 %v157, 7
  %v159 = vsub.s32 0, %v158
  %v160 = vrot.slane %v155, %v159
  %v161 = vlaneseq
  %v162 = vshrl.u32 %v161, 7
  %v163 = vsub.s32 1, %v162
  %v164 = vrot.slane %v155, %v163
  %v165 = vlaneseq
  %v166 = vshrl.u32 %v165, 7
  %v167 = vsub.s32 2, %v166
  %v168 = vrot.slane %v155, %v167
  %v169 = vlaneseq
  %v170 = vshrl.u32 %v169, 7
  %v171 = vsub.s32 3, %v170
  %v172 = vrot.slane %v155, %v171
  %v173 = vlaneseq
  %v174 = vshrl.u32 %v173, 7
  %v175 = vsub.s32 4, %v174
  %v176 = vrot.slane %v155, %v175
  %v177 = vlaneseq
  %v178 = vshrl.u32 %v177, 7
  %v179 = vsub.s32 5, %v178
  %v180 = vrot.slane %v155, %v179
  %v181 = vlaneseq
  %v182 = vshrl.u32 %v181, 7
  %v183 = vsub.s32 6, %v182
  %v184 = vrot.slane %v155, %v183
  %v185 = vlaneseq
  %v186 = vshrl.u32 %v185, 7
  %v187 = vsub.s32 7, %v186
  %v188 = vrot.slane %v155, %v187
  %v199 = vunpack.c.l.b16 %v25
  %v200 = vunpack.c.h.b16 %v25
  %v201 = vunpack.c.l.b16 %v26
  %v202 = vunpack.c.h.b16 %v26
  %v203 = vpack.c.b16 %v201, %v199
  %v204 = vpack.c.b16 %v202, %v200
  %v335 = vunpack.c.l.b16 %v27
  %v336 = vunpack.c.h.b16 %v27
  %v337 = vunpack.c.l.b16 %v28
  %v338 = vunpack.c.h.b16 %v28
  %v339 = vunpack.c.l.b16 %v29
  %v340 = vunpack.c.h.b16 %v29
  %v341 = vunpack.c.l.b16 %v30
  %v342 = vunpack.c.h.b16 %v30
  %v343 = vunpack.c.l.b16 %v31
  %v344 = vunpack.c.h.b16 %v31
  %v345 = vunpack.c.l.b16 %v32
  %v346 = vunpack.c.h.b16 %v32
  %v347 = vunpack.c.l.b16 %v33
  %v348 = vunpack.c.h.b16 %v33
  %v349 = vunpack.c.l.b16 %v34
  %v350 = vunpack.c.h.b16 %v34
  %v351 = vunpack.c.l.b16 %v35
  %v352 = vunpack.c.h.b16 %v35
  %v353 = vunpack.c.l.b16 %v36
  %v354 = vunpack.c.h.b16 %v36
  %v355 = vunpack.c.l.b16 %v37
  %v356 = vunpack.c.h.b16 %v37
  %v357 = vunpack.c.l.b16 %v38
  %v358 = vunpack.c.h.b16 %v38
  %v359 = vunpack.c.l.b16 %v39
  %v360 = vunpack.c.h.b16 %v39
  %v361 = vunpack.c.l.b16 %v40
  %v362 = vunpack.c.h.b16 %v40
  %v363 = vunpack.c.l.b16 %v41
  %v364 = vunpack.c.h.b16 %v41
  %v365 = vunpack.c.l.b16 %v42
  %v366 = vunpack.c.h.b16 %v42
  %v367 = vunpack.c.l.b16 %v43
  %v368 = vunpack.c.h.b16 %v43
  %v369 = vunpack.c.l.b16 %v44
  %v370 = vunpack.c.h.b16 %v44
  %v371 = vunpack.c.l.b16 %v45
  %v372 = vunpack.c.h.b16 %v45
  %v373 = vunpack.c.l.b16 %v46
  %v374 = vunpack.c.h.b16 %v46
  %v375 = vunpack.c.l.b16 %v47
  %v376 = vunpack.c.h.b16 %v47
  %v377 = vunpack.c.l.b16 %v48
  %v378 = vunpack.c.h.b16 %v48
  %v379 = vunpack.c.l.b16 %v49
  %v380 = vunpack.c.h.b16 %v49
  %v381 = vunpack.c.l.b16 %v50
  %v382 = vunpack.c.h.b16 %v50
  %v383 = vunpack.c.l.b16 %v51
  %v384 = vunpack.c.h.b16 %v51
  %v385 = vunpack.c.l.b16 %v52
  %v386 = vunpack.c.h.b16 %v52
  %v387 = vunpack.c.l.b16 %v53
  %v388 = vunpack.c.h.b16 %v53
  %v389 = vunpack.c.l.b16 %v54
  %v390 = vunpack.c.h.b16 %v54
  %v391 = vunpack.c.l.b16 %v55
  %v392 = vunpack.c.h.b16 %v55
  %v393 = vunpack.c.l.b16 %v56
  %v394 = vunpack.c.h.b16 %v56
  %v395 = vunpack.c.l.b16 %v57
  %v396 = vunpack.c.h.b16 %v57
  %v397 = vunpack.c.l.b16 %v58
  %v398 = vunpack.c.h.b16 %v58
  %v399 = vunpack.c.l.b16 %v59
  %v400 = vunpack.c.h.b16 %v59
  %v401 = vunpack.c.l.b16 %v60
  %v402 = vunpack.c.h.b16 %v60
  %v403 = vunpack.c.l.b16 %v61
  %v404 = vunpack.c.h.b16 %v61
  %v405 = vunpack.c.l.b16 %v62
  %v406 = vunpack.c.h.b16 %v62
  %v407 = vunpack.c.l.b16 %v63
  %v408 = vunpack.c.h.b16 %v63
  %v409 = vunpack.c.l.b16 %v64
  %v410 = vunpack.c.h.b16 %v64
  %v411 = vunpack.c.l.b16 %v65
  %v412 = vunpack.c.h.b16 %v65
  %v413 = vunpack.c.l.b16 %v66
  %v414 = vunpack.c.h.b16 %v66
  %v415 = vunpack.c.l.b16 %v67
  %v416 = vunpack.c.h.b16 %v67
  %v417 = vunpack.c.l.b16 %v68
  %v418 = vunpack.c.h.b16 %v68
  %v419 = vunpack.c.l.b16 %v69
  %v420 = vunpack.c.h.b16 %v69
  %v421 = vunpack.c.l.b16 %v70
  %v422 = vunpack.c.h.b16 %v70
  %v423 = vunpack.c.l.b16 %v71
  %v424 = vunpack.c.h.b16 %v71
  %v425 = vunpack.c.l.b16 %v72
  %v426 = vunpack.c.h.b16 %v72
  %v427 = vunpack.c.l.b16 %v73
  %v428 = vunpack.c.h.b16 %v73
  %v429 = vunpack.c.l.b16 %v74
  %v430 = vunpack.c.h.b16 %v74
  %v431 = vunpack.c.l.b16 %v75
  %v432 = vunpack.c.h.b16 %v75
  %v433 = vunpack.c.l.b16 %v76
  %v434 = vunpack.c.h.b16 %v76
  %v435 = vunpack.c.l.b16 %v77
  %v436 = vunpack.c.h.b16 %v77
  %v437 = vunpack.c.l.b16 %v78
  %v438 = vunpack.c.h.b16 %v78
  %v439 = vunpack.c.l.b16 %v79
  %v440 = vunpack.c.h.b16 %v79
  %v441 = vunpack.c.l.b16 %v80
  %v442 = vunpack.c.h.b16 %v80
  %v443 = vunpack.c.l.b16 %v81
  %v444 = vunpack.c.h.b16 %v81
  %v445 = vunpack.c.l.b16 %v82
  %v446 = vunpack.c.h.b16 %v82
  %v447 = vunpack.c.l.b16 %v83
  %v448 = vunpack.c.h.b16 %v83
  %v449 = vunpack.c.l.b16 %v84
  %v450 = vunpack.c.h.b16 %v84
  %v451 = vunpack.c.l.b16 %v85
  %v452 = vunpack.c.h.b16 %v85
  %v453 = vunpack.c.l.b16 %v86
  %v454 = vunpack.c.h.b16 %v86
  %v455 = vunpack.c.l.b16 %v87
  %v456 = vunpack.c.h.b16 %v87
  %v457 = vunpack.c.l.b16 %v88
  %v458 = vunpack.c.h.b16 %v88
  %v459 = vunpack.c.l.b16 %v89
  %v460 = vunpack.c.h.b16 %v89
  %v461 = vunpack.c.l.b16 %v90
  %v462 = vunpack.c.h.b16 %v90
  %v463 = vunpack.c.l.b16 %v91
  %v464 = vunpack.c.h.b16 %v91
  %v465 = vunpack.c.l.b16 %v92
  %v466 = vunpack.c.h.b16 %v92
  %v467 = vunpack.c.l.b16 %v93
  %v468 = vunpack.c.h.b16 %v93
  %v469 = vunpack.c.l.b16 %v94
  %v470 = vunpack.c.h.b16 %v94
  %v471 = vunpack.c.l.b16 %v95
  %v472 = vunpack.c.h.b16 %v95
  %v473 = vunpack.c.l.b16 %v96
  %v474 = vunpack.c.h.b16 %v96
  %v475 = vunpack.c.l.b16 %v97
  %v476 = vunpack.c.h.b16 %v97
  %v477 = vunpack.c.l.b16 %v98
  %v478 = vunpack.c.h.b16 %v98
  %v479 = vunpack.c.l.b16 %v99
  %v480 = vunpack.c.h.b16 %v99
  %v481 = vunpack.c.l.b16 %v100
  %v482 = vunpack.c.h.b16 %v100
  %v483 = vunpack.c.l.b16 %v101
  %v484 = vunpack.c.h.b16 %v101
  %v485 = vunpack.c.l.b16 %v102
  %v486 = vunpack.c.h.b16 %v102
  %v487 = vunpack.c.l.b16 %v103
  %v488 = vunpack.c.h.b16 %v103
  %v489 = vunpack.c.l.b16 %v104
  %v490 = vunpack.c.h.b16 %v104
  %v491 = vunpack.c.l.b16 %v105
  %v492 = vunpack.c.h.b16 %v105
  %v493 = vunpack.c.l.b16 %v106
  %v494 = vunpack.c.h.b16 %v106
  %v495 = vunpack.c.l.b16 %v107
  %v496 = vunpack.c.h.b16 %v107
  %v497 = vunpack.c.l.b16 %v108
  %v498 = vunpack.c.h.b16 %v108
  %v499 = vunpack.c.l.b16 %v109
  %v500 = vunpack.c.h.b16 %v109
  %v501 = vunpack.c.l.b16 %v110
  %v502 = vunpack.c.h.b16 %v110
  %v503 = vunpack.c.l.b16 %v111
  %v504 = vunpack.c.h.b16 %v111
  %v505 = vunpack.c.l.b16 %v112
  %v506 = vunpack.c.h.b16 %v112
  %v507 = vunpack.c.l.b16 %v113
  %v508 = vunpack.c.h.b16 %v113
  %v509 = vunpack.c.l.b16 %v114
  %v510 = vunpack.c.h.b16 %v114
  %v511 = vunpack.c.l.b16 %v115
  %v512 = vunpack.c.h.b16 %v115
  %v513 = vunpack.c.l.b16 %v116
  %v514 = vunpack.c.h.b16 %v116
  %v515 = vunpack.c.l.b16 %v117
  %v516 = vunpack.c.h.b16 %v117
  %v517 = vunpack.c.l.b16 %v118
  %v518 = vunpack.c.h.b16 %v118
  %v519 = vunpack.c.l.b16 %v119
  %v520 = vunpack.c.h.b16 %v119
  %v521 = vunpack.c.l.b16 %v120
  %v522 = vunpack.c.h.b16 %v120
  %v523 = vunpack.c.l.b16 %v121
  %v524 = vunpack.c.h.b16 %v121
  %v525 = vunpack.c.l.b16 %v122
  %v526 = vunpack.c.h.b16 %v122
  %v527 = vunpack.c.l.b16 %v123
  %v528 = vunpack.c.h.b16 %v123
  %v529 = vunpack.c.l.b16 %v124
  %v530 = vunpack.c.h.b16 %v124
  %v531 = vunpack.c.l.b16 %v125
  %v532 = vunpack.c.h.b16 %v125
  %v533 = vunpack.c.l.b16 %v126
  %v534 = vunpack.c.h.b16 %v126
  %v535 = vunpack.c.l.b16 %v127
  %v536 = vunpack.c.h.b16 %v127
  %v537 = vunpack.c.l.b16 %v128
  %v538 = vunpack.c.h.b16 %v128
  %v539 = vunpack.c.l.b16 %v129
  %v540 = vunpack.c.h.b16 %v129
  %v541 = vunpack.c.l.b16 %v130
  %v542 = vunpack.c.h.b16 %v130
  %v543 = vunpack.c.l.b16 %v131
  %v544 = vunpack.c.h.b16 %v131
  %v545 = vunpack.c.l.b16 %v132
  %v546 = vunpack.c.h.b16 %v132
  %v547 = vunpack.c.l.b16 %v133
  %v548 = vunpack.c.h.b16 %v133
  %v549 = vunpack.c.l.b16 %v134
  %v550 = vunpack.c.h.b16 %v134
  %v551 = vunpack.c.l.b16 %v135
  %v552 = vunpack.c.h.b16 %v135
  %v553 = vunpack.c.l.b16 %v136
  %v554 = vunpack.c.h.b16 %v136
  %v555 = vunpack.c.l.b16 %v137
  %v556 = vunpack.c.h.b16 %v137
  %v557 = vunpack.c.l.b16 %v138
  %v558 = vunpack.c.h.b16 %v138
  %v559 = vunpack.c.l.b16 %v139
  %v560 = vunpack.c.h.b16 %v139
  %v561 = vunpack.c.l.b16 %v140
  %v562 = vunpack.c.h.b16 %v140
  %v563 = vunpack.c.l.b16 %v141
  %v564 = vunpack.c.h.b16 %v141
  %v565 = vunpack.c.l.b16 %v142
  %v566 = vunpack.c.h.b16 %v142
  %v567 = vunpack.c.l.b16 %v143
  %v568 = vunpack.c.h.b16 %v143
  %v569 = vunpack.c.l.b16 %v144
  %v570 = vunpack.c.h.b16 %v144
  %v571 = vunpack.c.l.b16 %v145
  %v572 = vunpack.c.h.b16 %v145
  %v573 = vunpack.c.l.b16 %v146
  %v574 = vunpack.c.h.b16 %v146
  %v575 = vunpack.c.l.b16 %v147
  %v576 = vunpack.c.h.b16 %v147
  %v577 = vunpack.c.l.b16 %v148
  %v578 = vunpack.c.h.b16 %v148
  %v579 = vunpack.c.l.b16 %v149
  %v580 = vunpack.c.h.b16 %v149
  %v581 = vunpack.c.l.b16 %v150
  %v582 = vunpack.c.h.b16 %v150
  %v583 = vunpack.c.l.b16 %v151
  %v584 = vunpack.c.h.b16 %v151
  %v585 = vunpack.c.l.b16 %v152
  %v586 = vunpack.c.h.b16 %v152
  %v587 = vunpack.c.l.b16 %v153
  %v588 = vunpack.c.h.b16 %v153
  %v589 = vunpack.c.l.b16 %v154
  %v590 = vunpack.c.h.b16 %v154
  %v591 = vpack.c.b16 %v343, %v335
  %v592 = vpack.c.b16 %v344, %v336
  %v593 = vpack.c.b16 %v345, %v337
  %v594 = vpack.c.b16 %v346, %v338
  %v595 = vpack.c.b16 %v347, %v339
  %v596 = vpack.c.b16 %v348, %v340
  %v597 = vpack.c.b16 %v349, %v341
  %v598 = vpack.c.b16 %v350, %v342
  %v599 = vpack.c.b16 %v359, %v351
  %v600 = vpack.c.b16 %v360, %v352
  %v601 = vpack.c.b16 %v361, %v353
  %v602 = vpack.c.b16 %v362, %v354
  %v603 = vpack.c.b16 %v363, %v355
  %v604 = vpack.c.b16 %v364, %v356
  %v605 = vpack.c.b16 %v365, %v357
  %v606 = vpack.c.b16 %v366, %v358
  %v607 = vpack.c.b16 %v375, %v367
  %v608 = vpack.c.b16 %v376, %v368
  %v609 = vpack.c.b16 %v377, %v369
  %v610 = vpack.c.b16 %v378, %v370
  %v611 = vpack.c.b16 %v379, %v371
  %v612 = vpack.c.b16 %v380, %v372
  %v613 = vpack.c.b16 %v381, %v373
  %v614 = vpack.c.b16 %v382, %v374
  %v615 = vpack.c.b16 %v391, %v383
  %v616 = vpack.c.b16 %v392, %v384
  %v617 = vpack.c.b16 %v393, %v385
  %v618 = vpack.c.b16 %v394, %v386
  %v619 = vpack.c.b16 %v395, %v387
  %v620 = vpack.c.b16 %v396, %v388
  %v621 = vpack.c.b16 %v397, %v389
  %v622 = vpack.c.b16 %v398, %v390
  %v623 = vpack.c.b16 %v407, %v399
  %v624 = vpack.c.b16 %v408, %v400
  %v625 = vpack.c.b16 %v409, %v401
  %v626 = vpack.c.b16 %v410, %v402
  %v627 = vpack.c.b16 %v411, %v403
  %v628 = vpack.c.b16 %v412, %v404
  %v629 = vpack.c.b16 %v413, %v405
  %v630 = vpack.c.b16 %v414, %v406
  %v631 = vpack.c.b16 %v423, %v415
  %v632 = vpack.c.b16 %v424, %v416
  %v633 = vpack.c.b16 %v425, %v417
  %v634 = vpack.c.b16 %v426, %v418
  %v635 = vpack.c.b16 %v427, %v419
  %v636 = vpack.c.b16 %v428, %v420
  %v637 = vpack.c.b16 %v429, %v421
  %v638 = vpack.c.b16 %v430, %v422
  %v639 = vpack.c.b16 %v439, %v431
  %v640 = vpack.c.b16 %v440, %v432
  %v641 = vpack.c.b16 %v441, %v433
  %v642 = vpack.c.b16 %v442, %v434
  %v643 = vpack.c.b16 %v443, %v435
  %v644 = vpack.c.b16 %v444, %v436
  %v645 = vpack.c.b16 %v445, %v437
  %v646 = vpack.c.b16 %v446, %v438
  %v647 = vpack.c.b16 %v455, %v447
  %v648 = vpack.c.b16 %v456, %v448
  %v649 = vpack.c.b16 %v457, %v449
  %v650 = vpack.c.b16 %v458, %v450
  %v651 = vpack.c.b16 %v459, %v451
  %v652 = vpack.c.b16 %v460, %v452
  %v653 = vpack.c.b16 %v461, %v453
  %v654 = vpack.c.b16 %v462, %v454
  %v655 = vpack.c.b16 %v471, %v463
  %v656 = vpack.c.b16 %v472, %v464
  %v657 = vpack.c.b16 %v473, %v465
  %v658 = vpack.c.b16 %v474, %v466
  %v659 = vpack.c.b16 %v475, %v467
  %v660 = vpack.c.b16 %v476, %v468
  %v661 = vpack.c.b16 %v477, %v469
  %v662 = vpack.c.b16 %v478, %v470
  %v663 = vpack.c.b16 %v487, %v479
  %v664 = vpack.c.b16 %v488, %v480
  %v665 = vpack.c.b16 %v489, %v481
  %v666 = vpack.c.b16 %v490, %v482
  %v667 = vpack.c.b16 %v491, %v483
  %v668 = vpack.c.b16 %v492, %v484
  %v669 = vpack.c.b16 %v493, %v485
  %v670 = vpack.c.b16 %v494, %v486
  %v671 = vpack.c.b16 %v503, %v495
  %v672 = vpack.c.b16 %v504, %v496
  %v673 = vpack.c.b16 %v505, %v497
  %v674 = vpack.c.b16 %v506, %v498
  %v675 = vpack.c.b16 %v507, %v499
  %v676 = vpack.c.b16 %v508, %v500
  %v677 = vpack.c.b16 %v509, %v501
  %v678 = vpack.c.b16 %v510, %v502
  %v679 = vpack.c.b16 %v519, %v511
  %v680 = vpack.c.b16 %v520, %v512
  %v681 = vpack.c.b16 %v521, %v513
  %v682 = vpack.c.b16 %v522, %v514
  %v683 = vpack.c.b16 %v523, %v515
  %v684 = vpack.c.b16 %v524, %v516
  %v685 = vpack.c.b16 %v525, %v517
  %v686 = vpack.c.b16 %v526, %v518
  %v687 = vpack.c.b16 %v535, %v527
  %v688 = vpack.c.b16 %v536, %v528
  %v689 = vpack.c.b16 %v537, %v529
  %v690 = vpack.c.b16 %v538, %v530
  %v691 = vpack.c.b16 %v539, %v531
  %v692 = vpack.c.b16 %v540, %v532
  %v693 = vpack.c.b16 %v541, %v533
  %v694 = vpack.c.b16 %v542, %v534
  %v695 = vpack.c.b16 %v551, %v543
  %v696 = vpack.c.b16 %v552, %v544
  %v697 = vpack.c.b16 %v553, %v545
  %v698 = vpack.c.b16 %v554, %v546
  %v699 = vpack.c.b16 %v555, %v547
  %v700 = vpack.c.b16 %v556, %v548
  %v701 = vpack.c.b16 %v557, %v549
  %v702 = vpack.c.b16 %v558, %v550
  %v703 = vpack.c.b16 %v567, %v559
  %v704 = vpack.c.b16 %v568, %v560
  %v705 = vpack.c.b16 %v569, %v561
  %v706 = vpack.c.b16 %v570, %v562
  %v707 = vpack.c.b16 %v571, %v563
  %v708 = vpack.c.b16 %v572, %v564
  %v709 = vpack.c.b16 %v573, %v565
  %v710 = vpack.c.b16 %v574, %v566
  %v711 = vpack.c.b16 %v583, %v575
  %v712 = vpack.c.b16 %v584, %v576
  %v713 = vpack.c.b16 %v585, %v577
  %v714 = vpack.c.b16 %v586, %v578
  %v715 = vpack.c.b16 %v587, %v579
  %v716 = vpack.c.b16 %v588, %v580
  %v717 = vpack.c.b16 %v589, %v581
  %v718 = vpack.c.b16 %v590, %v582
  %847 = vmatprep.subr.bf16.mxu0 %v592
  %848 = vmatpush1.bf16.msra.mxu0 %v591
  %849 = vmatprep.subr.bf16.mxu0 %v600
  %850 = vmatpush1.bf16.msra.mxu0 %v599
  %851 = vmatprep.subr.bf16.mxu0 %v608
  %852 = vmatpush1.bf16.msra.mxu0 %v607
  %853 = vmatprep.subr.bf16.mxu0 %v616
  %854 = vmatpush1.bf16.msra.mxu0 %v615
  %855 = vmatprep.subr.bf16.mxu0 %v624
  %856 = vmatpush1.bf16.msra.mxu0 %v623
  %857 = vmatprep.subr.bf16.mxu0 %v632
  %858 = vmatpush1.bf16.msra.mxu0 %v631
  %859 = vmatprep.subr.bf16.mxu0 %v640
  %860 = vmatpush1.bf16.msra.mxu0 %v639
  %861 = vmatprep.subr.bf16.mxu0 %v648
  %862 = vmatpush1.bf16.msra.mxu0 %v647
  %863 = vmatprep.subr.bf16.mxu0 %v656
  %864 = vmatpush1.bf16.msra.mxu0 %v655
  %865 = vmatprep.subr.bf16.mxu0 %v664
  %866 = vmatpush1.bf16.msra.mxu0 %v663
  %867 = vmatprep.subr.bf16.mxu0 %v672
  %868 = vmatpush1.bf16.msra.mxu0 %v671
  %869 = vmatprep.subr.bf16.mxu0 %v680
  %870 = vmatpush1.bf16.msra.mxu0 %v679
  %871 = vmatprep.subr.bf16.mxu0 %v688
  %872 = vmatpush1.bf16.msra.mxu0 %v687
  %873 = vmatprep.subr.bf16.mxu0 %v696
  %874 = vmatpush1.bf16.msra.mxu0 %v695
  %875 = vmatprep.subr.bf16.mxu0 %v704
  %876 = vmatpush1.bf16.msra.mxu0 %v703
  %877 = vmatprep.subr.bf16.mxu0 %v712
  %878 = vmatpush1.bf16.msra.mxu0 %v711
  %879 = vmatprep.mubr.bf16.mxu0 %v204
  %880 = vmatmul.mubr.bf16.gmra.mrb[0].mxu0 %v203
  %v881 = vpop.f32.mrb[0].mxu0
  %v882 = vadd.f32 %v160, %v881
  %v883 = vpop.f32.mrb[0].mxu0
  %v884 = vadd.f32 %v164, %v883
  %v885 = vpop.f32.mrb[0].mxu0
  %v886 = vadd.f32 %v160, %v885
  %v887 = vpop.f32.mrb[0].mxu0
  %v888 = vadd.f32 %v164, %v887
  %889 = vdwg.mxu0
  %890 = vmatprep.subr.bf16.mxu0 %v594
  %891 = vmatpush1.bf16.msra.mxu0 %v593
  %892 = vmatprep.subr.bf16.mxu0 %v602
  %893 = vmatpush1.bf16.msra.mxu0 %v601
  %894 = vmatprep.subr.bf16.mxu0 %v610
  %895 = vmatpush1.bf16.msra.mxu0 %v609
  %896 = vmatprep.subr.bf16.mxu0 %v618
  %897 = vmatpush1.bf16.msra.mxu0 %v617
  %898 = vmatprep.subr.bf16.mxu0 %v626
  %899 = vmatpush1.bf16.msra.mxu0 %v625
  %900 = vmatprep.subr.bf16.mxu0 %v634
  %901 = vmatpush1.bf16.msra.mxu0 %v633
  %902 = vmatprep.subr.bf16.mxu0 %v642
  %903 = vmatpush1.bf16.msra.mxu0 %v641
  %904 = vmatprep.subr.bf16.mxu0 %v650
  %905 = vmatpush1.bf16.msra.mxu0 %v649
  %906 = vmatprep.subr.bf16.mxu0 %v658
  %907 = vmatpush1.bf16.msra.mxu0 %v657
  %908 = vmatprep.subr.bf16.mxu0 %v666
  %909 = vmatpush1.bf16.msra.mxu0 %v665
  %910 = vmatprep.subr.bf16.mxu0 %v674
  %911 = vmatpush1.bf16.msra.mxu0 %v673
  %912 = vmatprep.subr.bf16.mxu0 %v682
  %913 = vmatpush1.bf16.msra.mxu0 %v681
  %914 = vmatprep.subr.bf16.mxu0 %v690
  %915 = vmatpush1.bf16.msra.mxu0 %v689
  %916 = vmatprep.subr.bf16.mxu0 %v698
  %917 = vmatpush1.bf16.msra.mxu0 %v697
  %918 = vmatprep.subr.bf16.mxu0 %v706
  %919 = vmatpush1.bf16.msra.mxu0 %v705
  %920 = vmatprep.subr.bf16.mxu0 %v714
  %921 = vmatpush1.bf16.msra.mxu0 %v713
  %922 = vmatprep.mubr.bf16.mxu0 %v204
  %923 = vmatmul.mubr.bf16.gmra.mrb[0].mxu0 %v203
  %v924 = vpop.f32.mrb[0].mxu0
  %v925 = vadd.f32 %v168, %v924
  %v926 = vpop.f32.mrb[0].mxu0
  %v927 = vadd.f32 %v172, %v926
  %v928 = vpop.f32.mrb[0].mxu0
  %v929 = vadd.f32 %v168, %v928
  %v930 = vpop.f32.mrb[0].mxu0
  %v931 = vadd.f32 %v172, %v930
  %932 = vdwg.mxu0
  %933 = vmatprep.subr.bf16.mxu0 %v596
  %934 = vmatpush1.bf16.msra.mxu0 %v595
  %935 = vmatprep.subr.bf16.mxu0 %v604
  %936 = vmatpush1.bf16.msra.mxu0 %v603
  %937 = vmatprep.subr.bf16.mxu0 %v612
  %938 = vmatpush1.bf16.msra.mxu0 %v611
  %939 = vmatprep.subr.bf16.mxu0 %v620
  %940 = vmatpush1.bf16.msra.mxu0 %v619
  %941 = vmatprep.subr.bf16.mxu0 %v628
  %942 = vmatpush1.bf16.msra.mxu0 %v627
  %943 = vmatprep.subr.bf16.mxu0 %v636
  %944 = vmatpush1.bf16.msra.mxu0 %v635
  %945 = vmatprep.subr.bf16.mxu0 %v644
  %946 = vmatpush1.bf16.msra.mxu0 %v643
  %947 = vmatprep.subr.bf16.mxu0 %v652
  %948 = vmatpush1.bf16.msra.mxu0 %v651
  %949 = vmatprep.subr.bf16.mxu0 %v660
  %950 = vmatpush1.bf16.msra.mxu0 %v659
  %951 = vmatprep.subr.bf16.mxu0 %v668
  %952 = vmatpush1.bf16.msra.mxu0 %v667
  %953 = vmatprep.subr.bf16.mxu0 %v676
  %954 = vmatpush1.bf16.msra.mxu0 %v675
  %955 = vmatprep.subr.bf16.mxu0 %v684
  %956 = vmatpush1.bf16.msra.mxu0 %v683
  %957 = vmatprep.subr.bf16.mxu0 %v692
  %958 = vmatpush1.bf16.msra.mxu0 %v691
  %959 = vmatprep.subr.bf16.mxu0 %v700
  %960 = vmatpush1.bf16.msra.mxu0 %v699
  %961 = vmatprep.subr.bf16.mxu0 %v708
  %962 = vmatpush1.bf16.msra.mxu0 %v707
  %963 = vmatprep.subr.bf16.mxu0 %v716
  %964 = vmatpush1.bf16.msra.mxu0 %v715
  %965 = vmatprep.mubr.bf16.mxu0 %v204
  %966 = vmatmul.mubr.bf16.gmra.mrb[0].mxu0 %v203
  %v967 = vpop.f32.mrb[0].mxu0
  %v968 = vadd.f32 %v176, %v967
  %v969 = vpop.f32.mrb[0].mxu0
  %v970 = vadd.f32 %v180, %v969
  %v971 = vpop.f32.mrb[0].mxu0
  %v972 = vadd.f32 %v176, %v971
  %v973 = vpop.f32.mrb[0].mxu0
  %v974 = vadd.f32 %v180, %v973
  %975 = vdwg.mxu0
  %976 = vmatprep.subr.bf16.mxu0 %v598
  %977 = vmatpush1.bf16.msra.mxu0 %v597
  %978 = vmatprep.subr.bf16.mxu0 %v606
  %979 = vmatpush1.bf16.msra.mxu0 %v605
  %980 = vmatprep.subr.bf16.mxu0 %v614
  %981 = vmatpush1.bf16.msra.mxu0 %v613
  %982 = vmatprep.subr.bf16.mxu0 %v622
  %983 = vmatpush1.bf16.msra.mxu0 %v621
  %984 = vmatprep.subr.bf16.mxu0 %v630
  %985 = vmatpush1.bf16.msra.mxu0 %v629
  %986 = vmatprep.subr.bf16.mxu0 %v638
  %987 = vmatpush1.bf16.msra.mxu0 %v637
  %988 = vmatprep.subr.bf16.mxu0 %v646
  %989 = vmatpush1.bf16.msra.mxu0 %v645
  %990 = vmatprep.subr.bf16.mxu0 %v654
  %991 = vmatpush1.bf16.msra.mxu0 %v653
  %992 = vmatprep.subr.bf16.mxu0 %v662
  %993 = vmatpush1.bf16.msra.mxu0 %v661
  %994 = vmatprep.subr.bf16.mxu0 %v670
  %995 = vmatpush1.bf16.msra.mxu0 %v669
  %996 = vmatprep.subr.bf16.mxu0 %v678
  %997 = vmatpush1.bf16.msra.mxu0 %v677
  %998 = vmatprep.subr.bf16.mxu0 %v686
  %999 = vmatpush1.bf16.msra.mxu0 %v685
  %1000 = vmatprep.subr.bf16.mxu0 %v694
  %1001 = vmatpush1.bf16.msra.mxu0 %v693
  %1002 = vmatprep.subr.bf16.mxu0 %v702
  %1003 = vmatpush1.bf16.msra.mxu0 %v701
  %1004 = vmatprep.subr.bf16.mxu0 %v710
  %1005 = vmatpush1.bf16.msra.mxu0 %v709
  %1006 = vmatprep.subr.bf16.mxu0 %v718
  %1007 = vmatpush1.bf16.msra.mxu0 %v717
  %1008 = vmatprep.mubr.bf16.mxu0 %v204
  %1009 = vmatmul.mubr.bf16.gmra.mrb[0].mxu0 %v203
  %v1010 = vpop.f32.mrb[0].mxu0
  %v1011 = vadd.f32 %v184, %v1010
  %v1012 = vpop.f32.mrb[0].mxu0
  %v1013 = vadd.f32 %v188, %v1012
  %v1014 = vpop.f32.mrb[0].mxu0
  %v1015 = vadd.f32 %v184, %v1014
  %v1016 = vpop.f32.mrb[0].mxu0
  %v1017 = vadd.f32 %v188, %v1016
  %1018 = vdwg.mxu0
  %v1027 = vcombine.low %v882, %v884
  %v1028 = vcombine.low %v925, %v927
  %v1030 = vunpack.c.l.s4 1983009808
  %v1031 = vunpack.c.0.s8 %v1030
  %v1032 = vlaneseq
  %v1033 = vshrl.u32 %v1032, 7
  %v1034 = vsub.s32 %v1031, %v1033
  %v1035 = vrot.slane %v1027, %v1034
  %v1037 = vunpack.c.l.s4 1983009808
  %v1038 = vunpack.c.0.s8 %v1037
  %v1039 = vlaneseq
  %v1040 = vshrl.u32 %v1039, 7
  %v1041 = vsub.s32 %v1038, %v1040
  %v1042 = vrot.slane %v1028, %v1041
  %v1043 = vcombine.low %v1035, %v1042
  %v1044 = vcombine.low %v968, %v970
  %v1045 = vcombine.low %v1011, %v1013
  %v1047 = vunpack.c.l.s4 1983009808
  %v1048 = vunpack.c.0.s8 %v1047
  %v1049 = vlaneseq
  %v1050 = vshrl.u32 %v1049, 7
  %v1051 = vsub.s32 %v1048, %v1050
  %v1052 = vrot.slane %v1044, %v1051
  %v1054 = vunpack.c.l.s4 1983009808
  %v1055 = vunpack.c.0.s8 %v1054
  %v1056 = vlaneseq
  %v1057 = vshrl.u32 %v1056, 7
  %v1058 = vsub.s32 %v1055, %v1057
  %v1059 = vrot.slane %v1045, %v1058
  %v1060 = vcombine.low %v1052, %v1059
  %1063 = vst [vmem:[#allocation2] sm:$0xff] %v1043
  %1064 = vst [vmem:[#allocation2 + $0x8] sm:$0xff] %v1060
  %v1065 = vcombine.high %v1035, %v1042
  %v1066 = vcombine.high %v1052, %v1059
  %s1069 = scalar_lea.vmem [#allocation2], 16
  %1070 = vst [vmem:[%s1069] sm:$0xff] %v1065
  %1071 = vst [vmem:[%s1069 + $0x8] sm:$0xff] %v1066
  %v1072 = vcombine.high %v882, %v884
  %v1073 = vcombine.high %v925, %v927
  %v1075 = vunpack.c.l.s4 1983009808
  %v1076 = vunpack.c.0.s8 %v1075
  %v1077 = vlaneseq
  %v1078 = vshrl.u32 %v1077, 7
  %v1079 = vsub.s32 %v1076, %v1078
  %v1080 = vrot.slane %v1072, %v1079
  %v1082 = vunpack.c.l.s4 1983009808
  %v1083 = vunpack.c.0.s8 %v1082
  %v1084 = vlaneseq
  %v1085 = vshrl.u32 %v1084, 7
  %v1086 = vsub.s32 %v1083, %v1085
  %v1087 = vrot.slane %v1073, %v1086
  %v1088 = vcombine.low %v1080, %v1087
  %v1089 = vcombine.high %v968, %v970
  %v1090 = vcombine.high %v1011, %v1013
  %v1092 = vunpack.c.l.s4 1983009808
  %v1093 = vunpack.c.0.s8 %v1092
  %v1094 = vlaneseq
  %v1095 = vshrl.u32 %v1094, 7
  %v1096 = vsub.s32 %v1093, %v1095
  %v1097 = vrot.slane %v1089, %v1096
  %v1099 = vunpack.c.l.s4 1983009808
  %v1100 = vunpack.c.0.s8 %v1099
  %v1101 = vlaneseq
  %v1102 = vshrl.u32 %v1101, 7
  %v1103 = vsub.s32 %v1100, %v1102
  %v1104 = vrot.slane %v1090, %v1103
  %v1105 = vcombine.low %v1097, %v1104
  %s1108 = scalar_lea.vmem [#allocation2], 32
  %1109 = vst [vmem:[%s1108] sm:$0xff] %v1088
  %1110 = vst [vmem:[%s1108 + $0x8] sm:$0xff] %v1105
  %v1111 = vcombine.high %v1080, %v1087
  %v1112 = vcombine.high %v1097, %v1104
  %s1115 = scalar_lea.vmem [#allocation2], 48
  %1116 = vst [vmem:[%s1115] sm:$0xff] %v1111
  %1117 = vst [vmem:[%s1115 + $0x8] sm:$0xff] %v1112
  %v1126 = vcombine.low %v886, %v888
  %v1127 = vcombine.low %v929, %v931
  %v1129 = vunpack.c.l.s4 1983009808
  %v1130 = vunpack.c.0.s8 %v1129
  %v1131 = vlaneseq
  %v1132 = vshrl.u32 %v1131, 7
  %v1133 = vsub.s32 %v1130, %v1132
  %v1134 = vrot.slane %v1126, %v1133
  %v1136 = vunpack.c.l.s4 1983009808
  %v1137 = vunpack.c.0.s8 %v1136
  %v1138 = vlaneseq
  %v1139 = vshrl.u32 %v1138, 7
  %v1140 = vsub.s32 %v1137, %v1139
  %v1141 = vrot.slane %v1127, %v1140
  %v1142 = vcombine.low %v1134, %v1141
  %v1143 = vcombine.low %v972, %v974
  %v1144 = vcombine.low %v1015, %v1017
  %v1146 = vunpack.c.l.s4 1983009808
  %v1147 = vunpack.c.0.s8 %v1146
  %v1148 = vlaneseq
  %v1149 = vshrl.u32 %v1148, 7
  %v1150 = vsub.s32 %v1147, %v1149
  %v1151 = vrot.slane %v1143, %v1150
  %v1153 = vunpack.c.l.s4 1983009808
  %v1154 = vunpack.c.0.s8 %v1153
  %v1155 = vlaneseq
  %v1156 = vshrl.u32 %v1155, 7
  %v1157 = vsub.s32 %v1154, %v1156
  %v1158 = vrot.slane %v1144, %v1157
  %v1159 = vcombine.low %v1151, %v1158
  %s1162 = scalar_lea.vmem [#allocation2], 64
  %1163 = vst [vmem:[%s1162] sm:$0xff] %v1142
  %1164 = vst [vmem:[%s1162 + $0x8] sm:$0xff] %v1159
  %v1165 = vcombine.high %v1134, %v1141
  %v1166 = vcombine.high %v1151, %v1158
  %s1169 = scalar_lea.vmem [#allocation2], 80
  %1170 = vst [vmem:[%s1169] sm:$0xff] %v1165
  %1171 = vst [vmem:[%s1169 + $0x8] sm:$0xff] %v1166
  %v1172 = vcombine.high %v886, %v888
  %v1173 = vcombine.high %v929, %v931
  %v1175 = vunpack.c.l.s4 1983009808
  %v1176 = vunpack.c.0.s8 %v1175
  %v1177 = vlaneseq
  %v1178 = vshrl.u32 %v1177, 7
  %v1179 = vsub.s32 %v1176, %v1178
  %v1180 = vrot.slane %v1172, %v1179
  %v1182 = vunpack.c.l.s4 1983009808
  %v1183 = vunpack.c.0.s8 %v1182
  %v1184 = vlaneseq
  %v1185 = vshrl.u32 %v1184, 7
  %v1186 = vsub.s32 %v1183, %v1185
  %v1187 = vrot.slane %v1173, %v1186
  %v1188 = vcombine.low %v1180, %v1187
  %v1189 = vcombine.high %v972, %v974
  %v1190 = vcombine.high %v1015, %v1017
  %v1192 = vunpack.c.l.s4 1983009808
  %v1193 = vunpack.c.0.s8 %v1192
  %v1194 = vlaneseq
  %v1195 = vshrl.u32 %v1194, 7
  %v1196 = vsub.s32 %v1193, %v1195
  %v1197 = vrot.slane %v1189, %v1196
  %v1199 = vunpack.c.l.s4 1983009808
  %v1200 = vunpack.c.0.s8 %v1199
  %v1201 = vlaneseq
  %v1202 = vshrl.u32 %v1201, 7
  %v1203 = vsub.s32 %v1200, %v1202
  %v1204 = vrot.slane %v1190, %v1203
  %v1205 = vcombine.low %v1197, %v1204
  %s1208 = scalar_lea.vmem [#allocation2], 96
  %1209 = vst [vmem:[%s1208] sm:$0xff] %v1188
  %1210 = vst [vmem:[%s1208 + $0x8] sm:$0xff] %v1205
  %v1211 = vcombine.high %v1180, %v1187
  %v1212 = vcombine.high %v1197, %v1204
  %s1215 = scalar_lea.vmem [#allocation2], 112
  %1216 = vst [vmem:[%s1215] sm:$0xff] %v1211
  %1217 = vst [vmem:[%s1215 + $0x8] sm:$0xff] %v1212
  %v1218 = vld [vmem:[%s2] sm:$0xff]
  %v1219 = vld [vmem:[%s2 + $0x8] sm:$0xff]
  %v1220 = vld [vmem:[%s2 + $0x10] sm:$0xff]
  %v1221 = vld [vmem:[%s2 + $0x18] sm:$0xff]
  %v1222 = vld [vmem:[%s2 + $0x20] sm:$0xff]
  %v1223 = vld [vmem:[%s2 + $0x28] sm:$0xff]
  %v1224 = vld [vmem:[%s2 + $0x30] sm:$0xff]
  %v1225 = vld [vmem:[%s2 + $0x38] sm:$0xff]
  %v1226 = vld [vmem:[%s2 + $0x40] sm:$0xff]
  %v1227 = vld [vmem:[%s2 + $0x48] sm:$0xff]
  %v1228 = vld [vmem:[%s2 + $0x50] sm:$0xff]
  %v1229 = vld [vmem:[%s2 + $0x58] sm:$0xff]
  %v1230 = vld [vmem:[%s2 + $0x60] sm:$0xff]
  %v1231 = vld [vmem:[%s2 + $0x68] sm:$0xff]
  %v1232 = vld [vmem:[%s2 + $0x70] sm:$0xff]
  %v1233 = vld [vmem:[%s2 + $0x78] sm:$0xff]
  %v1234 = vld [vmem:[%s2 + $0x80] sm:$0xff]
  %v1235 = vld [vmem:[%s2 + $0x88] sm:$0xff]
  %v1236 = vld [vmem:[%s2 + $0x90] sm:$0xff]
  %v1237 = vld [vmem:[%s2 + $0x98] sm:$0xff]
  %v1238 = vld [vmem:[%s2 + $0xa0] sm:$0xff]
  %v1239 = vld [vmem:[%s2 + $0xa8] sm:$0xff]
  %v1240 = vld [vmem:[%s2 + $0xb0] sm:$0xff]
  %v1241 = vld [vmem:[%s2 + $0xb8] sm:$0xff]
  %v1242 = vld [vmem:[%s2 + $0xc0] sm:$0xff]
  %v1243 = vld [vmem:[%s2 + $0xc8] sm:$0xff]
  %v1244 = vld [vmem:[%s2 + $0xd0] sm:$0xff]
  %v1245 = vld [vmem:[%s2 + $0xd8] sm:$0xff]
  %v1246 = vld [vmem:[%s2 + $0xe0] sm:$0xff]
  %v1247 = vld [vmem:[%s2 + $0xe8] sm:$0xff]
  %v1248 = vld [vmem:[%s2 + $0xf0] sm:$0xff]
  %v1249 = vld [vmem:[%s2 + $0xf8] sm:$0xff]
  %v1250 = vld [vmem:[%s2 + $0x100] sm:$0xff]
  %v1251 = vld [vmem:[%s2 + $0x108] sm:$0xff]
  %v1252 = vld [vmem:[%s2 + $0x110] sm:$0xff]
  %v1253 = vld [vmem:[%s2 + $0x118] sm:$0xff]
  %v1254 = vld [vmem:[%s2 + $0x120] sm:$0xff]
  %v1255 = vld [vmem:[%s2 + $0x128] sm:$0xff]
  %v1256 = vld [vmem:[%s2 + $0x130] sm:$0xff]
  %v1257 = vld [vmem:[%s2 + $0x138] sm:$0xff]
  %v1258 = vld [vmem:[%s2 + $0x140] sm:$0xff]
  %v1259 = vld [vmem:[%s2 + $0x148] sm:$0xff]
  %v1260 = vld [vmem:[%s2 + $0x150] sm:$0xff]
  %v1261 = vld [vmem:[%s2 + $0x158] sm:$0xff]
  %v1262 = vld [vmem:[%s2 + $0x160] sm:$0xff]
  %v1263 = vld [vmem:[%s2 + $0x168] sm:$0xff]
  %v1264 = vld [vmem:[%s2 + $0x170] sm:$0xff]
  %v1265 = vld [vmem:[%s2 + $0x178] sm:$0xff]
  %v1266 = vld [vmem:[%s2 + $0x180] sm:$0xff]
  %v1267 = vld [vmem:[%s2 + $0x188] sm:$0xff]
  %v1268 = vld [vmem:[%s2 + $0x190] sm:$0xff]
  %v1269 = vld [vmem:[%s2 + $0x198] sm:$0xff]
  %v1270 = vld [vmem:[%s2 + $0x1a0] sm:$0xff]
  %v1271 = vld [vmem:[%s2 + $0x1a8] sm:$0xff]
  %v1272 = vld [vmem:[%s2 + $0x1b0] sm:$0xff]
  %v1273 = vld [vmem:[%s2 + $0x1b8] sm:$0xff]
  %v1274 = vld [vmem:[%s2 + $0x1c0] sm:$0xff]
  %v1275 = vld [vmem:[%s2 + $0x1c8] sm:$0xff]
  %v1276 = vld [vmem:[%s2 + $0x1d0] sm:$0xff]
  %v1277 = vld [vmem:[%s2 + $0x1d8] sm:$0xff]
  %v1278 = vld [vmem:[%s2 + $0x1e0] sm:$0xff]
  %v1279 = vld [vmem:[%s2 + $0x1e8] sm:$0xff]
  %v1280 = vld [vmem:[%s2 + $0x1f0] sm:$0xff]
  %v1281 = vld [vmem:[%s2 + $0x1f8] sm:$0xff]
  %v1282 = vld [vmem:[%s2 + $0x200] sm:$0xff]
  %v1283 = vld [vmem:[%s2 + $0x208] sm:$0xff]
  %v1284 = vld [vmem:[%s2 + $0x210] sm:$0xff]
  %v1285 = vld [vmem:[%s2 + $0x218] sm:$0xff]
  %v1286 = vld [vmem:[%s2 + $0x220] sm:$0xff]
  %v1287 = vld [vmem:[%s2 + $0x228] sm:$0xff]
  %v1288 = vld [vmem:[%s2 + $0x230] sm:$0xff]
  %v1289 = vld [vmem:[%s2 + $0x238] sm:$0xff]
  %v1290 = vld [vmem:[%s2 + $0x240] sm:$0xff]
  %v1291 = vld [vmem:[%s2 + $0x248] sm:$0xff]
  %v1292 = vld [vmem:[%s2 + $0x250] sm:$0xff]
  %v1293 = vld [vmem:[%s2 + $0x258] sm:$0xff]
  %v1294 = vld [vmem:[%s2 + $0x260] sm:$0xff]
  %v1295 = vld [vmem:[%s2 + $0x268] sm:$0xff]
  %v1296 = vld [vmem:[%s2 + $0x270] sm:$0xff]
  %v1297 = vld [vmem:[%s2 + $0x278] sm:$0xff]
  %v1298 = vld [vmem:[%s2 + $0x280] sm:$0xff]
  %v1299 = vld [vmem:[%s2 + $0x288] sm:$0xff]
  %v1300 = vld [vmem:[%s2 + $0x290] sm:$0xff]
  %v1301 = vld [vmem:[%s2 + $0x298] sm:$0xff]
  %v1302 = vld [vmem:[%s2 + $0x2a0] sm:$0xff]
  %v1303 = vld [vmem:[%s2 + $0x2a8] sm:$0xff]
  %v1304 = vld [vmem:[%s2 + $0x2b0] sm:$0xff]
  %v1305 = vld [vmem:[%s2 + $0x2b8] sm:$0xff]
  %v1306 = vld [vmem:[%s2 + $0x2c0] sm:$0xff]
  %v1307 = vld [vmem:[%s2 + $0x2c8] sm:$0xff]
  %v1308 = vld [vmem:[%s2 + $0x2d0] sm:$0xff]
  %v1309 = vld [vmem:[%s2 + $0x2d8] sm:$0xff]
  %v1310 = vld [vmem:[%s2 + $0x2e0] sm:$0xff]
  %v1311 = vld [vmem:[%s2 + $0x2e8] sm:$0xff]
  %v1312 = vld [vmem:[%s2 + $0x2f0] sm:$0xff]
  %v1313 = vld [vmem:[%s2 + $0x2f8] sm:$0xff]
  %v1314 = vld [vmem:[%s2 + $0x300] sm:$0xff]
  %v1315 = vld [vmem:[%s2 + $0x308] sm:$0xff]
  %v1316 = vld [vmem:[%s2 + $0x310] sm:$0xff]
  %v1317 = vld [vmem:[%s2 + $0x318] sm:$0xff]
  %v1318 = vld [vmem:[%s2 + $0x320] sm:$0xff]
  %v1319 = vld [vmem:[%s2 + $0x328] sm:$0xff]
  %v1320 = vld [vmem:[%s2 + $0x330] sm:$0xff]
  %v1321 = vld [vmem:[%s2 + $0x338] sm:$0xff]
  %v1322 = vld [vmem:[%s2 + $0x340] sm:$0xff]
  %v1323 = vld [vmem:[%s2 + $0x348] sm:$0xff]
  %v1324 = vld [vmem:[%s2 + $0x350] sm:$0xff]
  %v1325 = vld [vmem:[%s2 + $0x358] sm:$0xff]
  %v1326 = vld [vmem:[%s2 + $0x360] sm:$0xff]
  %v1327 = vld [vmem:[%s2 + $0x368] sm:$0xff]
  %v1328 = vld [vmem:[%s2 + $0x370] sm:$0xff]
  %v1329 = vld [vmem:[%s2 + $0x378] sm:$0xff]
  %v1330 = vld [vmem:[%s2 + $0x380] sm:$0xff]
  %v1331 = vld [vmem:[%s2 + $0x388] sm:$0xff]
  %v1332 = vld [vmem:[%s2 + $0x390] sm:$0xff]
  %v1333 = vld [vmem:[%s2 + $0x398] sm:$0xff]
  %v1334 = vld [vmem:[%s2 + $0x3a0] sm:$0xff]
  %v1335 = vld [vmem:[%s2 + $0x3a8] sm:$0xff]
  %v1336 = vld [vmem:[%s2 + $0x3b0] sm:$0xff]
  %v1337 = vld [vmem:[%s2 + $0x3b8] sm:$0xff]
  %v1338 = vld [vmem:[%s2 + $0x3c0] sm:$0xff]
  %v1339 = vld [vmem:[%s2 + $0x3c8] sm:$0xff]
  %v1340 = vld [vmem:[%s2 + $0x3d0] sm:$0xff]
  %v1341 = vld [vmem:[%s2 + $0x3d8] sm:$0xff]
  %v1342 = vld [vmem:[%s2 + $0x3e0] sm:$0xff]
  %v1343 = vld [vmem:[%s2 + $0x3e8] sm:$0xff]
  %v1344 = vld [vmem:[%s2 + $0x3f0] sm:$0xff]
  %v1345 = vld [vmem:[%s2 + $0x3f8] sm:$0xff]
  %v1346 = vld [vmem:[%s4] sm:$0xf]
  %v1347 = vld [vmem:[%s5] sm:$0xf]
  %v1350 = vunpack.c.l.s4 1983009808
  %v1351 = vunpack.c.0.s8 %v1350
  %v1352 = vlaneseq
  %v1353 = vshrl.u32 %v1352, 7
  %v1354 = vsub.s32 %v1351, %v1353
  %v1355 = vrot.slane %v1346, %v1354
  %v1356 = vcombine.high %v1355, %v1355
  %v1361 = vunpack.c.l.s4 1983009808
  %v1362 = vunpack.c.0.s8 %v1361
  %v1363 = vlaneseq
  %v1364 = vshrl.u32 %v1363, 7
  %v1365 = vsub.s32 %v1362, %v1364
  %v1366 = vrot.slane %v1347, %v1365
  %v1367 = vcombine.high %v1366, %v1366
  loop: start=0, step=1, limit=8
  $region26: #{bilstm_crf_forward.4} parent=0 // loop_pre_header
    _
  $region27: #{bilstm_crf_forward.4} parent=0 // loop_header
    %s1371 = sphi 0, %s1375
    %p1372 = scmp.ge.s32.totalorder %s1371, 8
    %v1376 = vphi %v1355, %v2260
    %v1377 = vphi %v1356, %v2280
    %v1378 = vphi %v1366, %v2256
    %v1379 = vphi %v1367, %v2276
  $region28: #{bilstm_crf_forward.4} parent=0 // loop_header_branch
    %1374 = sbr.rel (%p1372) target = $region32
  $region29: #{bilstm_crf_forward.4} parent=0 // loop_body
    %s1380 = ssub.s32 7, %s1371
    %v1381 = vpack.c.bf16 %v1376, %v1376
    %v1382 = vpack.c.bf16 %v1377, %v1377
    %v1511 = vunpack.c.l.b16 %v1218
    %v1512 = vunpack.c.h.b16 %v1218
    %v1513 = vunpack.c.l.b16 %v1219
    %v1514 = vunpack.c.h.b16 %v1219
    %v1515 = vunpack.c.l.b16 %v1220
    %v1516 = vunpack.c.h.b16 %v1220
    %v1517 = vunpack.c.l.b16 %v1221
    %v1518 = vunpack.c.h.b16 %v1221
    %v1519 = vunpack.c.l.b16 %v1222
    %v1520 = vunpack.c.h.b16 %v1222
    %v1521 = vunpack.c.l.b16 %v1223
    %v1522 = vunpack.c.h.b16 %v1223
    %v1523 = vunpack.c.l.b16 %v1224
    %v1524 = vunpack.c.h.b16 %v1224
    %v1525 = vunpack.c.l.b16 %v1225
    %v1526 = vunpack.c.h.b16 %v1225
    %v1527 = vunpack.c.l.b16 %v1226
    %v1528 = vunpack.c.h.b16 %v1226
    %v1529 = vunpack.c.l.b16 %v1227
    %v1530 = vunpack.c.h.b16 %v1227
    %v1531 = vunpack.c.l.b16 %v1228
    %v1532 = vunpack.c.h.b16 %v1228
    %v1533 = vunpack.c.l.b16 %v1229
    %v1534 = vunpack.c.h.b16 %v1229
    %v1535 = vunpack.c.l.b16 %v1230
    %v1536 = vunpack.c.h.b16 %v1230
    %v1537 = vunpack.c.l.b16 %v1231
    %v1538 = vunpack.c.h.b16 %v1231
    %v1539 = vunpack.c.l.b16 %v1232
    %v1540 = vunpack.c.h.b16 %v1232
    %v1541 = vunpack.c.l.b16 %v1233
    %v1542 = vunpack.c.h.b16 %v1233
    %v1543 = vunpack.c.l.b16 %v1234
    %v1544 = vunpack.c.h.b16 %v1234
    %v1545 = vunpack.c.l.b16 %v1235
    %v1546 = vunpack.c.h.b16 %v1235
    %v1547 = vunpack.c.l.b16 %v1236
    %v1548 = vunpack.c.h.b16 %v1236
    %v1549 = vunpack.c.l.b16 %v1237
    %v1550 = vunpack.c.h.b16 %v1237
    %v1551 = vunpack.c.l.b16 %v1238
    %v1552 = vunpack.c.h.b16 %v1238
    %v1553 = vunpack.c.l.b16 %v1239
    %v1554 = vunpack.c.h.b16 %v1239
    %v1555 = vunpack.c.l.b16 %v1240
    %v1556 = vunpack.c.h.b16 %v1240
    %v1557 = vunpack.c.l.b16 %v1241
    %v1558 = vunpack.c.h.b16 %v1241
    %v1559 = vunpack.c.l.b16 %v1242
    %v1560 = vunpack.c.h.b16 %v1242
    %v1561 = vunpack.c.l.b16 %v1243
    %v1562 = vunpack.c.h.b16 %v1243
    %v1563 = vunpack.c.l.b16 %v1244
    %v1564 = vunpack.c.h.b16 %v1244
    %v1565 = vunpack.c.l.b16 %v1245
    %v1566 = vunpack.c.h.b16 %v1245
    %v1567 = vunpack.c.l.b16 %v1246
    %v1568 = vunpack.c.h.b16 %v1246
    %v1569 = vunpack.c.l.b16 %v1247
    %v1570 = vunpack.c.h.b16 %v1247
    %v1571 = vunpack.c.l.b16 %v1248
    %v1572 = vunpack.c.h.b16 %v1248
    %v1573 = vunpack.c.l.b16 %v1249
    %v1574 = vunpack.c.h.b16 %v1249
    %v1575 = vunpack.c.l.b16 %v1250
    %v1576 = vunpack.c.h.b16 %v1250
    %v1577 = vunpack.c.l.b16 %v1251
    %v1578 = vunpack.c.h.b16 %v1251
    %v1579 = vunpack.c.l.b16 %v1252
    %v1580 = vunpack.c.h.b16 %v1252
    %v1581 = vunpack.c.l.b16 %v1253
    %v1582 = vunpack.c.h.b16 %v1253
    %v1583 = vunpack.c.l.b16 %v1254
    %v1584 = vunpack.c.h.b16 %v1254
    %v1585 = vunpack.c.l.b16 %v1255
    %v1586 = vunpack.c.h.b16 %v1255
    %v1587 = vunpack.c.l.b16 %v1256
    %v1588 = vunpack.c.h.b16 %v1256
    %v1589 = vunpack.c.l.b16 %v1257
    %v1590 = vunpack.c.h.b16 %v1257
    %v1591 = vunpack.c.l.b16 %v1258
    %v1592 = vunpack.c.h.b16 %v1258
    %v1593 = vunpack.c.l.b16 %v1259
    %v1594 = vunpack.c.h.b16 %v1259
    %v1595 = vunpack.c.l.b16 %v1260
    %v1596 = vunpack.c.h.b16 %v1260
    %v1597 = vunpack.c.l.b16 %v1261
    %v1598 = vunpack.c.h.b16 %v1261
    %v1599 = vunpack.c.l.b16 %v1262
    %v1600 = vunpack.c.h.b16 %v1262
    %v1601 = vunpack.c.l.b16 %v1263
    %v1602 = vunpack.c.h.b16 %v1263
    %v1603 = vunpack.c.l.b16 %v1264
    %v1604 = vunpack.c.h.b16 %v1264
    %v1605 = vunpack.c.l.b16 %v1265
    %v1606 = vunpack.c.h.b16 %v1265
    %v1607 = vunpack.c.l.b16 %v1266
    %v1608 = vunpack.c.h.b16 %v1266
    %v1609 = vunpack.c.l.b16 %v1267
    %v1610 = vunpack.c.h.b16 %v1267
    %v1611 = vunpack.c.l.b16 %v1268
    %v1612 = vunpack.c.h.b16 %v1268
    %v1613 = vunpack.c.l.b16 %v1269
    %v1614 = vunpack.c.h.b16 %v1269
    %v1615 = vunpack.c.l.b16 %v1270
    %v1616 = vunpack.c.h.b16 %v1270
    %v1617 = vunpack.c.l.b16 %v1271
    %v1618 = vunpack.c.h.b16 %v1271
    %v1619 = vunpack.c.l.b16 %v1272
    %v1620 = vunpack.c.h.b16 %v1272
    %v1621 = vunpack.c.l.b16 %v1273
    %v1622 = vunpack.c.h.b16 %v1273
    %v1623 = vunpack.c.l.b16 %v1274
    %v1624 = vunpack.c.h.b16 %v1274
    %v1625 = vunpack.c.l.b16 %v1275
    %v1626 = vunpack.c.h.b16 %v1275
    %v1627 = vunpack.c.l.b16 %v1276
    %v1628 = vunpack.c.h.b16 %v1276
    %v1629 = vunpack.c.l.b16 %v1277
    %v1630 = vunpack.c.h.b16 %v1277
    %v1631 = vunpack.c.l.b16 %v1278
    %v1632 = vunpack.c.h.b16 %v1278
    %v1633 = vunpack.c.l.b16 %v1279
    %v1634 = vunpack.c.h.b16 %v1279
    %v1635 = vunpack.c.l.b16 %v1280
    %v1636 = vunpack.c.h.b16 %v1280
    %v1637 = vunpack.c.l.b16 %v1281
    %v1638 = vunpack.c.h.b16 %v1281
    %v1639 = vunpack.c.l.b16 %v1282
    %v1640 = vunpack.c.h.b16 %v1282
    %v1641 = vunpack.c.l.b16 %v1283
    %v1642 = vunpack.c.h.b16 %v1283
    %v1643 = vunpack.c.l.b16 %v1284
    %v1644 = vunpack.c.h.b16 %v1284
    %v1645 = vunpack.c.l.b16 %v1285
    %v1646 = vunpack.c.h.b16 %v1285
    %v1647 = vunpack.c.l.b16 %v1286
    %v1648 = vunpack.c.h.b16 %v1286
    %v1649 = vunpack.c.l.b16 %v1287
    %v1650 = vunpack.c.h.b16 %v1287
    %v1651 = vunpack.c.l.b16 %v1288
    %v1652 = vunpack.c.h.b16 %v1288
    %v1653 = vunpack.c.l.b16 %v1289
    %v1654 = vunpack.c.h.b16 %v1289
    %v1655 = vunpack.c.l.b16 %v1290
    %v1656 = vunpack.c.h.b16 %v1290
    %v1657 = vunpack.c.l.b16 %v1291
    %v1658 = vunpack.c.h.b16 %v1291
    %v1659 = vunpack.c.l.b16 %v1292
    %v1660 = vunpack.c.h.b16 %v1292
    %v1661 = vunpack.c.l.b16 %v1293
    %v1662 = vunpack.c.h.b16 %v1293
    %v1663 = vunpack.c.l.b16 %v1294
    %v1664 = vunpack.c.h.b16 %v1294
    %v1665 = vunpack.c.l.b16 %v1295
    %v1666 = vunpack.c.h.b16 %v1295
    %v1667 = vunpack.c.l.b16 %v1296
    %v1668 = vunpack.c.h.b16 %v1296
    %v1669 = vunpack.c.l.b16 %v1297
    %v1670 = vunpack.c.h.b16 %v1297
    %v1671 = vunpack.c.l.b16 %v1298
    %v1672 = vunpack.c.h.b16 %v1298
    %v1673 = vunpack.c.l.b16 %v1299
    %v1674 = vunpack.c.h.b16 %v1299
    %v1675 = vunpack.c.l.b16 %v1300
    %v1676 = vunpack.c.h.b16 %v1300
    %v1677 = vunpack.c.l.b16 %v1301
    %v1678 = vunpack.c.h.b16 %v1301
    %v1679 = vunpack.c.l.b16 %v1302
    %v1680 = vunpack.c.h.b16 %v1302
    %v1681 = vunpack.c.l.b16 %v1303
    %v1682 = vunpack.c.h.b16 %v1303
    %v1683 = vunpack.c.l.b16 %v1304
    %v1684 = vunpack.c.h.b16 %v1304
    %v1685 = vunpack.c.l.b16 %v1305
    %v1686 = vunpack.c.h.b16 %v1305
    %v1687 = vunpack.c.l.b16 %v1306
    %v1688 = vunpack.c.h.b16 %v1306
    %v1689 = vunpack.c.l.b16 %v1307
    %v1690 = vunpack.c.h.b16 %v1307
    %v1691 = vunpack.c.l.b16 %v1308
    %v1692 = vunpack.c.h.b16 %v1308
    %v1693 = vunpack.c.l.b16 %v1309
    %v1694 = vunpack.c.h.b16 %v1309
    %v1695 = vunpack.c.l.b16 %v1310
    %v1696 = vunpack.c.h.b16 %v1310
    %v1697 = vunpack.c.l.b16 %v1311
    %v1698 = vunpack.c.h.b16 %v1311
    %v1699 = vunpack.c.l.b16 %v1312
    %v1700 = vunpack.c.h.b16 %v1312
    %v1701 = vunpack.c.l.b16 %v1313
    %v1702 = vunpack.c.h.b16 %v1313
    %v1703 = vunpack.c.l.b16 %v1314
    %v1704 = vunpack.c.h.b16 %v1314
    %v1705 = vunpack.c.l.b16 %v1315
    %v1706 = vunpack.c.h.b16 %v1315
    %v1707 = vunpack.c.l.b16 %v1316
    %v1708 = vunpack.c.h.b16 %v1316
    %v1709 = vunpack.c.l.b16 %v1317
    %v1710 = vunpack.c.h.b16 %v1317
    %v1711 = vunpack.c.l.b16 %v1318
    %v1712 = vunpack.c.h.b16 %v1318
    %v1713 = vunpack.c.l.b16 %v1319
    %v1714 = vunpack.c.h.b16 %v1319
    %v1715 = vunpack.c.l.b16 %v1320
    %v1716 = vunpack.c.h.b16 %v1320
    %v1717 = vunpack.c.l.b16 %v1321
    %v1718 = vunpack.c.h.b16 %v1321
    %v1719 = vunpack.c.l.b16 %v1322
    %v1720 = vunpack.c.h.b16 %v1322
    %v1721 = vunpack.c.l.b16 %v1323
    %v1722 = vunpack.c.h.b16 %v1323
    %v1723 = vunpack.c.l.b16 %v1324
    %v1724 = vunpack.c.h.b16 %v1324
    %v1725 = vunpack.c.l.b16 %v1325
    %v1726 = vunpack.c.h.b16 %v1325
    %v1727 = vunpack.c.l.b16 %v1326
    %v1728 = vunpack.c.h.b16 %v1326
    %v1729 = vunpack.c.l.b16 %v1327
    %v1730 = vunpack.c.h.b16 %v1327
    %v1731 = vunpack.c.l.b16 %v1328
    %v1732 = vunpack.c.h.b16 %v1328
    %v1733 = vunpack.c.l.b16 %v1329
    %v1734 = vunpack.c.h.b16 %v1329
    %v1735 = vunpack.c.l.b16 %v1330
    %v1736 = vunpack.c.h.b16 %v1330
    %v1737 = vunpack.c.l.b16 %v1331
    %v1738 = vunpack.c.h.b16 %v1331
    %v1739 = vunpack.c.l.b16 %v1332
    %v1740 = vunpack.c.h.b16 %v1332
    %v1741 = vunpack.c.l.b16 %v1333
    %v1742 = vunpack.c.h.b16 %v1333
    %v1743 = vunpack.c.l.b16 %v1334
    %v1744 = vunpack.c.h.b16 %v1334
    %v1745 = vunpack.c.l.b16 %v1335
    %v1746 = vunpack.c.h.b16 %v1335
    %v1747 = vunpack.c.l.b16 %v1336
    %v1748 = vunpack.c.h.b16 %v1336
    %v1749 = vunpack.c.l.b16 %v1337
    %v1750 = vunpack.c.h.b16 %v1337
    %v1751 = vunpack.c.l.b16 %v1338
    %v1752 = vunpack.c.h.b16 %v1338
    %v1753 = vunpack.c.l.b16 %v1339
    %v1754 = vunpack.c.h.b16 %v1339
    %v1755 = vunpack.c.l.b16 %v1340
    %v1756 = vunpack.c.h.b16 %v1340
    %v1757 = vunpack.c.l.b16 %v1341
    %v1758 = vunpack.c.h.b16 %v1341
    %v1759 = vunpack.c.l.b16 %v1342
    %v1760 = vunpack.c.h.b16 %v1342
    %v1761 = vunpack.c.l.b16 %v1343
    %v1762 = vunpack.c.h.b16 %v1343
    %v1763 = vunpack.c.l.b16 %v1344
    %v1764 = vunpack.c.h.b16 %v1344
    %v1765 = vunpack.c.l.b16 %v1345
    %v1766 = vunpack.c.h.b16 %v1345
    %v1767 = vpack.c.b16 %v1519, %v1511
    %v1768 = vpack.c.b16 %v1520, %v1512
    %v1769 = vpack.c.b16 %v1521, %v1513
    %v1770 = vpack.c.b16 %v1522, %v1514
    %v1771 = vpack.c.b16 %v1523, %v1515
    %v1772 = vpack.c.b16 %v1524, %v1516
    %v1773 = vpack.c.b16 %v1525, %v1517
    %v1774 = vpack.c.b16 %v1526, %v1518
    %v1775 = vpack.c.b16 %v1535, %v1527
    %v1776 = vpack.c.b16 %v1536, %v1528
    %v1777 = vpack.c.b16 %v1537, %v1529
    %v1778 = vpack.c.b16 %v1538, %v1530
    %v1779 = vpack.c.b16 %v1539, %v1531
    %v1780 = vpack.c.b16 %v1540, %v1532
    %v1781 = vpack.c.b16 %v1541, %v1533
    %v1782 = vpack.c.b16 %v1542, %v1534
    %v1783 = vpack.c.b16 %v1551, %v1543
    %v1784 = vpack.c.b16 %v1552, %v1544
    %v1785 = vpack.c.b16 %v1553, %v1545
    %v1786 = vpack.c.b16 %v1554, %v1546
    %v1787 = vpack.c.b16 %v1555, %v1547
    %v1788 = vpack.c.b16 %v1556, %v1548
    %v1789 = vpack.c.b16 %v1557, %v1549
    %v1790 = vpack.c.b16 %v1558, %v1550
    %v1791 = vpack.c.b16 %v1567, %v1559
    %v1792 = vpack.c.b16 %v1568, %v1560
    %v1793 = vpack.c.b16 %v1569, %v1561
    %v1794 = vpack.c.b16 %v1570, %v1562
    %v1795 = vpack.c.b16 %v1571, %v1563
    %v1796 = vpack.c.b16 %v1572, %v1564
    %v1797 = vpack.c.b16 %v1573, %v1565
    %v1798 = vpack.c.b16 %v1574, %v1566
    %v1799 = vpack.c.b16 %v1583, %v1575
    %v1800 = vpack.c.b16 %v1584, %v1576
    %v1801 = vpack.c.b16 %v1585, %v1577
    %v1802 = vpack.c.b16 %v1586, %v1578
    %v1803 = vpack.c.b16 %v1587, %v1579
    %v1804 = vpack.c.b16 %v1588, %v1580
    %v1805 = vpack.c.b16 %v1589, %v1581
    %v1806 = vpack.c.b16 %v1590, %v1582
    %v1807 = vpack.c.b16 %v1599, %v1591
    %v1808 = vpack.c.b16 %v1600, %v1592
    %v1809 = vpack.c.b16 %v1601, %v1593
    %v1810 = vpack.c.b16 %v1602, %v1594
    %v1811 = vpack.c.b16 %v1603, %v1595
    %v1812 = vpack.c.b16 %v1604, %v1596
    %v1813 = vpack.c.b16 %v1605, %v1597
    %v1814 = vpack.c.b16 %v1606, %v1598
    %v1815 = vpack.c.b16 %v1615, %v1607
    %v1816 = vpack.c.b16 %v1616, %v1608
    %v1817 = vpack.c.b16 %v1617, %v1609
    %v1818 = vpack.c.b16 %v1618, %v1610
    %v1819 = vpack.c.b16 %v1619, %v1611
    %v1820 = vpack.c.b16 %v1620, %v1612
    %v1821 = vpack.c.b16 %v1621, %v1613
    %v1822 = vpack.c.b16 %v1622, %v1614
    %v1823 = vpack.c.b16 %v1631, %v1623
    %v1824 = vpack.c.b16 %v1632, %v1624
    %v1825 = vpack.c.b16 %v1633, %v1625
    %v1826 = vpack.c.b16 %v1634, %v1626
    %v1827 = vpack.c.b16 %v1635, %v1627
    %v1828 = vpack.c.b16 %v1636, %v1628
    %v1829 = vpack.c.b16 %v1637, %v1629
    %v1830 = vpack.c.b16 %v1638, %v1630
    %v1831 = vpack.c.b16 %v1647, %v1639
    %v1832 = vpack.c.b16 %v1648, %v1640
    %v1833 = vpack.c.b16 %v1649, %v1641
    %v1834 = vpack.c.b16 %v1650, %v1642
    %v1835 = vpack.c.b16 %v1651, %v1643
    %v1836 = vpack.c.b16 %v1652, %v1644
    %v1837 = vpack.c.b16 %v1653, %v1645
    %v1838 = vpack.c.b16 %v1654, %v1646
    %v1839 = vpack.c.b16 %v1663, %v1655
    %v1840 = vpack.c.b16 %v1664, %v1656
    %v1841 = vpack.c.b16 %v1665, %v1657
    %v1842 = vpack.c.b16 %v1666, %v1658
    %v1843 = vpack.c.b16 %v1667, %v1659
    %v1844 = vpack.c.b16 %v1668, %v1660
    %v1845 = vpack.c.b16 %v1669, %v1661
    %v1846 = vpack.c.b16 %v1670, %v1662
    %v1847 = vpack.c.b16 %v1679, %v1671
    %v1848 = vpack.c.b16 %v1680, %v1672
    %v1849 = vpack.c.b16 %v1681, %v1673
    %v1850 = vpack.c.b16 %v1682, %v1674
    %v1851 = vpack.c.b16 %v1683, %v1675
    %v1852 = vpack.c.b16 %v1684, %v1676
    %v1853 = vpack.c.b16 %v1685, %v1677
    %v1854 = vpack.c.b16 %v1686, %v1678
    %v1855 = vpack.c.b16 %v1695, %v1687
    %v1856 = vpack.c.b16 %v1696, %v1688
    %v1857 = vpack.c.b16 %v1697, %v1689
    %v1858 = vpack.c.b16 %v1698, %v1690
    %v1859 = vpack.c.b16 %v1699, %v1691
    %v1860 = vpack.c.b16 %v1700, %v1692
    %v1861 = vpack.c.b16 %v1701, %v1693
    %v1862 = vpack.c.b16 %v1702, %v1694
    %v1863 = vpack.c.b16 %v1711, %v1703
    %v1864 = vpack.c.b16 %v1712, %v1704
    %v1865 = vpack.c.b16 %v1713, %v1705
    %v1866 = vpack.c.b16 %v1714, %v1706
    %v1867 = vpack.c.b16 %v1715, %v1707
    %v1868 = vpack.c.b16 %v1716, %v1708
    %v1869 = vpack.c.b16 %v1717, %v1709
    %v1870 = vpack.c.b16 %v1718, %v1710
    %v1871 = vpack.c.b16 %v1727, %v1719
    %v1872 = vpack.c.b16 %v1728, %v1720
    %v1873 = vpack.c.b16 %v1729, %v1721
    %v1874 = vpack.c.b16 %v1730, %v1722
    %v1875 = vpack.c.b16 %v1731, %v1723
    %v1876 = vpack.c.b16 %v1732, %v1724
    %v1877 = vpack.c.b16 %v1733, %v1725
    %v1878 = vpack.c.b16 %v1734, %v1726
    %v1879 = vpack.c.b16 %v1743, %v1735
    %v1880 = vpack.c.b16 %v1744, %v1736
    %v1881 = vpack.c.b16 %v1745, %v1737
    %v1882 = vpack.c.b16 %v1746, %v1738
    %v1883 = vpack.c.b16 %v1747, %v1739
    %v1884 = vpack.c.b16 %v1748, %v1740
    %v1885 = vpack.c.b16 %v1749, %v1741
    %v1886 = vpack.c.b16 %v1750, %v1742
    %v1887 = vpack.c.b16 %v1759, %v1751
    %v1888 = vpack.c.b16 %v1760, %v1752
    %v1889 = vpack.c.b16 %v1761, %v1753
    %v1890 = vpack.c.b16 %v1762, %v1754
    %v1891 = vpack.c.b16 %v1763, %v1755
    %v1892 = vpack.c.b16 %v1764, %v1756
    %v1893 = vpack.c.b16 %v1765, %v1757
    %v1894 = vpack.c.b16 %v1766, %v1758
    %2023 = vmatprep.subr.bf16.mxu0 %v1768
    %2024 = vmatpush1.bf16.msra.mxu0 %v1767
    %2025 = vmatprep.subr.bf16.mxu0 %v1776
    %2026 = vmatpush1.bf16.msra.mxu0 %v1775
    %2027 = vmatprep.subr.bf16.mxu0 %v1784
    %2028 = vmatpush1.bf16.msra.mxu0 %v1783
    %2029 = vmatprep.subr.bf16.mxu0 %v1792
    %2030 = vmatpush1.bf16.msra.mxu0 %v1791
    %2031 = vmatprep.subr.bf16.mxu0 %v1800
    %2032 = vmatpush1.bf16.msra.mxu0 %v1799
    %2033 = vmatprep.subr.bf16.mxu0 %v1808
    %2034 = vmatpush1.bf16.msra.mxu0 %v1807
    %2035 = vmatprep.subr.bf16.mxu0 %v1816
    %2036 = vmatpush1.bf16.msra.mxu0 %v1815
    %2037 = vmatprep.subr.bf16.mxu0 %v1824
    %2038 = vmatpush1.bf16.msra.mxu0 %v1823
    %2039 = vmatprep.subr.bf16.mxu0 %v1832
    %2040 = vmatpush1.bf16.msra.mxu0 %v1831
    %2041 = vmatprep.subr.bf16.mxu0 %v1840
    %2042 = vmatpush1.bf16.msra.mxu0 %v1839
    %2043 = vmatprep.subr.bf16.mxu0 %v1848
    %2044 = vmatpush1.bf16.msra.mxu0 %v1847
    %2045 = vmatprep.subr.bf16.mxu0 %v1856
    %2046 = vmatpush1.bf16.msra.mxu0 %v1855
    %2047 = vmatprep.subr.bf16.mxu0 %v1864
    %2048 = vmatpush1.bf16.msra.mxu0 %v1863
    %2049 = vmatprep.subr.bf16.mxu0 %v1872
    %2050 = vmatpush1.bf16.msra.mxu0 %v1871
    %2051 = vmatprep.subr.bf16.mxu0 %v1880
    %2052 = vmatpush1.bf16.msra.mxu0 %v1879
    %2053 = vmatprep.subr.bf16.mxu0 %v1888
    %2054 = vmatpush1.bf16.msra.mxu0 %v1887
    %2055 = vmatprep.mubr.bf16.mxu0 %v1382
    %2056 = vmatmul.mubr.bf16.gmra.mrb[0].mxu0 %v1381
    %v2057 = vpop.f32.mrb[0].mxu0
    %v2058 = vadd.f32 0.0, %v2057
    %v2059 = vpop.f32.mrb[0].mxu0
    %v2060 = vadd.f32 0.0, %v2059
    %v2061 = vpop.f32.mrb[0].mxu0
    %v2062 = vpop.f32.mrb[0].mxu0
    %2063 = vdwg.mxu0
    %2064 = vmatprep.subr.bf16.mxu0 %v1770
    %2065 = vmatpush1.bf16.msra.mxu0 %v1769
    %2066 = vmatprep.subr.bf16.mxu0 %v1778
    %2067 = vmatpush1.bf16.msra.mxu0 %v1777
    %2068 = vmatprep.subr.bf16.mxu0 %v1786
    %2069 = vmatpush1.bf16.msra.mxu0 %v1785
    %2070 = vmatprep.subr.bf16.mxu0 %v1794
    %2071 = vmatpush1.bf16.msra.mxu0 %v1793
    %2072 = vmatprep.subr.bf16.mxu0 %v1802
    %2073 = vmatpush1.bf16.msra.mxu0 %v1801
    %2074 = vmatprep.subr.bf16.mxu0 %v1810
    %2075 = vmatpush1.bf16.msra.mxu0 %v1809
    %2076 = vmatprep.subr.bf16.mxu0 %v1818
    %2077 = vmatpush1.bf16.msra.mxu0 %v1817
    %2078 = vmatprep.subr.bf16.mxu0 %v1826
    %2079 = vmatpush1.bf16.msra.mxu0 %v1825
    %2080 = vmatprep.subr.bf16.mxu0 %v1834
    %2081 = vmatpush1.bf16.msra.mxu0 %v1833
    %2082 = vmatprep.subr.bf16.mxu0 %v1842
    %2083 = vmatpush1.bf16.msra.mxu0 %v1841
    %2084 = vmatprep.subr.bf16.mxu0 %v1850
    %2085 = vmatpush1.bf16.msra.mxu0 %v1849
    %2086 = vmatprep.subr.bf16.mxu0 %v1858
    %2087 = vmatpush1.bf16.msra.mxu0 %v1857
    %2088 = vmatprep.subr.bf16.mxu0 %v1866
    %2089 = vmatpush1.bf16.msra.mxu0 %v1865
    %2090 = vmatprep.subr.bf16.mxu0 %v1874
    %2091 = vmatpush1.bf16.msra.mxu0 %v1873
    %2092 = vmatprep.subr.bf16.mxu0 %v1882
    %2093 = vmatpush1.bf16.msra.mxu0 %v1881
    %2094 = vmatprep.subr.bf16.mxu0 %v1890
    %2095 = vmatpush1.bf16.msra.mxu0 %v1889
    %2096 = vmatprep.mubr.bf16.mxu0 %v1382
    %2097 = vmatmul.mubr.bf16.gmra.mrb[0].mxu0 %v1381
    %v2098 = vpop.f32.mrb[0].mxu0
    %v2099 = vadd.f32 0.0, %v2098
    %v2100 = vpop.f32.mrb[0].mxu0
    %v2101 = vadd.f32 0.0, %v2100
    %v2102 = vpop.f32.mrb[0].mxu0
    %v2103 = vpop.f32.mrb[0].mxu0
    %2104 = vdwg.mxu0
    %2105 = vmatprep.subr.bf16.mxu0 %v1772
    %2106 = vmatpush1.bf16.msra.mxu0 %v1771
    %2107 = vmatprep.subr.bf16.mxu0 %v1780
    %2108 = vmatpush1.bf16.msra.mxu0 %v1779
    %2109 = vmatprep.subr.bf16.mxu0 %v1788
    %2110 = vmatpush1.bf16.msra.mxu0 %v1787
    %2111 = vmatprep.subr.bf16.mxu0 %v1796
    %2112 = vmatpush1.bf16.msra.mxu0 %v1795
    %2113 = vmatprep.subr.bf16.mxu0 %v1804
    %2114 = vmatpush1.bf16.msra.mxu0 %v1803
    %2115 = vmatprep.subr.bf16.mxu0 %v1812
    %2116 = vmatpush1.bf16.msra.mxu0 %v1811
    %2117 = vmatprep.subr.bf16.mxu0 %v1820
    %2118 = vmatpush1.bf16.msra.mxu0 %v1819
    %2119 = vmatprep.subr.bf16.mxu0 %v1828
    %2120 = vmatpush1.bf16.msra.mxu0 %v1827
    %2121 = vmatprep.subr.bf16.mxu0 %v1836
    %2122 = vmatpush1.bf16.msra.mxu0 %v1835
    %2123 = vmatprep.subr.bf16.mxu0 %v1844
    %2124 = vmatpush1.bf16.msra.mxu0 %v1843
    %2125 = vmatprep.subr.bf16.mxu0 %v1852
    %2126 = vmatpush1.bf16.msra.mxu0 %v1851
    %2127 = vmatprep.subr.bf16.mxu0 %v1860
    %2128 = vmatpush1.bf16.msra.mxu0 %v1859
    %2129 = vmatprep.subr.bf16.mxu0 %v1868
    %2130 = vmatpush1.bf16.msra.mxu0 %v1867
    %2131 = vmatprep.subr.bf16.mxu0 %v1876
    %2132 = vmatpush1.bf16.msra.mxu0 %v1875
    %2133 = vmatprep.subr.bf16.mxu0 %v1884
    %2134 = vmatpush1.bf16.msra.mxu0 %v1883
    %2135 = vmatprep.subr.bf16.mxu0 %v1892
    %2136 = vmatpush1.bf16.msra.mxu0 %v1891
    %2137 = vmatprep.mubr.bf16.mxu0 %v1382
    %2138 = vmatmul.mubr.bf16.gmra.mrb[0].mxu0 %v1381
    %v2139 = vpop.f32.mrb[0].mxu0
    %v2140 = vadd.f32 0.0, %v2139
    %v2141 = vpop.f32.mrb[0].mxu0
    %v2142 = vadd.f32 0.0, %v2141
    %v2143 = vpop.f32.mrb[0].mxu0
    %v2144 = vpop.f32.mrb[0].mxu0
    %2145 = vdwg.mxu0
    %2146 = vmatprep.subr.bf16.mxu0 %v1774
    %2147 = vmatpush1.bf16.msra.mxu0 %v1773
    %2148 = vmatprep.subr.bf16.mxu0 %v1782
    %2149 = vmatpush1.bf16.msra.mxu0 %v1781
    %2150 = vmatprep.subr.bf16.mxu0 %v1790
    %2151 = vmatpush1.bf16.msra.mxu0 %v1789
    %2152 = vmatprep.subr.bf16.mxu0 %v1798
    %2153 = vmatpush1.bf16.msra.mxu0 %v1797
    %2154 = vmatprep.subr.bf16.mxu0 %v1806
    %2155 = vmatpush1.bf16.msra.mxu0 %v1805
    %2156 = vmatprep.subr.bf16.mxu0 %v1814
    %2157 = vmatpush1.bf16.msra.mxu0 %v1813
    %2158 = vmatprep.subr.bf16.mxu0 %v1822
    %2159 = vmatpush1.bf16.msra.mxu0 %v1821
    %2160 = vmatprep.subr.bf16.mxu0 %v1830
    %2161 = vmatpush1.bf16.msra.mxu0 %v1829
    %2162 = vmatprep.subr.bf16.mxu0 %v1838
    %2163 = vmatpush1.bf16.msra.mxu0 %v1837
    %2164 = vmatprep.subr.bf16.mxu0 %v1846
    %2165 = vmatpush1.bf16.msra.mxu0 %v1845
    %2166 = vmatprep.subr.bf16.mxu0 %v1854
    %2167 = vmatpush1.bf16.msra.mxu0 %v1853
    %2168 = vmatprep.subr.bf16.mxu0 %v1862
    %2169 = vmatpush1.bf16.msra.mxu0 %v1861
    %2170 = vmatprep.subr.bf16.mxu0 %v1870
    %2171 = vmatpush1.bf16.msra.mxu0 %v1869
    %2172 = vmatprep.subr.bf16.mxu0 %v1878
    %2173 = vmatpush1.bf16.msra.mxu0 %v1877
    %2174 = vmatprep.subr.bf16.mxu0 %v1886
    %2175 = vmatpush1.bf16.msra.mxu0 %v1885
    %2176 = vmatprep.subr.bf16.mxu0 %v1894
    %2177 = vmatpush1.bf16.msra.mxu0 %v1893
    %2178 = vmatprep.mubr.bf16.mxu0 %v1382
    %2179 = vmatmul.mubr.bf16.gmra.mrb[0].mxu0 %v1381
    %v2180 = vpop.f32.mrb[0].mxu0
    %v2181 = vadd.f32 0.0, %v2180
    %v2182 = vpop.f32.mrb[0].mxu0
    %v2183 = vadd.f32 0.0, %v2182
    %v2184 = vpop.f32.mrb[0].mxu0
    %v2185 = vpop.f32.mrb[0].mxu0
    %2186 = vdwg.mxu0
    %s2187 = smul.u32 %s1371, 8
    %s2188 = smul.addr %s2187, 2
    %s2189 = scalar_lea.vmem [#allocation2], %s2188
    %v2190 = vld [vmem:[%s2189] sm:$0xff]
    %v2195 = vcombine.low %v2058, %v2060
    %v2196 = vcombine.low %v2099, %v2101
    %v2198 = vunpack.c.l.s4 1983009808
    %v2199 = vunpack.c.0.s8 %v2198
    %v2200 = vlaneseq
    %v2201 = vshrl.u32 %v2200, 7
    %v2202 = vsub.s32 %v2199, %v2201
    %v2203 = vrot.slane %v2195, %v2202
    %v2205 = vunpack.c.l.s4 1983009808
    %v2206 = vunpack.c.0.s8 %v2205
    %v2207 = vlaneseq
    %v2208 = vshrl.u32 %v2207, 7
    %v2209 = vsub.s32 %v2206, %v2208
    %v2210 = vrot.slane %v2196, %v2209
    %v2211 = vcombine.low %v2203, %v2210
    %v2213 = vadd.f32 %v2190, %v2211
    %s2214 = smul.u32 %s1380, 8
    %s2215 = smul.addr %s2214, 2
    %s2216 = scalar_lea.vmem [#allocation2], %s2215
    %v2217 = vld [vmem:[%s2216 + $0x8] sm:$0xff]
    %v2222 = vcombine.low %v2140, %v2142
    %v2223 = vcombine.low %v2181, %v2183
    %v2225 = vunpack.c.l.s4 1983009808
    %v2226 = vunpack.c.0.s8 %v2225
    %v2227 = vlaneseq
    %v2228 = vshrl.u32 %v2227, 7
    %v2229 = vsub.s32 %v2226, %v2228
    %v2230 = vrot.slane %v2222, %v2229
    %v2232 = vunpack.c.l.s4 1983009808
    %v2233 = vunpack.c.0.s8 %v2232
    %v2234 = vlaneseq
    %v2235 = vshrl.u32 %v2234, 7
    %v2236 = vsub.s32 %v2233, %v2235
    %v2237 = vrot.slane %v2223, %v2236
    %v2238 = vcombine.low %v2230, %v2237
    %v2240 = vadd.f32 %v2217, %v2238
    %v2241 = vxor.u32 %v2213, 2147483648
    %v2242 = vmul.f32 %v2241, 1.442695
    %v2243 = vpow.pop %v2242
    %v2244 = vadd.f32 %v2243, 1.0
    %v2245 = vrcp.pop %v2244
    %v2246 = vmul.f32 1.0, %v2245
    %v2248 = vrot.slane %v2213, 6
    %v2250 = vtanh.pop %v2248
    %v2252 = vrot.slane %v2246, 2
    %v2254 = vmul.f32 %v2252, %v1378
    %v2255 = vmul.f32 %v2246, %v2250
    %v2256 = vadd.f32 %v2254, %v2255
    %v2257 = vtanh.pop %v2256
    %v2258 = vrot.slane %v2246, 4
    %v2260 = vmul.f32 %v2258, %v2257
    %v2261 = vxor.u32 %v2240, 2147483648
    %v2262 = vmul.f32 %v2261, 1.442695
    %v2263 = vpow.pop %v2262
    %v2264 = vadd.f32 %v2263, 1.0
    %v2265 = vrcp.pop %v2264
    %v2266 = vmul.f32 1.0, %v2265
    %v2268 = vrot.slane %v2240, 6
    %v2270 = vtanh.pop %v2268
    %v2272 = vrot.slane %v2266, 2
    %v2274 = vmul.f32 %v2272, %v1379
    %v2275 = vmul.f32 %v2266, %v2270
    %v2276 = vadd.f32 %v2274, %v2275
    %v2277 = vtanh.pop %v2276
    %v2278 = vrot.slane %v2266, 4
    %v2280 = vmul.f32 %v2278, %v2277
    %v2281 = vpack.c.bf16 %v2260, %v2260
    %s2282 = scalar_lea.vmem %s6, %s1371
    %2283 = vst [vmem:[%s2282] sm:$0x1] %v2281
    %v2284 = vpack.c.bf16 %v2280, %v2280
    %s2285 = scalar_lea.vmem %s7, %s1380
    %2286 = vst [vmem:[%s2285] sm:$0x1] %v2284
  $region30: #{bilstm_crf_forward.4} parent=0 // loop_footer
    %s1375 = sadd.s32 1, %s1371
  $region31: #{bilstm_crf_forward.4} parent=0 // loop_footer_branch
    %1370 = sbr.rel target = $region27
  $region32: #{bilstm_crf_forward.4} parent=0 // loop_exit
    _
  // Predicated region
  $region33: #{bilstm_crf_forward.4} parent=0 // pred_check
    _
  $region34: #{bilstm_crf_forward.4} parent=0 // pred_check_branch
    %2288 = sbr.rel (0) target = $region36
  $region35: #{bilstm_crf_forward.4} parent=0 // pred_region
    _
  $region36: #{bilstm_crf_forward.4} parent=0 // pred_fallthru
    _
  // Predicated region
  $region37: #{bilstm_crf_forward.4} parent=0 // pred_check
    _
  $region38: #{bilstm_crf_forward.4} parent=0 // pred_check_branch
    %2290 = sbr.rel (0) target = $region40
  $region39: #{bilstm_crf_forward.4} parent=0 // pred_region
    _
  $region40: #{bilstm_crf_forward.4} parent=0 // pred_fallthru
    _
  // Predicated region
  $region41: #{bilstm_crf_forward.4} parent=0 // pred_check
    _
  $region42: #{bilstm_crf_forward.4} parent=0 // pred_check_branch
    %2292 = sbr.rel (0) target = $region44
  $region43: #{bilstm_crf_forward.4} parent=0 // pred_region
    _
  $region44: #{bilstm_crf_forward.4} parent=0 // pred_fallthru
    _
  // Predicated region
  $region45: #{bilstm_crf_forward.4} parent=0 // pred_check
    _
  $region46: #{bilstm_crf_forward.4} parent=0 // pred_check_branch
    %2294 = sbr.rel (0) target = $region48
  $region47: #{bilstm_crf_forward.4} parent=0 // pred_region
    _
  $region48: #{bilstm_crf_forward.4} parent=0 // pred_fallthru
    _

</llo_original>
